<compile_context>
chip_gen: v7x
topology: tpu7x:2x2x1
jax: 0.10.0
libtpu: 0.0.40
codegen_flags: <defaults>
</compile_context>

<pallas_src>
import functools
import math

import jax
import jax.numpy as jnp
from jax import lax
from jax.experimental import pallas as pl
from jax.experimental.pallas import tpu as pltpu


def _tile(dim, target, align):
    """Largest block size <= target that divides dim and is a multiple of
    `align`; falls back to the full dim (always a legal block)."""
    if dim <= target:
        return dim
    t = (target // align) * align
    while t >= align:
        if dim % t == 0:
            return t
        t -= align
    return dim


def _nbytes(shape, dtype):
    return math.prod(shape) * jnp.dtype(dtype).itemsize


def _vmem_limit(block_bytes, scratch_bytes=0, temp_bytes=0):
    """Per-kernel scoped-VMEM request: double-buffered blocks + scratch +
    in-kernel temporaries + headroom, clamped to ~75% of physical VMEM
    (v7x only has 64 MiB per TensorCore, so never blanket-request 64+ MiB)."""
    need = 2 * block_bytes + scratch_bytes + temp_bytes + (16 << 20)
    cap = 96 << 20
    try:
        hw = getattr(pltpu.get_tpu_info(), "vmem_capacity_bytes", None)
        if hw:
            cap = min(cap, int(hw) * 3 // 4)
    except Exception:
        pass
    return int(max(24 << 20, min(need, cap)))


# ---------------------------------------------------------------------------
# Tiled dense: y = act(x @ w + b)
#   - whole-K path (K <= 1024 or explicitly requested): no K grid axis, no
#     accumulator scratch, epilogue fused directly after the single MXU pass.
#   - K-grid path (FFN down-projection, K = 4H): f32 VMEM accumulator with
#     pl.when init/finalize on the (last, "arbitrary") K axis.
# ---------------------------------------------------------------------------

def _act_epilogue(y, act):
    if act == "gelu":  # tanh approximation (BERT intermediate activation)
        y = 0.5 * y * (1.0 + jnp.tanh(
            0.7978845608028654 * (y + 0.044715 * y * y * y)))
    elif act == "tanh":
        y = jnp.tanh(y)
    return y


def _dense_wholek_kernel(x_ref, w_ref, b_ref, o_ref, *, act):
    y = jnp.dot(x_ref[...], w_ref[...], preferred_element_type=jnp.float32)
    y = y + b_ref[...].astype(jnp.float32)
    o_ref[...] = _act_epilogue(y, act).astype(o_ref.dtype)


def _dense_kgrid_kernel(x_ref, w_ref, b_ref, o_ref, acc_ref, *, act):
    @pl.when(pl.program_id(2) == 0)
    def _():
        acc_ref[...] = jnp.zeros_like(acc_ref)

    acc_ref[...] += jnp.dot(x_ref[...], w_ref[...],
                            preferred_element_type=jnp.float32)

    @pl.when(pl.program_id(2) == pl.num_programs(2) - 1)
    def _():
        y = acc_ref[...] + b_ref[...].astype(jnp.float32)
        o_ref[...] = _act_epilogue(y, act).astype(o_ref.dtype)


def dense(x, w, b, act="none", *, tm=512, tn=512, tk=None):
    """x: (M, K), w: (K, N), b: (1, N) -> (M, N)."""
    M, K = x.shape
    N = w.shape[1]
    tm = _tile(M, tm, 8)
    tn = _tile(N, tn, 128)
    if tk is None:
        tk = K if K <= 1024 else _tile(K, 1536, 128)
    else:
        tk = _tile(K, tk, 128)

    blocks = (_nbytes((tm, tk), x.dtype) + _nbytes((tk, tn), w.dtype)
              + _nbytes((1, tn), b.dtype) + _nbytes((tm, tn), x.dtype))
    temps = 4 * tm * tn * 4  # f32 epilogue temporaries

    if tk == K:  # whole-K: no K grid axis, no accumulator scratch
        return pl.pallas_call(
            functools.partial(_dense_wholek_kernel, act=act),
            grid=(M // tm, N // tn),
            in_specs=[
                pl.BlockSpec((tm, K), lambda i, j: (i, 0)),
                pl.BlockSpec((K, tn), lambda i, j: (0, j)),
                pl.BlockSpec((1, tn), lambda i, j: (0, j)),
            ],
            out_specs=pl.BlockSpec((tm, tn), lambda i, j: (i, j)),
            out_shape=jax.ShapeDtypeStruct((M, N), x.dtype),
            compiler_params=pltpu.CompilerParams(
                dimension_semantics=("parallel", "parallel"),
                vmem_limit_bytes=_vmem_limit(blocks, temp_bytes=temps)),
        )(x, w, b)

    acc_bytes = tm * tn * 4
    return pl.pallas_call(
        functools.partial(_dense_kgrid_kernel, act=act),
        grid=(M // tm, N // tn, K // tk),
        in_specs=[
            pl.BlockSpec((tm, tk), lambda i, j, k: (i, k)),
            pl.BlockSpec((tk, tn), lambda i, j, k: (k, j)),
            pl.BlockSpec((1, tn), lambda i, j, k: (0, j)),   # bias moves with j only
        ],
        out_specs=pl.BlockSpec((tm, tn), lambda i, j, k: (i, j)),
        out_shape=jax.ShapeDtypeStruct((M, N), x.dtype),
        scratch_shapes=[pltpu.VMEM((tm, tn), jnp.float32)],
        compiler_params=pltpu.CompilerParams(
            dimension_semantics=("parallel", "parallel", "arbitrary"),
            vmem_limit_bytes=_vmem_limit(blocks, scratch_bytes=acc_bytes,
                                         temp_bytes=temps)),
    )(x, w, b)


# ---------------------------------------------------------------------------
# Tiled dense with fused residual-add + LayerNorm epilogue:
#   y = LayerNorm(x @ w + b + residual)
# N is kept whole inside the block (LayerNorm needs the full row).
# ---------------------------------------------------------------------------

def _add_ln_epilogue(y, r_ref, g_ref, bt_ref, eps):
    y = y + r_ref[...].astype(jnp.float32)
    mu = jnp.mean(y, axis=-1, keepdims=True)
    yc = y - mu
    var = jnp.mean(yc * yc, axis=-1, keepdims=True)
    y = yc * lax.rsqrt(var + eps)
    return y * g_ref[...].astype(jnp.float32) + bt_ref[...].astype(jnp.float32)


def _dense_ln_wholek_kernel(x_ref, w_ref, b_ref, r_ref, g_ref, bt_ref, o_ref,
                            *, eps):
    y = jnp.dot(x_ref[...], w_ref[...], preferred_element_type=jnp.float32)
    y = y + b_ref[...].astype(jnp.float32)
    o_ref[...] = _add_ln_epilogue(y, r_ref, g_ref, bt_ref, eps).astype(o_ref.dtype)


def _dense_ln_kgrid_kernel(x_ref, w_ref, b_ref, r_ref, g_ref, bt_ref, o_ref,
                           acc_ref, *, eps):
    @pl.when(pl.program_id(1) == 0)
    def _():
        acc_ref[...] = jnp.zeros_like(acc_ref)

    acc_ref[...] += jnp.dot(x_ref[...], w_ref[...],
                            preferred_element_type=jnp.float32)

    @pl.when(pl.program_id(1) == pl.num_programs(1) - 1)
    def _():
        y = acc_ref[...] + b_ref[...].astype(jnp.float32)
        o_ref[...] = _add_ln_epilogue(y, r_ref, g_ref, bt_ref, eps).astype(o_ref.dtype)


def dense_add_layernorm(x, w, b, residual, gamma, beta, eps=1e-12,
                        *, tm=512, tk=None):
    M, K = x.shape
    N = w.shape[1]
    tm = _tile(M, tm, 8)  # tm<=512 keeps M//tm >= 2 at real sizes (v7x 2-TC sharding)
    if tk is None:
        tk = K if K <= 1024 else _tile(K, 1536, 128)
    else:
        tk = _tile(K, tk, 128)

    blocks = (_nbytes((tm, tk), x.dtype) + _nbytes((tk, N), w.dtype)
              + 3 * _nbytes((1, N), b.dtype) + _nbytes((tm, N), residual.dtype)
              + _nbytes((tm, N), x.dtype))
    temps = 4 * tm * N * 4

    if tk == K:
        return pl.pallas_call(
            functools.partial(_dense_ln_wholek_kernel, eps=eps),
            grid=(M // tm,),
            in_specs=[
                pl.BlockSpec((tm, K), lambda i: (i, 0)),
                pl.BlockSpec((K, N), lambda i: (0, 0)),
                pl.BlockSpec((1, N), lambda i: (0, 0)),
                pl.BlockSpec((tm, N), lambda i: (i, 0)),     # residual
                pl.BlockSpec((1, N), lambda i: (0, 0)),      # gamma
                pl.BlockSpec((1, N), lambda i: (0, 0)),      # beta
            ],
            out_specs=pl.BlockSpec((tm, N), lambda i: (i, 0)),
            out_shape=jax.ShapeDtypeStruct((M, N), x.dtype),
            compiler_params=pltpu.CompilerParams(
                dimension_semantics=("parallel",),
                vmem_limit_bytes=_vmem_limit(blocks, temp_bytes=temps)),
        )(x, w, b, residual, gamma, beta)

    acc_bytes = tm * N * 4
    return pl.pallas_call(
        functools.partial(_dense_ln_kgrid_kernel, eps=eps),
        grid=(M // tm, K // tk),
        in_specs=[
            pl.BlockSpec((tm, tk), lambda i, k: (i, k)),
            pl.BlockSpec((tk, N), lambda i, k: (k, 0)),
            pl.BlockSpec((1, N), lambda i, k: (0, 0)),
            pl.BlockSpec((tm, N), lambda i, k: (i, 0)),      # residual
            pl.BlockSpec((1, N), lambda i, k: (0, 0)),       # gamma
            pl.BlockSpec((1, N), lambda i, k: (0, 0)),       # beta
        ],
        out_specs=pl.BlockSpec((tm, N), lambda i, k: (i, 0)),
        out_shape=jax.ShapeDtypeStruct((M, N), x.dtype),
        scratch_shapes=[pltpu.VMEM((tm, N), jnp.float32)],
        compiler_params=pltpu.CompilerParams(
            dimension_semantics=("parallel", "arbitrary"),
            vmem_limit_bytes=_vmem_limit(blocks, scratch_bytes=acc_bytes,
                                         temp_bytes=temps)),
    )(x, w, b, residual, gamma, beta)


# ---------------------------------------------------------------------------
# Attention: the fused (B, S, 3H) qkv tensor is viewed as (B, S, 3, nh, dh)
# (free metadata reshape) and passed three times with column/head-sliced
# BlockSpecs so each grid step DMAs only the Q rows of its query block plus
# the full-sequence K and V rows — no dead (.., 3H) slab traffic.  Heads are
# processed with batched head-major dot_generals; the context is emitted as a
# single lane-dense (tq, H) tile straight into (B, S, H) layout.
# ---------------------------------------------------------------------------

def _attn_kernel(q_ref, k_ref, v_ref, m_ref, o_ref, *, scale):
    # q_ref: (1, tq, 1, nh, dh); k_ref/v_ref: (1, S, 1, nh, dh); m_ref: (1,1,1,S)
    q = q_ref[0, :, 0, :, :]                       # (tq, nh, dh)
    k = k_ref[0, :, 0, :, :]                       # (S,  nh, dh)
    v = v_ref[0, :, 0, :, :]                       # (S,  nh, dh)
    mask = m_ref[0].astype(jnp.float32)            # (1, 1, S) additive mask

    qh = jnp.swapaxes(q, 0, 1)                     # (nh, tq, dh) head-major
    kh = jnp.swapaxes(k, 0, 1)                     # (nh, S,  dh)
    vh = jnp.swapaxes(v, 0, 1)                     # (nh, S,  dh)

    # one batched dot over all heads instead of nh unrolled 64-wide matmuls
    s = jnp.einsum("hqd,hkd->hqk", qh, kh,
                   preferred_element_type=jnp.float32)          # (nh, tq, S)
    s = s * scale + mask
    s = s - jnp.max(s, axis=-1, keepdims=True)
    p = jnp.exp(s)
    p = p * pl.reciprocal(jnp.sum(p, axis=-1, keepdims=True), approx=True)
    ctx = jnp.einsum("hqk,hkd->hqd", p.astype(vh.dtype), vh,
                     preferred_element_type=jnp.float32)        # (nh, tq, dh)

    # single lane-dense (tq, H) cast+store (no per-head concatenate epilogue)
    tq, hidden = o_ref.shape[1], o_ref.shape[2]
    o_ref[0] = jnp.swapaxes(ctx, 0, 1).reshape(tq, hidden).astype(o_ref.dtype)


def attention_core(qkv, ext_mask, num_heads, scale, *, tq=256):
    """qkv: (B, S, 3H) fused projections; ext_mask: (B,1,1,S). -> (B, S, H)."""
    B, S, H3 = qkv.shape
    H = H3 // 3
    dh = H // num_heads
    tq = _tile(S, tq, 8)
    qkv5 = qkv.reshape(B, S, 3, num_heads, dh)     # free metadata reshape

    blocks = (2 * _nbytes((tq, H), qkv.dtype)          # Q block + out block
              + 2 * _nbytes((S, H), qkv.dtype)         # K + V blocks
              + _nbytes((1, 1, 1, S), ext_mask.dtype))
    temps = (3 * num_heads * tq * S * 4                # f32 scores / probs
             + 4 * (tq + 2 * S) * H * 4)               # head-major copies, ctx

    return pl.pallas_call(
        functools.partial(_attn_kernel, scale=scale),
        grid=(B, S // tq),
        in_specs=[
            pl.BlockSpec((1, tq, 1, num_heads, dh),
                         lambda b, qi: (b, qi, 0, 0, 0)),       # Q rows
            pl.BlockSpec((1, S, 1, num_heads, dh),
                         lambda b, qi: (b, 0, 1, 0, 0)),        # K rows
            pl.BlockSpec((1, S, 1, num_heads, dh),
                         lambda b, qi: (b, 0, 2, 0, 0)),        # V rows
            pl.BlockSpec((1, 1, 1, S), lambda b, qi: (b, 0, 0, 0)),
        ],
        out_specs=pl.BlockSpec((1, tq, H), lambda b, qi: (b, qi, 0)),
        out_shape=jax.ShapeDtypeStruct((B, S, H), qkv.dtype),
        compiler_params=pltpu.CompilerParams(
            dimension_semantics=("parallel", "parallel"),
            vmem_limit_bytes=_vmem_limit(blocks, temp_bytes=temps)),
    )(qkv5, qkv5, qkv5, ext_mask)


# ---------------------------------------------------------------------------
# Glue: one BERT layer, encoder stack, pooler.
# ---------------------------------------------------------------------------

def bert_layer(x, p, ext_mask, num_heads):
    B, S, H = x.shape
    x2 = x.reshape(B * S, H)

    # fused Q/K/V projection: one GEMM reading x once, output (B*S, 3H)
    qkv = dense(x2, p["qkv_w"], p["qkv_b"])
    ctx = attention_core(qkv.reshape(B, S, 3 * H), ext_mask, num_heads,
                         1.0 / ((H // num_heads) ** 0.5))
    ctx = ctx.reshape(B * S, H)

    # attention output projection with fused residual-add + LayerNorm
    h1 = dense_add_layernorm(ctx, p["ao_w"], p["ao_b"], x2,
                             p["ln1_g"], p["ln1_b"])

    inter = dense(h1, p["i_w"], p["i_b"], act="gelu")
    h2 = dense_add_layernorm(inter, p["o_w"], p["o_b"], h1,
                             p["ln2_g"], p["ln2_b"])
    return h2.reshape(B, S, H)


def encoder_pooler(embedding_output, extended_attention_mask, params,
                   num_heads, output_all_encoded_layers=True):
    encoded_layers = []
    x = embedding_output
    for lp in params["layers"]:
        x = bert_layer(x, lp, extended_attention_mask, num_heads)
        if output_all_encoded_layers:
            encoded_layers.append(x)
    if not output_all_encoded_layers:
        encoded_layers.append(x)

    sequence_output = encoded_layers[-1]
    first_tok = sequence_output[:, 0, :]                       # (B, H) BERT pooler
    pooled_output = dense(first_tok, params["pool_w"], params["pool_b"],
                          act="tanh")                          # whole-K micro-GEMM

    if not output_all_encoded_layers:
        encoded_layers = encoded_layers[-1]
    return encoded_layers, pooled_output


# ---------------------------------------------------------------------------
# Deterministic parameter init (synthetic; shapes follow a tiny BERT config).
# ---------------------------------------------------------------------------

def init_params(key, num_layers, hidden, intermediate, dtype=jnp.float32):
    def lin(k, fan_in, fan_out):
        w = jax.random.normal(k, (fan_in, fan_out), dtype) * 0.02
        b = jnp.zeros((1, fan_out), dtype)
        return w, b

    keys = jax.random.split(key, num_layers + 1)
    layers = []
    for lk in keys[:num_layers]:
        ks = jax.random.split(lk, 6)
        qw, qb = lin(ks[0], hidden, hidden)
        kw, kb = lin(ks[1], hidden, hidden)
        vw, vb = lin(ks[2], hidden, hidden)
        aow, aob = lin(ks[3], hidden, hidden)
        iw, ib = lin(ks[4], hidden, intermediate)
        ow, ob = lin(ks[5], intermediate, hidden)
        layers.append(dict(
            qkv_w=jnp.concatenate([qw, kw, vw], axis=1),      # (H, 3H)
            qkv_b=jnp.concatenate([qb, kb, vb], axis=1),      # (1, 3H)
            ao_w=aow, ao_b=aob, i_w=iw, i_b=ib, o_w=ow, o_b=ob,
            ln1_g=jnp.ones((1, hidden), dtype), ln1_b=jnp.zeros((1, hidden), dtype),
            ln2_g=jnp.ones((1, hidden), dtype), ln2_b=jnp.zeros((1, hidden), dtype)))
    pw, pb = lin(keys[-1], hidden, hidden)
    return dict(layers=layers, pool_w=pw, pool_b=pb)


# ---------------------------------------------------------------------------
# Pure-JAX reference (same math) for a correctness check at demo shapes.
# ---------------------------------------------------------------------------

def _reference(embedding_output, ext_mask, params, num_heads):
    def ln(x, g, b, eps=1e-12):
        mu = x.mean(-1, keepdims=True)
        var = ((x - mu) ** 2).mean(-1, keepdims=True)
        return (x - mu) / jnp.sqrt(var + eps) * g + b

    def gelu(x):
        return 0.5 * x * (1.0 + jnp.tanh(
            0.7978845608028654 * (x + 0.044715 * x ** 3)))

    B, S, H = embedding_output.shape
    dh = H // num_heads
    x = embedding_output
    outs = []
    for p in params["layers"]:
        x2 = x.reshape(B * S, H)
        qkv = x2 @ p["qkv_w"] + p["qkv_b"]
        q, k, v = jnp.split(qkv, 3, axis=-1)

        def heads(t):
            return t.reshape(B, S, num_heads, dh).transpose(0, 2, 1, 3)

        q, k, v = heads(q), heads(k), heads(v)
        s = jnp.einsum("bhqd,bhkd->bhqk", q, k) / (dh ** 0.5) + ext_mask
        a = jax.nn.softmax(s, axis=-1)
        ctx = jnp.einsum("bhqk,bhkd->bhqd", a, v)
        ctx = ctx.transpose(0, 2, 1, 3).reshape(B * S, H)
        h1 = ln(ctx @ p["ao_w"] + p["ao_b"] + x2, p["ln1_g"], p["ln1_b"])
        inter = gelu(h1 @ p["i_w"] + p["i_b"])
        h2 = ln(inter @ p["o_w"] + p["o_b"] + h1, p["ln2_g"], p["ln2_b"])
        x = h2.reshape(B, S, H)
        outs.append(x)
    pooled = jnp.tanh(x[:, 0, :] @ params["pool_w"] + params["pool_b"])
    return outs, pooled


if __name__ == "__main__":
    B, S, H, NH, I, L = 2, 8, 32, 4, 64, 2
    key = jax.random.PRNGKey(0)
    k_par, k_emb = jax.random.split(key)

    params = init_params(k_par, L, H, I)
    embedding_output = jax.random.normal(k_emb, (B, S, H), jnp.float32)

    # attention_mask -> extended additive mask, BERT-style
    attention_mask = jnp.ones((B, S), jnp.float32).at[1, 6:].set(0.0)
    extended_attention_mask = (1.0 - attention_mask)[:, None, None, :] * -10000.0

    # --- f32 end-to-end correctness check -------------------------------
    run = jax.jit(functools.partial(encoder_pooler, num_heads=NH,
                                    output_all_encoded_layers=True))
    encoded_layers, pooled_output = run(embedding_output,
                                        extended_attention_mask, params)
    jax.block_until_ready(encoded_layers[-1])
    jax.block_until_ready(pooled_output)

    ref_layers, ref_pooled = _reference(embedding_output,
                                        extended_attention_mask, params, NH)

    assert len(encoded_layers) == L
    assert encoded_layers[-1].shape == (B, S, H)
    assert pooled_output.shape == (B, H)
    assert jnp.allclose(encoded_layers[-1], ref_layers[-1], atol=1e-2, rtol=1e-2)
    assert jnp.allclose(pooled_output, ref_pooled, atol=1e-2, rtol=1e-2)

    # --- exercise the K-blocked (accumulator) dense paths used by the
    #     FFN down-projection at real model sizes -------------------------
    kx = jax.random.normal(jax.random.PRNGKey(1), (16, 256), jnp.float32)
    kw = jax.random.normal(jax.random.PRNGKey(2), (256, 128), jnp.float32) * 0.05
    kb = jnp.full((1, 128), 0.1, jnp.float32)
    kr = jax.random.normal(jax.random.PRNGKey(3), (16, 128), jnp.float32)
    kg = jnp.ones((1, 128), jnp.float32)
    kbt = jnp.zeros((1, 128), jnp.float32)

    y1 = dense(kx, kw, kb, tk=128)
    assert jnp.allclose(y1, kx @ kw + kb, atol=2e-2, rtol=2e-2)

    y2 = dense_add_layernorm(kx, kw, kb, kr, kg, kbt, tk=128)
    y2r = kx @ kw + kb + kr
    mu = y2r.mean(-1, keepdims=True)
    var = ((y2r - mu) ** 2).mean(-1, keepdims=True)
    y2r = (y2r - mu) / jnp.sqrt(var + 1e-12) * kg + kbt
    assert jnp.allclose(y2, y2r, atol=2e-2, rtol=2e-2)

    # --- bf16 storage smoke run (f32 accumulation inside the kernels) ----
    params_bf16 = jax.tree_util.tree_map(
        lambda a: a.astype(jnp.bfloat16) if a.dtype == jnp.float32 else a, params)
    run_bf16 = jax.jit(functools.partial(encoder_pooler, num_heads=NH,
                                         output_all_encoded_layers=False))
    enc_bf16, pooled_bf16 = run_bf16(embedding_output.astype(jnp.bfloat16),
                                     extended_attention_mask, params_bf16)
    jax.block_until_ready(pooled_bf16)
    assert enc_bf16.shape == (B, S, H) and enc_bf16.dtype == jnp.bfloat16
    assert pooled_bf16.shape == (B, H)
    assert bool(jnp.all(jnp.isfinite(enc_bf16.astype(jnp.float32))))
    assert bool(jnp.all(jnp.isfinite(pooled_bf16.astype(jnp.float32))))

    print("KERNEL_OK")
</pallas_src>

<mosaic_0001>
module attributes {stable_mosaic.version = 11 : i64} {
  func.func @_attn_kernel(%arg0: i32, %arg1: i32, %arg2: memref<1x8x1x4x8xf32, #tpu.memory_space<vmem>>, %arg3: memref<1x8x1x4x8xf32, #tpu.memory_space<vmem>>, %arg4: memref<1x8x1x4x8xf32, #tpu.memory_space<vmem>>, %arg5: memref<1x1x1x8xf32, #tpu.memory_space<vmem>>, %arg6: memref<1x8x32xf32, #tpu.memory_space<vmem>>) attributes {dimension_semantics = [#tpu.dimension_semantics<parallel>, #tpu.dimension_semantics<parallel>], iteration_bounds = array<i64: 2, 1>, scalar_prefetch = 0 : i64, scratch_operands = 0 : i64, tpu.core_type = #tpu.core_type<tc>, window_params = [{transform_indices = @transform_0, window_bounds = array<i64: 1, 8, 1, 4, 8>}, {transform_indices = @transform_1, window_bounds = array<i64: 1, 8, 1, 4, 8>}, {transform_indices = @transform_2, window_bounds = array<i64: 1, 8, 1, 4, 8>}, {transform_indices = @transform_3, window_bounds = array<i64: 1, 1, 1, 8>}, {transform_indices = @transform_4, window_bounds = array<i64: 1, 8, 32>}]} {
    %c0 = arith.constant 0 : index
    %c0_0 = arith.constant 0 : index
    %c0_1 = arith.constant 0 : index
    %c0_2 = arith.constant 0 : index
    %c0_3 = arith.constant 0 : index
    %0 = vector.load %arg2[%c0, %c0_0, %c0_1, %c0_2, %c0_3] : memref<1x8x1x4x8xf32, #tpu.memory_space<vmem>>, vector<1x8x1x4x8xf32>
    %1 = vector.shape_cast %0 : vector<1x8x1x4x8xf32> to vector<8x4x8xf32>
    %c0_4 = arith.constant 0 : index
    %c0_5 = arith.constant 0 : index
    %c0_6 = arith.constant 0 : index
    %c0_7 = arith.constant 0 : index
    %c0_8 = arith.constant 0 : index
    %2 = vector.load %arg3[%c0_4, %c0_5, %c0_6, %c0_7, %c0_8] : memref<1x8x1x4x8xf32, #tpu.memory_space<vmem>>, vector<1x8x1x4x8xf32>
    %3 = vector.shape_cast %2 : vector<1x8x1x4x8xf32> to vector<8x4x8xf32>
    %c0_9 = arith.constant 0 : index
    %c0_10 = arith.constant 0 : index
    %c0_11 = arith.constant 0 : index
    %c0_12 = arith.constant 0 : index
    %c0_13 = arith.constant 0 : index
    %4 = vector.load %arg4[%c0_9, %c0_10, %c0_11, %c0_12, %c0_13] : memref<1x8x1x4x8xf32, #tpu.memory_space<vmem>>, vector<1x8x1x4x8xf32>
    %5 = vector.shape_cast %4 : vector<1x8x1x4x8xf32> to vector<8x4x8xf32>
    %c0_14 = arith.constant 0 : index
    %c0_15 = arith.constant 0 : index
    %c0_16 = arith.constant 0 : index
    %c0_17 = arith.constant 0 : index
    %6 = vector.load %arg5[%c0_14, %c0_15, %c0_16, %c0_17] : memref<1x1x1x8xf32, #tpu.memory_space<vmem>>, vector<1x1x1x8xf32>
    %7 = vector.shape_cast %6 : vector<1x1x1x8xf32> to vector<1x1x8xf32>
    %8 = tpu.transpose %1, [1, 0, 2] : vector<8x4x8xf32> -> vector<4x8x8xf32>
    %9 = tpu.transpose %3, [1, 0, 2] : vector<8x4x8xf32> -> vector<4x8x8xf32>
    %10 = tpu.transpose %5, [1, 0, 2] : vector<8x4x8xf32> -> vector<4x8x8xf32>
    "tpu.trace_start"() <{level = 10 : i32, message = "hqd,hkd->hqk"}> : () -> ()
    %cst = arith.constant dense<0.000000e+00> : vector<4x8x8xf32>
    %11 = tpu.matmul %8, %9, %cst {dimension_numbers = #tpu.dot_dimension_numbers<[2], [2], [1], [1], [0, 0, 0, 1, 1, 1], [0], [0]>} : vector<4x8x8xf32>, vector<4x8x8xf32>, vector<4x8x8xf32> -> vector<4x8x8xf32>
    "tpu.trace_stop"() : () -> ()
    %cst_18 = arith.constant 0.353553385 : f32
    %12 = vector.broadcast %cst_18 : f32 to vector<4x8x8xf32>
    %13 = arith.mulf %11, %12 : vector<4x8x8xf32>
    %14 = vector.broadcast %7 : vector<1x1x8xf32> to vector<4x8x8xf32>
    %15 = arith.addf %13, %14 : vector<4x8x8xf32>
    %cst_19 = arith.constant dense<0xFF800000> : vector<4x8xf32>
    %16 = vector.multi_reduction <maximumf>, %15, %cst_19 [2] : vector<4x8x8xf32> to vector<4x8xf32>
    %17 = vector.shape_cast %16 : vector<4x8xf32> to vector<4x8x1xf32>
    %18 = vector.broadcast %17 : vector<4x8x1xf32> to vector<4x8x8xf32>
    %19 = arith.subf %15, %18 : vector<4x8x8xf32>
    %20 = math.exp %19 : vector<4x8x8xf32>
    %cst_20 = arith.constant dense<0.000000e+00> : vector<4x8xf32>
    %21 = vector.multi_reduction <add>, %20, %cst_20 [2] : vector<4x8x8xf32> to vector<4x8xf32>
    %22 = vector.shape_cast %21 : vector<4x8xf32> to vector<4x8x1xf32>
    %23 = tpu.reciprocal %22 {approx = true} : vector<4x8x1xf32> -> vector<4x8x1xf32>
    %24 = vector.broadcast %23 : vector<4x8x1xf32> to vector<4x8x8xf32>
    %25 = arith.mulf %20, %24 : vector<4x8x8xf32>
    "tpu.trace_start"() <{level = 10 : i32, message = "hqk,hkd->hqd"}> : () -> ()
    %cst_21 = arith.constant dense<0.000000e+00> : vector<4x8x8xf32>
    %26 = tpu.matmul %25, %10, %cst_21 {dimension_numbers = #tpu.dot_dimension_numbers<[2], [1], [1], [2], [0, 0, 0, 1, 1, 2], [0], [0]>} : vector<4x8x8xf32>, vector<4x8x8xf32>, vector<4x8x8xf32> -> vector<4x8x8xf32>
    "tpu.trace_stop"() : () -> ()
    %27 = tpu.transpose %26, [1, 0, 2] : vector<4x8x8xf32> -> vector<8x4x8xf32>
    %28 = vector.shape_cast %27 : vector<8x4x8xf32> to vector<8x32xf32>
    %c0_22 = arith.constant 0 : index
    %c0_23 = arith.constant 0 : index
    %c0_24 = arith.constant 0 : index
    %29 = vector.load %arg6[%c0_22, %c0_23, %c0_24] : memref<1x8x32xf32, #tpu.memory_space<vmem>>, vector<1x8x32xf32>
    %30 = vector.shape_cast %29 : vector<1x8x32xf32> to vector<8x32xf32>
    %31 = vector.shape_cast %28 : vector<8x32xf32> to vector<1x8x32xf32>
    tpu.vector_store %arg6[%c0_22, %c0_23, %c0_24], %31 {strides = array<i32>} : memref<1x8x32xf32, #tpu.memory_space<vmem>>, vector<1x8x32xf32>,
    return
  }
  func.func @transform_0(%arg0: i32, %arg1: i32) -> (i32, i32, i32, i32, i32) {
    %c0_i32 = arith.constant 0 : i32
    %c0_i32_0 = arith.constant 0 : i32
    %c0_i32_1 = arith.constant 0 : i32
    %c0_i32_2 = arith.constant 0 : i32
    return %arg0, %arg1, %c0_i32, %c0_i32_0, %c0_i32_1 : i32, i32, i32, i32, i32
  }
  func.func @transform_1(%arg0: i32, %arg1: i32) -> (i32, i32, i32, i32, i32) {
    %c0_i32 = arith.constant 0 : i32
    %c1_i32 = arith.constant 1 : i32
    %c0_i32_0 = arith.constant 0 : i32
    %c0_i32_1 = arith.constant 0 : i32
    %c0_i32_2 = arith.constant 0 : i32
    return %arg0, %c0_i32, %c1_i32, %c0_i32_0, %c0_i32_1 : i32, i32, i32, i32, i32
  }
  func.func @transform_2(%arg0: i32, %arg1: i32) -> (i32, i32, i32, i32, i32) {
    %c0_i32 = arith.constant 0 : i32
    %c2_i32 = arith.constant 2 : i32
    %c0_i32_0 = arith.constant 0 : i32
    %c0_i32_1 = arith.constant 0 : i32
    %c0_i32_2 = arith.constant 0 : i32
    return %arg0, %c0_i32, %c2_i32, %c0_i32_0, %c0_i32_1 : i32, i32, i32, i32, i32
  }
  func.func @transform_3(%arg0: i32, %arg1: i32) -> (i32, i32, i32, i32) {
    %c0_i32 = arith.constant 0 : i32
    %c0_i32_0 = arith.constant 0 : i32
    %c0_i32_1 = arith.constant 0 : i32
    %c0_i32_2 = arith.constant 0 : i32
    return %arg0, %c0_i32, %c0_i32_0, %c0_i32_1 : i32, i32, i32, i32
  }
  func.func @transform_4(%arg0: i32, %arg1: i32) -> (i32, i32, i32) {
    %c0_i32 = arith.constant 0 : i32
    %c0_i32_0 = arith.constant 0 : i32
    return %arg0, %arg1, %c0_i32 : i32, i32, i32
  }
}

module attributes {stable_mosaic.version = 11 : i64} {
  func.func @_dense_ln_wholek_kernel(%arg0: i32, %arg1: memref<16x32xf32, #tpu.memory_space<vmem>>, %arg2: memref<32x32xf32, #tpu.memory_space<vmem>>, %arg3: memref<1x32xf32, #tpu.memory_space<vmem>>, %arg4: memref<16x32xf32, #tpu.memory_space<vmem>>, %arg5: memref<1x32xf32, #tpu.memory_space<vmem>>, %arg6: memref<1x32xf32, #tpu.memory_space<vmem>>, %arg7: memref<16x32xf32, #tpu.memory_space<vmem>>) attributes {dimension_semantics = [#tpu.dimension_semantics<parallel>], iteration_bounds = array<i64: 1>, scalar_prefetch = 0 : i64, scratch_operands = 0 : i64, tpu.core_type = #tpu.core_type<tc>, window_params = [{transform_indices = @transform_0, window_bounds = array<i64: 16, 32>}, {pipeline_mode = #tpu.pipeline_mode<synchronous>, transform_indices = @transform_1, window_bounds = array<i64: 32, 32>}, {pipeline_mode = #tpu.pipeline_mode<synchronous>, transform_indices = @transform_2, window_bounds = array<i64: 1, 32>}, {transform_indices = @transform_3, window_bounds = array<i64: 16, 32>}, {pipeline_mode = #tpu.pipeline_mode<synchronous>, transform_indices = @transform_4, window_bounds = array<i64: 1, 32>}, {pipeline_mode = #tpu.pipeline_mode<synchronous>, transform_indices = @transform_5, window_bounds = array<i64: 1, 32>}, {transform_indices = @transform_6, window_bounds = array<i64: 16, 32>}]} {
    %c0 = arith.constant 0 : index
    %c0_0 = arith.constant 0 : index
    %0 = vector.load %arg1[%c0, %c0_0] : memref<16x32xf32, #tpu.memory_space<vmem>>, vector<16x32xf32>
    %c0_1 = arith.constant 0 : index
    %c0_2 = arith.constant 0 : index
    %1 = vector.load %arg2[%c0_1, %c0_2] : memref<32x32xf32, #tpu.memory_space<vmem>>, vector<32x32xf32>
    %cst = arith.constant dense<0.000000e+00> : vector<16x32xf32>
    %2 = tpu.matmul %0, %1, %cst {dimension_numbers = #tpu.dot_dimension_numbers<[1], [0], [0], [1], [0, 0, 1, 1], [], []>} : vector<16x32xf32>, vector<32x32xf32>, vector<16x32xf32> -> vector<16x32xf32>
    %c0_3 = arith.constant 0 : index
    %c0_4 = arith.constant 0 : index
    %3 = vector.load %arg3[%c0_3, %c0_4] : memref<1x32xf32, #tpu.memory_space<vmem>>, vector<1x32xf32>
    %4 = vector.broadcast %3 : vector<1x32xf32> to vector<16x32xf32>
    %5 = arith.addf %2, %4 : vector<16x32xf32>
    %c0_5 = arith.constant 0 : index
    %c0_6 = arith.constant 0 : index
    %6 = vector.load %arg4[%c0_5, %c0_6] : memref<16x32xf32, #tpu.memory_space<vmem>>, vector<16x32xf32>
    %7 = arith.addf %5, %6 : vector<16x32xf32>
    %cst_7 = arith.constant dense<0.000000e+00> : vector<16xf32>
    %8 = vector.multi_reduction <add>, %7, %cst_7 [1] : vector<16x32xf32> to vector<16xf32>
    %9 = vector.shape_cast %8 : vector<16xf32> to vector<16x1xf32>
    %cst_8 = arith.constant 3.200000e+01 : f32
    %10 = vector.broadcast %cst_8 : f32 to vector<16x1xf32>
    %11 = arith.divf %9, %10 : vector<16x1xf32>
    %12 = vector.broadcast %11 : vector<16x1xf32> to vector<16x32xf32>
    %13 = arith.subf %7, %12 : vector<16x32xf32>
    %14 = arith.mulf %13, %13 : vector<16x32xf32>
    %cst_9 = arith.constant dense<0.000000e+00> : vector<16xf32>
    %15 = vector.multi_reduction <add>, %14, %cst_9 [1] : vector<16x32xf32> to vector<16xf32>
    %16 = vector.shape_cast %15 : vector<16xf32> to vector<16x1xf32>
    %cst_10 = arith.constant 3.200000e+01 : f32
    %17 = vector.broadcast %cst_10 : f32 to vector<16x1xf32>
    %18 = arith.divf %16, %17 : vector<16x1xf32>
    %cst_11 = arith.constant 9.99999996E-13 : f32
    %19 = vector.broadcast %cst_11 : f32 to vector<16x1xf32>
    %20 = arith.addf %18, %19 : vector<16x1xf32>
    %21 = math.rsqrt %20 : vector<16x1xf32>
    %22 = vector.broadcast %21 : vector<16x1xf32> to vector<16x32xf32>
    %23 = arith.mulf %13, %22 : vector<16x32xf32>
    %c0_12 = arith.constant 0 : index
    %c0_13 = arith.constant 0 : index
    %24 = vector.load %arg5[%c0_12, %c0_13] : memref<1x32xf32, #tpu.memory_space<vmem>>, vector<1x32xf32>
    %25 = vector.broadcast %24 : vector<1x32xf32> to vector<16x32xf32>
    %26 = arith.mulf %23, %25 : vector<16x32xf32>
    %c0_14 = arith.constant 0 : index
    %c0_15 = arith.constant 0 : index
    %27 = vector.load %arg6[%c0_14, %c0_15] : memref<1x32xf32, #tpu.memory_space<vmem>>, vector<1x32xf32>
    %28 = vector.broadcast %27 : vector<1x32xf32> to vector<16x32xf32>
    %29 = arith.addf %26, %28 : vector<16x32xf32>
    %c0_16 = arith.constant 0 : index
    %c0_17 = arith.constant 0 : index
    %30 = vector.load %arg7[%c0_16, %c0_17] : memref<16x32xf32, #tpu.memory_space<vmem>>, vector<16x32xf32>
    tpu.vector_store %arg7[%c0_16, %c0_17], %29 {strides = array<i32>} : memref<16x32xf32, #tpu.memory_space<vmem>>, vector<16x32xf32>,
    return
  }
  func.func @transform_0(%arg0: i32) -> (i32, i32) {
    %c0_i32 = arith.constant 0 : i32
    %c0_i32_0 = arith.constant 0 : i32
    return %arg0, %c0_i32 : i32, i32
  }
  func.func @transform_1(%arg0: i32) -> (i32, i32) {
    %c0_i32 = arith.constant 0 : i32
    %c0_i32_0 = arith.constant 0 : i32
    %c0_i32_1 = arith.constant 0 : i32
    return %c0_i32, %c0_i32_0 : i32, i32
  }
  func.func @transform_2(%arg0: i32) -> (i32, i32) {
    %c0_i32 = arith.constant 0 : i32
    %c0_i32_0 = arith.constant 0 : i32
    %c0_i32_1 = arith.constant 0 : i32
    return %c0_i32, %c0_i32_0 : i32, i32
  }
  func.func @transform_3(%arg0: i32) -> (i32, i32) {
    %c0_i32 = arith.constant 0 : i32
    %c0_i32_0 = arith.constant 0 : i32
    return %arg0, %c0_i32 : i32, i32
  }
  func.func @transform_4(%arg0: i32) -> (i32, i32) {
    %c0_i32 = arith.constant 0 : i32
    %c0_i32_0 = arith.constant 0 : i32
    %c0_i32_1 = arith.constant 0 : i32
    return %c0_i32, %c0_i32_0 : i32, i32
  }
  func.func @transform_5(%arg0: i32) -> (i32, i32) {
    %c0_i32 = arith.constant 0 : i32
    %c0_i32_0 = arith.constant 0 : i32
    %c0_i32_1 = arith.constant 0 : i32
    return %c0_i32, %c0_i32_0 : i32, i32
  }
  func.func @transform_6(%arg0: i32) -> (i32, i32) {
    %c0_i32 = arith.constant 0 : i32
    %c0_i32_0 = arith.constant 0 : i32
    return %arg0, %c0_i32 : i32, i32
  }
}

module attributes {stable_mosaic.version = 11 : i64} {
  func.func @_dense_wholek_kernel(%arg0: i32, %arg1: i32, %arg2: memref<16x32xf32, #tpu.memory_space<vmem>>, %arg3: memref<32x96xf32, #tpu.memory_space<vmem>>, %arg4: memref<1x96xf32, #tpu.memory_space<vmem>>, %arg5: memref<16x96xf32, #tpu.memory_space<vmem>>) attributes {dimension_semantics = [#tpu.dimension_semantics<parallel>, #tpu.dimension_semantics<parallel>], iteration_bounds = array<i64: 1, 1>, scalar_prefetch = 0 : i64, scratch_operands = 0 : i64, tpu.core_type = #tpu.core_type<tc>, window_params = [{transform_indices = @transform_0, window_bounds = array<i64: 16, 32>}, {transform_indices = @transform_1, window_bounds = array<i64: 32, 96>}, {transform_indices = @transform_2, window_bounds = array<i64: 1, 96>}, {transform_indices = @transform_3, window_bounds = array<i64: 16, 96>}]} {
    %c0 = arith.constant 0 : index
    %c0_0 = arith.constant 0 : index
    %0 = vector.load %arg2[%c0, %c0_0] : memref<16x32xf32, #tpu.memory_space<vmem>>, vector<16x32xf32>
    %c0_1 = arith.constant 0 : index
    %c0_2 = arith.constant 0 : index
    %1 = vector.load %arg3[%c0_1, %c0_2] : memref<32x96xf32, #tpu.memory_space<vmem>>, vector<32x96xf32>
    %cst = arith.constant dense<0.000000e+00> : vector<16x96xf32>
    %2 = tpu.matmul %0, %1, %cst {dimension_numbers = #tpu.dot_dimension_numbers<[1], [0], [0], [1], [0, 0, 1, 1], [], []>} : vector<16x32xf32>, vector<32x96xf32>, vector<16x96xf32> -> vector<16x96xf32>
    %c0_3 = arith.constant 0 : index
    %c0_4 = arith.constant 0 : index
    %3 = vector.load %arg4[%c0_3, %c0_4] : memref<1x96xf32, #tpu.memory_space<vmem>>, vector<1x96xf32>
    %4 = vector.broadcast %3 : vector<1x96xf32> to vector<16x96xf32>
    %5 = arith.addf %2, %4 : vector<16x96xf32>
    %c0_5 = arith.constant 0 : index
    %c0_6 = arith.constant 0 : index
    %6 = vector.load %arg5[%c0_5, %c0_6] : memref<16x96xf32, #tpu.memory_space<vmem>>, vector<16x96xf32>
    tpu.vector_store %arg5[%c0_5, %c0_6], %5 {strides = array<i32>} : memref<16x96xf32, #tpu.memory_space<vmem>>, vector<16x96xf32>,
    return
  }
  func.func @transform_0(%arg0: i32, %arg1: i32) -> (i32, i32) {
    %c0_i32 = arith.constant 0 : i32
    %c0_i32_0 = arith.constant 0 : i32
    return %arg0, %c0_i32 : i32, i32
  }
  func.func @transform_1(%arg0: i32, %arg1: i32) -> (i32, i32) {
    %c0_i32 = arith.constant 0 : i32
    %c0_i32_0 = arith.constant 0 : i32
    return %c0_i32, %arg1 : i32, i32
  }
  func.func @transform_2(%arg0: i32, %arg1: i32) -> (i32, i32) {
    %c0_i32 = arith.constant 0 : i32
    %c0_i32_0 = arith.constant 0 : i32
    return %c0_i32, %arg1 : i32, i32
  }
  func.func @transform_3(%arg0: i32, %arg1: i32) -> (i32, i32) {
    %c0_i32 = arith.constant 0 : i32
    return %arg0, %arg1 : i32, i32
  }
}

module attributes {stable_mosaic.version = 11 : i64} {
  func.func @_dense_wholek_kernel(%arg0: i32, %arg1: i32, %arg2: memref<16x32xf32, #tpu.memory_space<vmem>>, %arg3: memref<32x64xf32, #tpu.memory_space<vmem>>, %arg4: memref<1x64xf32, #tpu.memory_space<vmem>>, %arg5: memref<16x64xf32, #tpu.memory_space<vmem>>) attributes {dimension_semantics = [#tpu.dimension_semantics<parallel>, #tpu.dimension_semantics<parallel>], iteration_bounds = array<i64: 1, 1>, scalar_prefetch = 0 : i64, scratch_operands = 0 : i64, tpu.core_type = #tpu.core_type<tc>, window_params = [{transform_indices = @transform_0, window_bounds = array<i64: 16, 32>}, {transform_indices = @transform_1, window_bounds = array<i64: 32, 64>}, {transform_indices = @transform_2, window_bounds = array<i64: 1, 64>}, {transform_indices = @transform_3, window_bounds = array<i64: 16, 64>}]} {
    %c0 = arith.constant 0 : index
    %c0_0 = arith.constant 0 : index
    %0 = vector.load %arg2[%c0, %c0_0] : memref<16x32xf32, #tpu.memory_space<vmem>>, vector<16x32xf32>
    %c0_1 = arith.constant 0 : index
    %c0_2 = arith.constant 0 : index
    %1 = vector.load %arg3[%c0_1, %c0_2] : memref<32x64xf32, #tpu.memory_space<vmem>>, vector<32x64xf32>
    %cst = arith.constant dense<0.000000e+00> : vector<16x64xf32>
    %2 = tpu.matmul %0, %1, %cst {dimension_numbers = #tpu.dot_dimension_numbers<[1], [0], [0], [1], [0, 0, 1, 1], [], []>} : vector<16x32xf32>, vector<32x64xf32>, vector<16x64xf32> -> vector<16x64xf32>
    %c0_3 = arith.constant 0 : index
    %c0_4 = arith.constant 0 : index
    %3 = vector.load %arg4[%c0_3, %c0_4] : memref<1x64xf32, #tpu.memory_space<vmem>>, vector<1x64xf32>
    %4 = vector.broadcast %3 : vector<1x64xf32> to vector<16x64xf32>
    %5 = arith.addf %2, %4 : vector<16x64xf32>
    %cst_5 = arith.constant 5.000000e-01 : f32
    %6 = vector.broadcast %cst_5 : f32 to vector<16x64xf32>
    %7 = arith.mulf %6, %5 : vector<16x64xf32>
    %cst_6 = arith.constant 4.471500e-02 : f32
    %8 = vector.broadcast %cst_6 : f32 to vector<16x64xf32>
    %9 = arith.mulf %8, %5 : vector<16x64xf32>
    %10 = arith.mulf %9, %5 : vector<16x64xf32>
    %11 = arith.mulf %10, %5 : vector<16x64xf32>
    %12 = arith.addf %5, %11 : vector<16x64xf32>
    %cst_7 = arith.constant 0.797884583 : f32
    %13 = vector.broadcast %cst_7 : f32 to vector<16x64xf32>
    %14 = arith.mulf %13, %12 : vector<16x64xf32>
    %15 = math.tanh %14 : vector<16x64xf32>
    %cst_8 = arith.constant 1.000000e+00 : f32
    %16 = vector.broadcast %cst_8 : f32 to vector<16x64xf32>
    %17 = arith.addf %16, %15 : vector<16x64xf32>
    %18 = arith.mulf %7, %17 : vector<16x64xf32>
    %c0_9 = arith.constant 0 : index
    %c0_10 = arith.constant 0 : index
    %19 = vector.load %arg5[%c0_9, %c0_10] : memref<16x64xf32, #tpu.memory_space<vmem>>, vector<16x64xf32>
    tpu.vector_store %arg5[%c0_9, %c0_10], %18 {strides = array<i32>} : memref<16x64xf32, #tpu.memory_space<vmem>>, vector<16x64xf32>,
    return
  }
  func.func @transform_0(%arg0: i32, %arg1: i32) -> (i32, i32) {
    %c0_i32 = arith.constant 0 : i32
    %c0_i32_0 = arith.constant 0 : i32
    return %arg0, %c0_i32 : i32, i32
  }
  func.func @transform_1(%arg0: i32, %arg1: i32) -> (i32, i32) {
    %c0_i32 = arith.constant 0 : i32
    %c0_i32_0 = arith.constant 0 : i32
    return %c0_i32, %arg1 : i32, i32
  }
  func.func @transform_2(%arg0: i32, %arg1: i32) -> (i32, i32) {
    %c0_i32 = arith.constant 0 : i32
    %c0_i32_0 = arith.constant 0 : i32
    return %c0_i32, %arg1 : i32, i32
  }
  func.func @transform_3(%arg0: i32, %arg1: i32) -> (i32, i32) {
    %c0_i32 = arith.constant 0 : i32
    return %arg0, %arg1 : i32, i32
  }
}

module attributes {stable_mosaic.version = 11 : i64} {
  func.func @_dense_ln_wholek_kernel(%arg0: i32, %arg1: memref<16x64xf32, #tpu.memory_space<vmem>>, %arg2: memref<64x32xf32, #tpu.memory_space<vmem>>, %arg3: memref<1x32xf32, #tpu.memory_space<vmem>>, %arg4: memref<16x32xf32, #tpu.memory_space<vmem>>, %arg5: memref<1x32xf32, #tpu.memory_space<vmem>>, %arg6: memref<1x32xf32, #tpu.memory_space<vmem>>, %arg7: memref<16x32xf32, #tpu.memory_space<vmem>>) attributes {dimension_semantics = [#tpu.dimension_semantics<parallel>], iteration_bounds = array<i64: 1>, scalar_prefetch = 0 : i64, scratch_operands = 0 : i64, tpu.core_type = #tpu.core_type<tc>, window_params = [{transform_indices = @transform_0, window_bounds = array<i64: 16, 64>}, {pipeline_mode = #tpu.pipeline_mode<synchronous>, transform_indices = @transform_1, window_bounds = array<i64: 64, 32>}, {pipeline_mode = #tpu.pipeline_mode<synchronous>, transform_indices = @transform_2, window_bounds = array<i64: 1, 32>}, {transform_indices = @transform_3, window_bounds = array<i64: 16, 32>}, {pipeline_mode = #tpu.pipeline_mode<synchronous>, transform_indices = @transform_4, window_bounds = array<i64: 1, 32>}, {pipeline_mode = #tpu.pipeline_mode<synchronous>, transform_indices = @transform_5, window_bounds = array<i64: 1, 32>}, {transform_indices = @transform_6, window_bounds = array<i64: 16, 32>}]} {
    %c0 = arith.constant 0 : index
    %c0_0 = arith.constant 0 : index
    %0 = vector.load %arg1[%c0, %c0_0] : memref<16x64xf32, #tpu.memory_space<vmem>>, vector<16x64xf32>
    %c0_1 = arith.constant 0 : index
    %c0_2 = arith.constant 0 : index
    %1 = vector.load %arg2[%c0_1, %c0_2] : memref<64x32xf32, #tpu.memory_space<vmem>>, vector<64x32xf32>
    %cst = arith.constant dense<0.000000e+00> : vector<16x32xf32>
    %2 = tpu.matmul %0, %1, %cst {dimension_numbers = #tpu.dot_dimension_numbers<[1], [0], [0], [1], [0, 0, 1, 1], [], []>} : vector<16x64xf32>, vector<64x32xf32>, vector<16x32xf32> -> vector<16x32xf32>
    %c0_3 = arith.constant 0 : index
    %c0_4 = arith.constant 0 : index
    %3 = vector.load %arg3[%c0_3, %c0_4] : memref<1x32xf32, #tpu.memory_space<vmem>>, vector<1x32xf32>
    %4 = vector.broadcast %3 : vector<1x32xf32> to vector<16x32xf32>
    %5 = arith.addf %2, %4 : vector<16x32xf32>
    %c0_5 = arith.constant 0 : index
    %c0_6 = arith.constant 0 : index
    %6 = vector.load %arg4[%c0_5, %c0_6] : memref<16x32xf32, #tpu.memory_space<vmem>>, vector<16x32xf32>
    %7 = arith.addf %5, %6 : vector<16x32xf32>
    %cst_7 = arith.constant dense<0.000000e+00> : vector<16xf32>
    %8 = vector.multi_reduction <add>, %7, %cst_7 [1] : vector<16x32xf32> to vector<16xf32>
    %9 = vector.shape_cast %8 : vector<16xf32> to vector<16x1xf32>
    %cst_8 = arith.constant 3.200000e+01 : f32
    %10 = vector.broadcast %cst_8 : f32 to vector<16x1xf32>
    %11 = arith.divf %9, %10 : vector<16x1xf32>
    %12 = vector.broadcast %11 : vector<16x1xf32> to vector<16x32xf32>
    %13 = arith.subf %7, %12 : vector<16x32xf32>
    %14 = arith.mulf %13, %13 : vector<16x32xf32>
    %cst_9 = arith.constant dense<0.000000e+00> : vector<16xf32>
    %15 = vector.multi_reduction <add>, %14, %cst_9 [1] : vector<16x32xf32> to vector<16xf32>
    %16 = vector.shape_cast %15 : vector<16xf32> to vector<16x1xf32>
    %cst_10 = arith.constant 3.200000e+01 : f32
    %17 = vector.broadcast %cst_10 : f32 to vector<16x1xf32>
    %18 = arith.divf %16, %17 : vector<16x1xf32>
    %cst_11 = arith.constant 9.99999996E-13 : f32
    %19 = vector.broadcast %cst_11 : f32 to vector<16x1xf32>
    %20 = arith.addf %18, %19 : vector<16x1xf32>
    %21 = math.rsqrt %20 : vector<16x1xf32>
    %22 = vector.broadcast %21 : vector<16x1xf32> to vector<16x32xf32>
    %23 = arith.mulf %13, %22 : vector<16x32xf32>
    %c0_12 = arith.constant 0 : index
    %c0_13 = arith.constant 0 : index
    %24 = vector.load %arg5[%c0_12, %c0_13] : memref<1x32xf32, #tpu.memory_space<vmem>>, vector<1x32xf32>
    %25 = vector.broadcast %24 : vector<1x32xf32> to vector<16x32xf32>
    %26 = arith.mulf %23, %25 : vector<16x32xf32>
    %c0_14 = arith.constant 0 : index
    %c0_15 = arith.constant 0 : index
    %27 = vector.load %arg6[%c0_14, %c0_15] : memref<1x32xf32, #tpu.memory_space<vmem>>, vector<1x32xf32>
    %28 = vector.broadcast %27 : vector<1x32xf32> to vector<16x32xf32>
    %29 = arith.addf %26, %28 : vector<16x32xf32>
    %c0_16 = arith.constant 0 : index
    %c0_17 = arith.constant 0 : index
    %30 = vector.load %arg7[%c0_16, %c0_17] : memref<16x32xf32, #tpu.memory_space<vmem>>, vector<16x32xf32>
    tpu.vector_store %arg7[%c0_16, %c0_17], %29 {strides = array<i32>} : memref<16x32xf32, #tpu.memory_space<vmem>>, vector<16x32xf32>,
    return
  }
  func.func @transform_0(%arg0: i32) -> (i32, i32) {
    %c0_i32 = arith.constant 0 : i32
    %c0_i32_0 = arith.constant 0 : i32
    return %arg0, %c0_i32 : i32, i32
  }
  func.func @transform_1(%arg0: i32) -> (i32, i32) {
    %c0_i32 = arith.constant 0 : i32
    %c0_i32_0 = arith.constant 0 : i32
    %c0_i32_1 = arith.constant 0 : i32
    return %c0_i32, %c0_i32_0 : i32, i32
  }
  func.func @transform_2(%arg0: i32) -> (i32, i32) {
    %c0_i32 = arith.constant 0 : i32
    %c0_i32_0 = arith.constant 0 : i32
    %c0_i32_1 = arith.constant 0 : i32
    return %c0_i32, %c0_i32_0 : i32, i32
  }
  func.func @transform_3(%arg0: i32) -> (i32, i32) {
    %c0_i32 = arith.constant 0 : i32
    %c0_i32_0 = arith.constant 0 : i32
    return %arg0, %c0_i32 : i32, i32
  }
  func.func @transform_4(%arg0: i32) -> (i32, i32) {
    %c0_i32 = arith.constant 0 : i32
    %c0_i32_0 = arith.constant 0 : i32
    %c0_i32_1 = arith.constant 0 : i32
    return %c0_i32, %c0_i32_0 : i32, i32
  }
  func.func @transform_5(%arg0: i32) -> (i32, i32) {
    %c0_i32 = arith.constant 0 : i32
    %c0_i32_0 = arith.constant 0 : i32
    %c0_i32_1 = arith.constant 0 : i32
    return %c0_i32, %c0_i32_0 : i32, i32
  }
  func.func @transform_6(%arg0: i32) -> (i32, i32) {
    %c0_i32 = arith.constant 0 : i32
    %c0_i32_0 = arith.constant 0 : i32
    return %arg0, %c0_i32 : i32, i32
  }
}

module attributes {stable_mosaic.version = 11 : i64} {
  func.func @_dense_wholek_kernel(%arg0: i32, %arg1: i32, %arg2: memref<2x32xf32, #tpu.memory_space<vmem>>, %arg3: memref<32x32xf32, #tpu.memory_space<vmem>>, %arg4: memref<1x32xf32, #tpu.memory_space<vmem>>, %arg5: memref<2x32xf32, #tpu.memory_space<vmem>>) attributes {dimension_semantics = [#tpu.dimension_semantics<parallel>, #tpu.dimension_semantics<parallel>], iteration_bounds = array<i64: 1, 1>, scalar_prefetch = 0 : i64, scratch_operands = 0 : i64, tpu.core_type = #tpu.core_type<tc>, window_params = [{transform_indices = @transform_0, window_bounds = array<i64: 2, 32>}, {transform_indices = @transform_1, window_bounds = array<i64: 32, 32>}, {transform_indices = @transform_2, window_bounds = array<i64: 1, 32>}, {transform_indices = @transform_3, window_bounds = array<i64: 2, 32>}]} {
    %c0 = arith.constant 0 : index
    %c0_0 = arith.constant 0 : index
    %0 = vector.load %arg2[%c0, %c0_0] : memref<2x32xf32, #tpu.memory_space<vmem>>, vector<2x32xf32>
    %c0_1 = arith.constant 0 : index
    %c0_2 = arith.constant 0 : index
    %1 = vector.load %arg3[%c0_1, %c0_2] : memref<32x32xf32, #tpu.memory_space<vmem>>, vector<32x32xf32>
    %cst = arith.constant dense<0.000000e+00> : vector<2x32xf32>
    %2 = tpu.matmul %0, %1, %cst {dimension_numbers = #tpu.dot_dimension_numbers<[1], [0], [0], [1], [0, 0, 1, 1], [], []>} : vector<2x32xf32>, vector<32x32xf32>, vector<2x32xf32> -> vector<2x32xf32>
    %c0_3 = arith.constant 0 : index
    %c0_4 = arith.constant 0 : index
    %3 = vector.load %arg4[%c0_3, %c0_4] : memref<1x32xf32, #tpu.memory_space<vmem>>, vector<1x32xf32>
    %4 = vector.broadcast %3 : vector<1x32xf32> to vector<2x32xf32>
    %5 = arith.addf %2, %4 : vector<2x32xf32>
    %6 = math.tanh %5 : vector<2x32xf32>
    %c0_5 = arith.constant 0 : index
    %c0_6 = arith.constant 0 : index
    %7 = vector.load %arg5[%c0_5, %c0_6] : memref<2x32xf32, #tpu.memory_space<vmem>>, vector<2x32xf32>
    tpu.vector_store %arg5[%c0_5, %c0_6], %6 {strides = array<i32>} : memref<2x32xf32, #tpu.memory_space<vmem>>, vector<2x32xf32>,
    return
  }
  func.func @transform_0(%arg0: i32, %arg1: i32) -> (i32, i32) {
    %c0_i32 = arith.constant 0 : i32
    %c0_i32_0 = arith.constant 0 : i32
    return %arg0, %c0_i32 : i32, i32
  }
  func.func @transform_1(%arg0: i32, %arg1: i32) -> (i32, i32) {
    %c0_i32 = arith.constant 0 : i32
    %c0_i32_0 = arith.constant 0 : i32
    return %c0_i32, %arg1 : i32, i32
  }
  func.func @transform_2(%arg0: i32, %arg1: i32) -> (i32, i32) {
    %c0_i32 = arith.constant 0 : i32
    %c0_i32_0 = arith.constant 0 : i32
    return %c0_i32, %arg1 : i32, i32
  }
  func.func @transform_3(%arg0: i32, %arg1: i32) -> (i32, i32) {
    %c0_i32 = arith.constant 0 : i32
    return %arg0, %arg1 : i32, i32
  }
}

</mosaic_0001>

<llo_original>
// kernel: encoder_pooler.13
$region0: #{encoder_pooler.13}
  #allocation0 [shape = 'u32[]', space=smem, size = 0x4, offset = 0x4, fixed_abs, tag = 'smem constant byte address 0x4 - core index']
  #allocation1 [shape = 'u32[144,128]{1,0:T(1,128)}', space=vmem, size = 0x12000, scoped, tag = 'internal scratch']
  %s0 = inlined_call_operand.vmem [shape: f32[16,32], index: 0, kind: input, shape index: {}]
  %s1 = inlined_call_operand.vmem [shape: f32[32,32], index: 1, kind: input, shape index: {}]
  %s2 = inlined_call_operand.vmem [shape: f32[1,32], index: 2, kind: input, shape index: {}]
  %s3 = inlined_call_operand.vmem [shape: f32[16,32], index: 3, kind: input, shape index: {}]
  %s4 = inlined_call_operand.vmem [shape: f32[1,32], index: 4, kind: input, shape index: {}]
  %s5 = inlined_call_operand.vmem [shape: f32[1,32], index: 5, kind: input, shape index: {}]
  %s6 = inlined_call_operand.vmem [shape: f32[16,32], index: 6, kind: output, shape index: {}]
  %s7 = sld [smem:[#allocation0]]
  $region34: #{encoder_pooler.13} parent=0
    _
  %s9 = ssub.s32 1, %s7
  %s10 = scalar_select 0, %s9, %s7
  // Predicated region
  $region2: #{encoder_pooler.13} parent=0 // pred_check
    _
  $region3: #{encoder_pooler.13} parent=0 // pred_check_branch
    %12 = sbr.rel (0) target = $region5
  $region4: #{encoder_pooler.13} parent=0 // pred_region
    _
  $region5: #{encoder_pooler.13} parent=0 // pred_fallthru
    _
  // Predicated region
  $region6: #{encoder_pooler.13} parent=0 // pred_check
    _
  $region7: #{encoder_pooler.13} parent=0 // pred_check_branch
    %14 = sbr.rel (0) target = $region9
  $region8: #{encoder_pooler.13} parent=0 // pred_region
    _
  $region9: #{encoder_pooler.13} parent=0 // pred_fallthru
    _
  // Predicated region
  $region10: #{encoder_pooler.13} parent=0 // pred_check
    _
  $region11: #{encoder_pooler.13} parent=0 // pred_check_branch
    %16 = sbr.rel (0) target = $region13
  $region12: #{encoder_pooler.13} parent=0 // pred_region
    _
  $region13: #{encoder_pooler.13} parent=0 // pred_fallthru
    _
  // Predicated region
  $region14: #{encoder_pooler.13} parent=0 // pred_check
    _
  $region15: #{encoder_pooler.13} parent=0 // pred_check_branch
    %18 = sbr.rel (0) target = $region17
  $region16: #{encoder_pooler.13} parent=0 // pred_region
    _
  $region17: #{encoder_pooler.13} parent=0 // pred_fallthru
    _
  // Predicated region
  $region18: #{encoder_pooler.13} parent=0 // pred_check
    _
  $region19: #{encoder_pooler.13} parent=0 // pred_check_branch
    %20 = sbr.rel (0) target = $region21
  $region20: #{encoder_pooler.13} parent=0 // pred_region
    _
  $region21: #{encoder_pooler.13} parent=0 // pred_fallthru
    _
  // Predicated region
  $region22: #{encoder_pooler.13} parent=0 // pred_check
    _
  $region23: #{encoder_pooler.13} parent=0 // pred_check_branch
    %22 = sbr.rel (0) target = $region25
  $region24: #{encoder_pooler.13} parent=0 // pred_region
    _
  $region25: #{encoder_pooler.13} parent=0 // pred_fallthru
    _
  %v23 = vld [vmem:[%s0] sm:$0xff]
  %v24 = vld [vmem:[%s0 + $0x8] sm:$0xff]
  %v25 = vld [vmem:[%s1] sm:$0xff]
  %v26 = vld [vmem:[%s1 + $0x8] sm:$0xff]
  %v27 = vld [vmem:[%s1 + $0x10] sm:$0xff]
  %v28 = vld [vmem:[%s1 + $0x18] sm:$0xff]
  %v29 = vld [vmem:[%s2] sm:$0x1]
  %v31 = vlaneseq
  %v32 = vshrl.u32 %v31, 7
  %v33 = vsub.s32 0, %v32
  %v34 = vrot.slane %v29, %v33
  %vm36 = vcmask 261120
  %v38 = vsel %vm36, %v23, 0
  %v41 = vsel %vm36, %v24, 0
  %43 = vmatprep.subr.mxu0 0.0
  %44 = vmatpush1.msra.mxu0 %v25
  %45 = vmatprep.subr.mxu0 0.0
  %46 = vmatpush1.msra.mxu0 %v26
  %47 = vmatprep.subr.mxu0 0.0
  %48 = vmatpush1.msra.mxu0 %v27
  %49 = vmatprep.subr.mxu0 0.0
  %50 = vmatpush1.msra.mxu0 %v28
  %51 = vmatprep.subr.mxu0 0.0
  %52 = vmatpush1.msra.mxu0 0.0
  %53 = vmatprep.subr.mxu0 0.0
  %54 = vmatpush1.msra.mxu0 0.0
  %55 = vmatprep.subr.mxu0 0.0
  %56 = vmatpush1.msra.mxu0 0.0
  %57 = vmatprep.subr.mxu0 0.0
  %58 = vmatpush1.msra.mxu0 0.0
  %59 = vmatprep.subr.mxu0 0.0
  %60 = vmatpush1.msra.mxu0 0.0
  %61 = vmatprep.subr.mxu0 0.0
  %62 = vmatpush1.msra.mxu0 0.0
  %63 = vmatprep.subr.mxu0 0.0
  %64 = vmatpush1.msra.mxu0 0.0
  %65 = vmatprep.subr.mxu0 0.0
  %66 = vmatpush1.msra.mxu0 0.0
  %67 = vmatprep.subr.mxu0 0.0
  %68 = vmatpush1.msra.mxu0 0.0
  %69 = vmatprep.subr.mxu0 0.0
  %70 = vmatpush1.msra.mxu0 0.0
  %71 = vmatprep.subr.mxu0 0.0
  %72 = vmatpush1.msra.mxu0 0.0
  %73 = vmatprep.subr.mxu0 0.0
  %74 = vmatpush1.msra.mxu0 0.0
  %75 = vmatprep.subr.mxu0 0.0
  %76 = vmatpush1.msra.mxu0 0.0
  %77 = vmatprep.subr.mxu0 0.0
  %78 = vmatpush1.msra.mxu0 0.0
  %79 = vmatprep.subr.mxu0 0.0
  %80 = vmatpush1.msra.mxu0 0.0
  %81 = vmatprep.subr.mxu0 0.0
  %82 = vmatpush1.msra.mxu0 0.0
  %83 = vmatprep.subr.mxu0 0.0
  %84 = vmatpush1.msra.mxu0 0.0
  %85 = vmatprep.subr.mxu0 0.0
  %86 = vmatpush1.msra.mxu0 0.0
  %87 = vmatprep.subr.mxu0 0.0
  %88 = vmatpush1.msra.mxu0 0.0
  %89 = vmatprep.subr.mxu0 0.0
  %90 = vmatpush1.msra.mxu0 0.0
  %91 = vmatprep.subr.mxu0 0.0
  %92 = vmatpush1.msra.mxu0 0.0
  %93 = vmatprep.subr.mxu0 0.0
  %94 = vmatpush1.msra.mxu0 0.0
  %95 = vmatprep.subr.mxu0 0.0
  %96 = vmatpush1.msra.mxu0 0.0
  %97 = vmatprep.subr.mxu0 0.0
  %98 = vmatpush1.msra.mxu0 0.0
  %99 = vmatprep.subr.mxu0 0.0
  %100 = vmatpush1.msra.mxu0 0.0
  %101 = vmatprep.subr.mxu0 0.0
  %102 = vmatpush1.msra.mxu0 0.0
  %103 = vmatprep.subr.mxu0 0.0
  %104 = vmatpush1.msra.mxu0 0.0
  %105 = vmatprep.subr.mxu0 0.0
  %106 = vmatpush1.msra.mxu0 0.0
  %107 = vmatprep.mubr.f32.mxu0 0.0
  %108 = vmatmul.mubr.f32.gmra.mrb[0].mxu0 %v38
  %v109 = vpop.f32.mrb[0].mxu0
  %v110 = vadd.f32 %v34, %v109
  %v111 = vpop.f32.mrb[0].mxu0
  %112 = vmatprep.mubr.f32.mxu0 0.0
  %113 = vmatmul.mubr.f32.gmra.mrb[0].mxu0 %v41
  %v114 = vpop.f32.mrb[0].mxu0
  %v115 = vadd.f32 %v34, %v114
  %v116 = vpop.f32.mrb[0].mxu0
  %117 = vdwg.mxu0
  %v118 = vld [vmem:[%s3] sm:$0xff]
  %v119 = vld [vmem:[%s3 + $0x8] sm:$0xff]
  %v120 = vadd.f32 %v110, %v118
  %v121 = vadd.f32 %v115, %v119
  %v122 = vsel %vm36, %v120, 0.0
  %123 = vadd.xlane.f32.xlu0 %v122
  %v124 = vpop.xlane.xlu0 %123
  %v125 = vsel %vm36, %v121, 0.0
  %126 = vadd.xlane.f32.xlu0 %v125
  %v127 = vpop.xlane.xlu0 %126
  %v128 = vrcp.pop 32.0
  %v129 = vmul.f32 %v124, %v128
  %v130 = vmul.f32 %v127, %v128
  %v131 = vsub.f32 %v120, %v129
  %v132 = vsub.f32 %v121, %v130
  %v133 = vmul.f32 %v131, %v131
  %v134 = vmul.f32 %v132, %v132
  %v135 = vsel %vm36, %v133, 0.0
  %136 = vadd.xlane.f32.xlu0 %v135
  %v137 = vpop.xlane.xlu0 %136
  %v138 = vsel %vm36, %v134, 0.0
  %139 = vadd.xlane.f32.xlu0 %v138
  %v140 = vpop.xlane.xlu0 %139
  %v141 = vmul.f32 %v137, %v128
  %v142 = vmul.f32 %v140, %v128
  %v143 = vadd.f32 %v141, 1e-12
  %v144 = vadd.f32 %v142, 1e-12
  %v145 = vrsqrt.pop %v143
  %v146 = vrsqrt.pop %v144
  %v147 = vmul.f32 %v131, %v145
  %v148 = vmul.f32 %v132, %v146
  %v149 = vld [vmem:[%s4] sm:$0x1]
  %v151 = vlaneseq
  %v152 = vshrl.u32 %v151, 7
  %v153 = vsub.s32 0, %v152
  %v154 = vrot.slane %v149, %v153
  %v156 = vmul.f32 %v147, %v154
  %v157 = vmul.f32 %v148, %v154
  %v158 = vld [vmem:[%s5] sm:$0x1]
  %v160 = vlaneseq
  %v161 = vshrl.u32 %v160, 7
  %v162 = vsub.s32 0, %v161
  %v163 = vrot.slane %v158, %v162
  %v165 = vadd.f32 %v156, %v163
  %v166 = vadd.f32 %v157, %v163
  %167 = vst.msk [vmem:[%s6] sm:$0xff] %vm36, %v165
  %168 = vst.msk [vmem:[%s6 + $0x8] sm:$0xff] %vm36, %v166
  // Predicated region
  $region26: #{encoder_pooler.13} parent=0 // pred_check
    _
  $region27: #{encoder_pooler.13} parent=0 // pred_check_branch
    %170 = sbr.rel (0) target = $region29
  $region28: #{encoder_pooler.13} parent=0 // pred_region
    _
  $region29: #{encoder_pooler.13} parent=0 // pred_fallthru
    _
  // Predicated region
  $region30: #{encoder_pooler.13} parent=0 // pred_check
    _
  $region31: #{encoder_pooler.13} parent=0 // pred_check_branch
    %172 = sbr.rel (0) target = $region33
  $region32: #{encoder_pooler.13} parent=0 // pred_region
    _
  $region33: #{encoder_pooler.13} parent=0 // pred_fallthru
    _

// kernel: encoder_pooler.11
$region0: #{encoder_pooler.11}
  #allocation0 [shape = 'u32[]', space=smem, size = 0x4, offset = 0x4, fixed_abs, tag = 'smem constant byte address 0x4 - core index']
  #allocation1 [shape = 'u32[144,128]{1,0:T(1,128)}', space=vmem, size = 0x12000, scoped, tag = 'internal scratch']
  %s0 = inlined_call_operand.vmem [shape: f32[16,32], index: 0, kind: input, shape index: {}]
  %s1 = inlined_call_operand.vmem [shape: f32[32,96], index: 1, kind: input, shape index: {}]
  %s2 = inlined_call_operand.vmem [shape: f32[1,96], index: 2, kind: input, shape index: {}]
  %s3 = inlined_call_operand.vmem [shape: f32[16,96], index: 3, kind: output, shape index: {}]
  %s4 = sld [smem:[#allocation0]]
  $region22: #{encoder_pooler.11} parent=0
    _
  %s6 = ssub.s32 1, %s4
  %s7 = scalar_select 0, %s6, %s4
  // Predicated region
  $region2: #{encoder_pooler.11} parent=0 // pred_check
    _
  $region3: #{encoder_pooler.11} parent=0 // pred_check_branch
    %9 = sbr.rel (0) target = $region5
  $region4: #{encoder_pooler.11} parent=0 // pred_region
    _
  $region5: #{encoder_pooler.11} parent=0 // pred_fallthru
    _
  // Predicated region
  $region6: #{encoder_pooler.11} parent=0 // pred_check
    _
  $region7: #{encoder_pooler.11} parent=0 // pred_check_branch
    %11 = sbr.rel (0) target = $region9
  $region8: #{encoder_pooler.11} parent=0 // pred_region
    _
  $region9: #{encoder_pooler.11} parent=0 // pred_fallthru
    _
  // Predicated region
  $region10: #{encoder_pooler.11} parent=0 // pred_check
    _
  $region11: #{encoder_pooler.11} parent=0 // pred_check_branch
    %13 = sbr.rel (0) target = $region13
  $region12: #{encoder_pooler.11} parent=0 // pred_region
    _
  $region13: #{encoder_pooler.11} parent=0 // pred_fallthru
    _
  %v14 = vld [vmem:[%s0] sm:$0xff]
  %v15 = vld [vmem:[%s0 + $0x8] sm:$0xff]
  %v16 = vld [vmem:[%s1] sm:$0xff]
  %v17 = vld [vmem:[%s1 + $0x8] sm:$0xff]
  %v18 = vld [vmem:[%s1 + $0x10] sm:$0xff]
  %v19 = vld [vmem:[%s1 + $0x18] sm:$0xff]
  %v20 = vld [vmem:[%s2] sm:$0x1]
  %v22 = vlaneseq
  %v23 = vshrl.u32 %v22, 7
  %v24 = vsub.s32 0, %v23
  %v25 = vrot.slane %v20, %v24
  %vm27 = vcmask 261120
  %v29 = vsel %vm27, %v14, 0
  %v32 = vsel %vm27, %v15, 0
  %34 = vmatprep.subr.mxu0 0.0
  %35 = vmatpush1.msra.mxu0 %v16
  %36 = vmatprep.subr.mxu0 0.0
  %37 = vmatpush1.msra.mxu0 %v17
  %38 = vmatprep.subr.mxu0 0.0
  %39 = vmatpush1.msra.mxu0 %v18
  %40 = vmatprep.subr.mxu0 0.0
  %41 = vmatpush1.msra.mxu0 %v19
  %42 = vmatprep.subr.mxu0 0.0
  %43 = vmatpush1.msra.mxu0 0.0
  %44 = vmatprep.subr.mxu0 0.0
  %45 = vmatpush1.msra.mxu0 0.0
  %46 = vmatprep.subr.mxu0 0.0
  %47 = vmatpush1.msra.mxu0 0.0
  %48 = vmatprep.subr.mxu0 0.0
  %49 = vmatpush1.msra.mxu0 0.0
  %50 = vmatprep.subr.mxu0 0.0
  %51 = vmatpush1.msra.mxu0 0.0
  %52 = vmatprep.subr.mxu0 0.0
  %53 = vmatpush1.msra.mxu0 0.0
  %54 = vmatprep.subr.mxu0 0.0
  %55 = vmatpush1.msra.mxu0 0.0
  %56 = vmatprep.subr.mxu0 0.0
  %57 = vmatpush1.msra.mxu0 0.0
  %58 = vmatprep.subr.mxu0 0.0
  %59 = vmatpush1.msra.mxu0 0.0
  %60 = vmatprep.subr.mxu0 0.0
  %61 = vmatpush1.msra.mxu0 0.0
  %62 = vmatprep.subr.mxu0 0.0
  %63 = vmatpush1.msra.mxu0 0.0
  %64 = vmatprep.subr.mxu0 0.0
  %65 = vmatpush1.msra.mxu0 0.0
  %66 = vmatprep.subr.mxu0 0.0
  %67 = vmatpush1.msra.mxu0 0.0
  %68 = vmatprep.subr.mxu0 0.0
  %69 = vmatpush1.msra.mxu0 0.0
  %70 = vmatprep.subr.mxu0 0.0
  %71 = vmatpush1.msra.mxu0 0.0
  %72 = vmatprep.subr.mxu0 0.0
  %73 = vmatpush1.msra.mxu0 0.0
  %74 = vmatprep.subr.mxu0 0.0
  %75 = vmatpush1.msra.mxu0 0.0
  %76 = vmatprep.subr.mxu0 0.0
  %77 = vmatpush1.msra.mxu0 0.0
  %78 = vmatprep.subr.mxu0 0.0
  %79 = vmatpush1.msra.mxu0 0.0
  %80 = vmatprep.subr.mxu0 0.0
  %81 = vmatpush1.msra.mxu0 0.0
  %82 = vmatprep.subr.mxu0 0.0
  %83 = vmatpush1.msra.mxu0 0.0
  %84 = vmatprep.subr.mxu0 0.0
  %85 = vmatpush1.msra.mxu0 0.0
  %86 = vmatprep.subr.mxu0 0.0
  %87 = vmatpush1.msra.mxu0 0.0
  %88 = vmatprep.subr.mxu0 0.0
  %89 = vmatpush1.msra.mxu0 0.0
  %90 = vmatprep.subr.mxu0 0.0
  %91 = vmatpush1.msra.mxu0 0.0
  %92 = vmatprep.subr.mxu0 0.0
  %93 = vmatpush1.msra.mxu0 0.0
  %94 = vmatprep.subr.mxu0 0.0
  %95 = vmatpush1.msra.mxu0 0.0
  %96 = vmatprep.subr.mxu0 0.0
  %97 = vmatpush1.msra.mxu0 0.0
  %98 = vmatprep.mubr.f32.mxu0 0.0
  %99 = vmatmul.mubr.f32.gmra.mrb[0].mxu0 %v29
  %v100 = vpop.f32.mrb[0].mxu0
  %v101 = vadd.f32 %v25, %v100
  %v102 = vpop.f32.mrb[0].mxu0
  %103 = vmatprep.mubr.f32.mxu0 0.0
  %104 = vmatmul.mubr.f32.gmra.mrb[0].mxu0 %v32
  %v105 = vpop.f32.mrb[0].mxu0
  %v106 = vadd.f32 %v25, %v105
  %v107 = vpop.f32.mrb[0].mxu0
  %108 = vdwg.mxu0
  %vm109 = vcmask 785408
  %110 = vst.msk [vmem:[%s3] sm:$0xff] %vm109, %v101
  %111 = vst.msk [vmem:[%s3 + $0x8] sm:$0xff] %vm109, %v106
  // Predicated region
  $region14: #{encoder_pooler.11} parent=0 // pred_check
    _
  $region15: #{encoder_pooler.11} parent=0 // pred_check_branch
    %113 = sbr.rel (0) target = $region17
  $region16: #{encoder_pooler.11} parent=0 // pred_region
    _
  $region17: #{encoder_pooler.11} parent=0 // pred_fallthru
    _
  // Predicated region
  $region18: #{encoder_pooler.11} parent=0 // pred_check
    _
  $region19: #{encoder_pooler.11} parent=0 // pred_check_branch
    %115 = sbr.rel (0) target = $region21
  $region20: #{encoder_pooler.11} parent=0 // pred_region
    _
  $region21: #{encoder_pooler.11} parent=0 // pred_fallthru
    _

// kernel: encoder_pooler.12
$region0: #{encoder_pooler.12}
  #allocation0 [shape = 'u32[]', space=smem, size = 0x4, offset = 0x4, fixed_abs, tag = 'smem constant byte address 0x4 - core index']
  #allocation1 [shape = 'u32[144,128]{1,0:T(1,128)}', space=vmem, size = 0x12000, scoped, tag = 'internal scratch']
  %s0 = inlined_call_operand.vmem [shape: f32[2,8,3,4,8], index: 0, kind: input, shape index: {}, may-alias: {0,1,2}]
  %s1 = inlined_call_operand.vmem [shape: f32[2,8,3,4,8], index: 1, kind: input, shape index: {}, may-alias: {0,1,2}]
  %s2 = inlined_call_operand.vmem [shape: f32[2,8,3,4,8], index: 2, kind: input, shape index: {}, may-alias: {0,1,2}]
  %s3 = inlined_call_operand.vmem [shape: f32[2,1,1,8], index: 3, kind: input, shape index: {}]
  %s4 = inlined_call_operand.vmem [shape: f32[2,8,32], index: 4, kind: output, shape index: {}]
  %s5 = sld [smem:[#allocation0]]
  $region172: #{encoder_pooler.12} parent=0
    _
  %s7 = ssub.s32 1, %s5
  %s8 = scalar_select 0, %s7, %s5
  $region1: #{encoder_pooler.12} parent=0
    #allocation2 [shape = 'u8[32768]{0}', space=vmem, size = 0x8000, scoped, tag = 'input window, operand 0']
    #allocation3 [shape = 'u8[32768]{0}', space=vmem, size = 0x8000, scoped, tag = 'input window, operand 1']
    #allocation4 [shape = 'u8[32768]{0}', space=vmem, size = 0x8000, scoped, tag = 'input window, operand 2']
    loop: start=0, step=1, limit=4
    $region2: #{encoder_pooler.12} parent=1 // loop_pre_header
      _
    $region3: #{encoder_pooler.12} parent=1 // loop_header
      %s10 = sphi 0, %s14
      %p11 = scmp.ge.s32.totalorder %s10, 4
      %s17 = sphi 0, %s29
      %s18 = sphi 0, %s25
      %s19 = sphi 0, %s17
      %s20 = sphi 0, %s18
      %s21 = sphi 0, %s19
      %s22 = sphi 0, %s20
      %s34 = sphi 0, %s36
      %s37 = sphi 0, %s34
      %s38 = sphi 0, %s37
      %s54 = sphi 0, %s38
      %s60 = sphi 0, %s62
      %s63 = sphi 0, %s60
      %s64 = sphi 0, %s63
      %s80 = sphi 0, %s64
      %s86 = sphi 0, %s88
      %s89 = sphi 0, %s86
      %s90 = sphi 0, %s89
      %s106 = sphi 0, %s90
      %s112 = sphi 0, %s114
      %s115 = sphi 0, %s112
      %s116 = sphi 0, %s115
      %s132 = sphi 0, %s116
      %s140 = sphi 0, %s142
      %s143 = sphi 0, %s140
      %s144 = sphi 0, %s143
      %s160 = sphi 0, %s144
    $region4: #{encoder_pooler.12} parent=1 // loop_header_branch
      %13 = sbr.rel (%p11) target = $region8
    $region5: #{encoder_pooler.12} parent=1 // loop_body
      %s15 = ssub.s32 %s10, 1
      %s16 = ssub.s32 %s10, 2
      %s23 = sadd.s32 1, %s18
      %p24 = scmp.ge.s32.totalorder %s23, 1
      %s25 = scalar_select %p24, 0, %s23
      %s26 = sadd.s32 1, %s17
      %s27 = scalar_select %p24, %s26, %s17
      %p28 = scmp.ge.s32.totalorder %s27, 2
      %s29 = scalar_select %p28, 0, %s27
      %s30 = ssub.s32 %s17, %s29
      %s31 = ssub.s32 %s18, %s25
      %s32 = sor.u32 %s30, %s31
      %p33 = scmp.eq.s32.totalorder %s32, 0
      %s35 = sadd.s32 %s34, 1
      %s36 = scalar_select %p33, %s34, %s35
      %p39 = pneg %p33
      %p40 = scmp.eq.s32.totalorder %s10, 1
      %p41 = por %p39, %p40
      %p42 = scmp.ne.s32.totalorder %s34, %s37
      %p43 = scmp.eq.s32.totalorder %s10, 0
      %p44 = por %p42, %p43
      %p45 = scmp.ne.s32.totalorder %s34, %s37
      %p46 = scmp.eq.s32.totalorder %s15, 1
      %p47 = por %p45, %p46
      %p48 = scmp.ne.s32.totalorder %s37, %s38
      %p49 = scmp.eq.s32.totalorder %s15, 0
      %p50 = por %p48, %p49
      %p51 = scmp.ne.s32.totalorder %s37, %s38
      %p52 = scmp.eq.s32.totalorder %s16, 1
      %p53 = por %p51, %p52
      %p55 = scmp.ne.s32.totalorder %s38, %s54
      %p56 = scmp.eq.s32.totalorder %s16, 0
      %p57 = por %p55, %p56
      %s58 = ssub.s32 %s17, %s29
      %p59 = scmp.eq.s32.totalorder %s58, 0
      %s61 = sadd.s32 %s60, 1
      %s62 = scalar_select %p59, %s60, %s61
      %p65 = pneg %p59
      %p66 = scmp.eq.s32.totalorder %s10, 1
      %p67 = por %p65, %p66
      %p68 = scmp.ne.s32.totalorder %s60, %s63
      %p69 = scmp.eq.s32.totalorder %s10, 0
      %p70 = por %p68, %p69
      %p71 = scmp.ne.s32.totalorder %s60, %s63
      %p72 = scmp.eq.s32.totalorder %s15, 1
      %p73 = por %p71, %p72
      %p74 = scmp.ne.s32.totalorder %s63, %s64
      %p75 = scmp.eq.s32.totalorder %s15, 0
      %p76 = por %p74, %p75
      %p77 = scmp.ne.s32.totalorder %s63, %s64
      %p78 = scmp.eq.s32.totalorder %s16, 1
      %p79 = por %p77, %p78
      %p81 = scmp.ne.s32.totalorder %s64, %s80
      %p82 = scmp.eq.s32.totalorder %s16, 0
      %p83 = por %p81, %p82
      %s84 = ssub.s32 %s17, %s29
      %p85 = scmp.eq.s32.totalorder %s84, 0
      %s87 = sadd.s32 %s86, 1
      %s88 = scalar_select %p85, %s86, %s87
      %p91 = pneg %p85
      %p92 = scmp.eq.s32.totalorder %s10, 1
      %p93 = por %p91, %p92
      %p94 = scmp.ne.s32.totalorder %s86, %s89
      %p95 = scmp.eq.s32.totalorder %s10, 0
      %p96 = por %p94, %p95
      %p97 = scmp.ne.s32.totalorder %s86, %s89
      %p98 = scmp.eq.s32.totalorder %s15, 1
      %p99 = por %p97, %p98
      %p100 = scmp.ne.s32.totalorder %s89, %s90
      %p101 = scmp.eq.s32.totalorder %s15, 0
      %p102 = por %p100, %p101
      %p103 = scmp.ne.s32.totalorder %s89, %s90
      %p104 = scmp.eq.s32.totalorder %s16, 1
      %p105 = por %p103, %p104
      %p107 = scmp.ne.s32.totalorder %s90, %s106
      %p108 = scmp.eq.s32.totalorder %s16, 0
      %p109 = por %p107, %p108
      %s110 = ssub.s32 %s17, %s29
      %p111 = scmp.eq.s32.totalorder %s110, 0
      %s113 = sadd.s32 %s112, 1
      %s114 = scalar_select %p111, %s112, %s113
      %p117 = pneg %p111
      %p118 = scmp.eq.s32.totalorder %s10, 1
      %p119 = por %p117, %p118
      %p120 = scmp.ne.s32.totalorder %s112, %s115
      %p121 = scmp.eq.s32.totalorder %s10, 0
      %p122 = por %p120, %p121
      %p123 = scmp.ne.s32.totalorder %s112, %s115
      %p124 = scmp.eq.s32.totalorder %s15, 1
      %p125 = por %p123, %p124
      %p126 = scmp.ne.s32.totalorder %s115, %s116
      %p127 = scmp.eq.s32.totalorder %s15, 0
      %p128 = por %p126, %p127
      %p129 = scmp.ne.s32.totalorder %s115, %s116
      %p130 = scmp.eq.s32.totalorder %s16, 1
      %p131 = por %p129, %p130
      %p133 = scmp.ne.s32.totalorder %s116, %s132
      %p134 = scmp.eq.s32.totalorder %s16, 0
      %p135 = por %p133, %p134
      %s136 = ssub.s32 %s17, %s29
      %s137 = ssub.s32 %s18, %s25
      %s138 = sor.u32 %s136, %s137
      %p139 = scmp.eq.s32.totalorder %s138, 0
      %s141 = sadd.s32 %s140, 1
      %s142 = scalar_select %p139, %s140, %s141
      %p145 = pneg %p139
      %p146 = scmp.eq.s32.totalorder %s10, 1
      %p147 = por %p145, %p146
      %p148 = scmp.ne.s32.totalorder %s140, %s143
      %p149 = scmp.eq.s32.totalorder %s10, 0
      %p150 = por %p148, %p149
      %p151 = scmp.ne.s32.totalorder %s140, %s143
      %p152 = scmp.eq.s32.totalorder %s15, 1
      %p153 = por %p151, %p152
      %p154 = scmp.ne.s32.totalorder %s143, %s144
      %p155 = scmp.eq.s32.totalorder %s15, 0
      %p156 = por %p154, %p155
      %p157 = scmp.ne.s32.totalorder %s143, %s144
      %p158 = scmp.eq.s32.totalorder %s16, 1
      %p159 = por %p157, %p158
      %p161 = scmp.ne.s32.totalorder %s144, %s160
      %p162 = scmp.eq.s32.totalorder %s16, 0
      %p163 = por %p161, %p162
      %p164 = scmp.le.s32.totalorder 1, %s10
      %p165 = scmp.lt.s32.totalorder %s10, 3
      %p166 = pnand %p164, %p165
      %p167 = pneg %p166
      // Predicated region
      $region9: #{encoder_pooler.12} parent=5 // pred_check
        _
      $region10: #{encoder_pooler.12} parent=5 // pred_check_branch
        %169 = sbr.rel (%p166) target = $region12
      $region11: #{encoder_pooler.12} parent=5 // pred_region
        %s170 = ssub.s32 %s10, 1
      $region12: #{encoder_pooler.12} parent=5 // pred_fallthru
        _
      %p171 = scmp.lt.s32.totalorder %s10, 2
      // Predicated region
      $region13: #{encoder_pooler.12} parent=5 // pred_check
        %p172 = pneg %p171
      $region14: #{encoder_pooler.12} parent=5 // pred_check_branch
        %174 = sbr.rel (%p172) target = $region16
      $region15: #{encoder_pooler.12} parent=5 // pred_region
        // Predicated region
        $region17: #{encoder_pooler.12} parent=15 // pred_check
          %p175 = pneg %p44
        $region18: #{encoder_pooler.12} parent=15 // pred_check_branch
          %177 = sbr.rel (%p175) target = $region20
        $region19: #{encoder_pooler.12} parent=15 // pred_region
          %s178 = sand.u32 %s34, 1
          %s179 = sand.u32 %s34, 1
          %s180 = smul.addr %s179, 32
          %s181 = scalar_lea.vmem [#allocation2], %s180
          %s182 = smul.u32 8, %s18
          %s183 = smul.addr %s182, 3
          %s184 = smul.addr %s17, 24
          %s185 = sadd.s32 %s183, %s184
          %s186 = smul.addr %s185, 4
          %s187 = scalar_lea.vmem %s0, %s186
          // Predicated region
          $region21: #{encoder_pooler.12} parent=19 // pred_check
            _
          $region22: #{encoder_pooler.12} parent=19 // pred_check_branch
            %189 = sbr.rel (0) target = $region24
          $region23: #{encoder_pooler.12} parent=19 // pred_region
            // Predicated region
            $region25: #{encoder_pooler.12} parent=23 // pred_check
              _
            $region26: #{encoder_pooler.12} parent=23 // pred_check_branch
              %191 = sbr.rel target = $region28
            $region27: #{encoder_pooler.12} parent=23 // pred_region
              // Predicated region
              $region40: #{encoder_pooler.12} parent=27 // pred_check
                _
              $region41: #{encoder_pooler.12} parent=27 // pred_check_branch
                %220 = sbr.rel (0) target = $region43
              $region42: #{encoder_pooler.12} parent=27 // pred_region
                loop: start=0, step=1, limit=1
                $region44: #{encoder_pooler.12} parent=42 // loop_pre_header
                  _
                $region45: #{encoder_pooler.12} parent=42 // loop_header
                  %s222 = sphi 0, %s226
                  %p223 = scmp.ge.s32.totalorder %s222, 1
                  %s227 = sphi %s187, %s187
                  %s228 = sphi %s181, %s181
                $region46: #{encoder_pooler.12} parent=42 // loop_header_branch
                  %225 = sbr.rel (%p223) target = $region50
                $region47: #{encoder_pooler.12} parent=42 // loop_body
                  _
                $region48: #{encoder_pooler.12} parent=42 // loop_footer
                  %s226 = sadd.s32 1, %s222
                $region49: #{encoder_pooler.12} parent=42 // loop_footer_branch
                  %221 = sbr.rel target = $region45
                $region50: #{encoder_pooler.12} parent=42 // loop_exit
                  _
                loop: start=0, step=1, limit=1
                $region51: #{encoder_pooler.12} parent=42 // loop_pre_header
                  _
                $region52: #{encoder_pooler.12} parent=42 // loop_header
                  %s231 = sphi 0, %s235
                  %p232 = scmp.ge.s32.totalorder %s231, 1
                  %s236 = sphi %s187, %s187
                  %s237 = sphi %s181, %s181
                $region53: #{encoder_pooler.12} parent=42 // loop_header_branch
                  %234 = sbr.rel (%p232) target = $region57
                $region54: #{encoder_pooler.12} parent=42 // loop_body
                  %v238 = vld [vmem:[%s236] sm:$0xf]
                  %239 = vst [vmem:[%s237] sm:$0xf] %v238
                  %v240 = vld [vmem:[%s236 + $0xc] sm:$0xf]
                  %241 = vst [vmem:[%s237 + $0x4] sm:$0xf] %v240
                  %v242 = vld [vmem:[%s236 + $0x18] sm:$0xf]
                  %243 = vst [vmem:[%s237 + $0x8] sm:$0xf] %v242
                  %v244 = vld [vmem:[%s236 + $0x24] sm:$0xf]
                  %245 = vst [vmem:[%s237 + $0xc] sm:$0xf] %v244
                  %v246 = vld [vmem:[%s236 + $0x30] sm:$0xf]
                  %247 = vst [vmem:[%s237 + $0x10] sm:$0xf] %v246
                  %v248 = vld [vmem:[%s236 + $0x3c] sm:$0xf]
                  %249 = vst [vmem:[%s237 + $0x14] sm:$0xf] %v248
                  %v250 = vld [vmem:[%s236 + $0x48] sm:$0xf]
                  %251 = vst [vmem:[%s237 + $0x18] sm:$0xf] %v250
                  %v252 = vld [vmem:[%s236 + $0x54] sm:$0xf]
                  %253 = vst [vmem:[%s237 + $0x1c] sm:$0xf] %v252
                $region55: #{encoder_pooler.12} parent=42 // loop_footer
                  %s235 = sadd.s32 1, %s231
                $region56: #{encoder_pooler.12} parent=42 // loop_footer_branch
                  %230 = sbr.rel target = $region52
                $region57: #{encoder_pooler.12} parent=42 // loop_exit
                  _
              $region43: #{encoder_pooler.12} parent=27 // pred_fallthru
                _
            $region28: #{encoder_pooler.12} parent=23 // pred_fallthru
              _
            // Predicated region
            $region29: #{encoder_pooler.12} parent=23 // pred_check
              _
            $region30: #{encoder_pooler.12} parent=23 // pred_check_branch
              %193 = sbr.rel (0) target = $region32
            $region31: #{encoder_pooler.12} parent=23 // pred_region
              loop: start=0, step=1, limit=1
              $region33: #{encoder_pooler.12} parent=31 // loop_pre_header
                _
              $region34: #{encoder_pooler.12} parent=31 // loop_header
                %s196 = sphi 0, %s200
                %p197 = scmp.ge.s32.totalorder %s196, 1
                %s201 = sphi %s187, %s187
                %s202 = sphi %s181, %s181
              $region35: #{encoder_pooler.12} parent=31 // loop_header_branch
                %199 = sbr.rel (%p197) target = $region39
              $region36: #{encoder_pooler.12} parent=31 // loop_body
                %v203 = vld [vmem:[%s201] sm:$0xf]
                %204 = vst [vmem:[%s202] sm:$0xf] %v203
                %v205 = vld [vmem:[%s201 + $0xc] sm:$0xf]
                %206 = vst [vmem:[%s202 + $0x4] sm:$0xf] %v205
                %v207 = vld [vmem:[%s201 + $0x18] sm:$0xf]
                %208 = vst [vmem:[%s202 + $0x8] sm:$0xf] %v207
                %v209 = vld [vmem:[%s201 + $0x24] sm:$0xf]
                %210 = vst [vmem:[%s202 + $0xc] sm:$0xf] %v209
                %v211 = vld [vmem:[%s201 + $0x30] sm:$0xf]
                %212 = vst [vmem:[%s202 + $0x10] sm:$0xf] %v211
                %v213 = vld [vmem:[%s201 + $0x3c] sm:$0xf]
                %214 = vst [vmem:[%s202 + $0x14] sm:$0xf] %v213
                %v215 = vld [vmem:[%s201 + $0x48] sm:$0xf]
                %216 = vst [vmem:[%s202 + $0x18] sm:$0xf] %v215
                %v217 = vld [vmem:[%s201 + $0x54] sm:$0xf]
                %218 = vst [vmem:[%s202 + $0x1c] sm:$0xf] %v217
              $region37: #{encoder_pooler.12} parent=31 // loop_footer
                %s200 = sadd.s32 1, %s196
              $region38: #{encoder_pooler.12} parent=31 // loop_footer_branch
                %195 = sbr.rel target = $region34
              $region39: #{encoder_pooler.12} parent=31 // loop_exit
                _
            $region32: #{encoder_pooler.12} parent=23 // pred_fallthru
              _
          $region24: #{encoder_pooler.12} parent=19 // pred_fallthru
            _
          %254 = vnop
        $region20: #{encoder_pooler.12} parent=15 // pred_fallthru
          _
        // Predicated region
        $region58: #{encoder_pooler.12} parent=15 // pred_check
          %p255 = pneg %p70
        $region59: #{encoder_pooler.12} parent=15 // pred_check_branch
          %257 = sbr.rel (%p255) target = $region61
        $region60: #{encoder_pooler.12} parent=15 // pred_region
          %s258 = sand.u32 %s60, 1
          %s259 = sand.u32 %s60, 1
          %s260 = smul.addr %s259, 32
          %s261 = scalar_lea.vmem [#allocation3], %s260
          %s262 = smul.addr %s17, 24
          %s263 = sadd.s32 1, %s262
          %s264 = smul.addr %s263, 4
          %s265 = scalar_lea.vmem %s1, %s264
          // Predicated region
          $region62: #{encoder_pooler.12} parent=60 // pred_check
            _
          $region63: #{encoder_pooler.12} parent=60 // pred_check_branch
            %267 = sbr.rel (0) target = $region65
          $region64: #{encoder_pooler.12} parent=60 // pred_region
            // Predicated region
            $region66: #{encoder_pooler.12} parent=64 // pred_check
              _
            $region67: #{encoder_pooler.12} parent=64 // pred_check_branch
              %269 = sbr.rel target = $region69
            $region68: #{encoder_pooler.12} parent=64 // pred_region
              // Predicated region
              $region81: #{encoder_pooler.12} parent=68 // pred_check
                _
              $region82: #{encoder_pooler.12} parent=68 // pred_check_branch
                %298 = sbr.rel (0) target = $region84
              $region83: #{encoder_pooler.12} parent=68 // pred_region
                loop: start=0, step=1, limit=1
                $region85: #{encoder_pooler.12} parent=83 // loop_pre_header
                  _
                $region86: #{encoder_pooler.12} parent=83 // loop_header
                  %s300 = sphi 0, %s304
                  %p301 = scmp.ge.s32.totalorder %s300, 1
                  %s305 = sphi %s265, %s265
                  %s306 = sphi %s261, %s261
                $region87: #{encoder_pooler.12} parent=83 // loop_header_branch
                  %303 = sbr.rel (%p301) target = $region91
                $region88: #{encoder_pooler.12} parent=83 // loop_body
                  _
                $region89: #{encoder_pooler.12} parent=83 // loop_footer
                  %s304 = sadd.s32 1, %s300
                $region90: #{encoder_pooler.12} parent=83 // loop_footer_branch
                  %299 = sbr.rel target = $region86
                $region91: #{encoder_pooler.12} parent=83 // loop_exit
                  _
                loop: start=0, step=1, limit=1
                $region92: #{encoder_pooler.12} parent=83 // loop_pre_header
                  _
                $region93: #{encoder_pooler.12} parent=83 // loop_header
                  %s309 = sphi 0, %s313
                  %p310 = scmp.ge.s32.totalorder %s309, 1
                  %s314 = sphi %s265, %s265
                  %s315 = sphi %s261, %s261
                $region94: #{encoder_pooler.12} parent=83 // loop_header_branch
                  %312 = sbr.rel (%p310) target = $region98
                $region95: #{encoder_pooler.12} parent=83 // loop_body
                  %v316 = vld [vmem:[%s314] sm:$0xf]
                  %317 = vst [vmem:[%s315] sm:$0xf] %v316
                  %v318 = vld [vmem:[%s314 + $0xc] sm:$0xf]
                  %319 = vst [vmem:[%s315 + $0x4] sm:$0xf] %v318
                  %v320 = vld [vmem:[%s314 + $0x18] sm:$0xf]
                  %321 = vst [vmem:[%s315 + $0x8] sm:$0xf] %v320
                  %v322 = vld [vmem:[%s314 + $0x24] sm:$0xf]
                  %323 = vst [vmem:[%s315 + $0xc] sm:$0xf] %v322
                  %v324 = vld [vmem:[%s314 + $0x30] sm:$0xf]
                  %325 = vst [vmem:[%s315 + $0x10] sm:$0xf] %v324
                  %v326 = vld [vmem:[%s314 + $0x3c] sm:$0xf]
                  %327 = vst [vmem:[%s315 + $0x14] sm:$0xf] %v326
                  %v328 = vld [vmem:[%s314 + $0x48] sm:$0xf]
                  %329 = vst [vmem:[%s315 + $0x18] sm:$0xf] %v328
                  %v330 = vld [vmem:[%s314 + $0x54] sm:$0xf]
                  %331 = vst [vmem:[%s315 + $0x1c] sm:$0xf] %v330
                $region96: #{encoder_pooler.12} parent=83 // loop_footer
                  %s313 = sadd.s32 1, %s309
                $region97: #{encoder_pooler.12} parent=83 // loop_footer_branch
                  %308 = sbr.rel target = $region93
                $region98: #{encoder_pooler.12} parent=83 // loop_exit
                  _
              $region84: #{encoder_pooler.12} parent=68 // pred_fallthru
                _
            $region69: #{encoder_pooler.12} parent=64 // pred_fallthru
              _
            // Predicated region
            $region70: #{encoder_pooler.12} parent=64 // pred_check
              _
            $region71: #{encoder_pooler.12} parent=64 // pred_check_branch
              %271 = sbr.rel (0) target = $region73
            $region72: #{encoder_pooler.12} parent=64 // pred_region
              loop: start=0, step=1, limit=1
              $region74: #{encoder_pooler.12} parent=72 // loop_pre_header
                _
              $region75: #{encoder_pooler.12} parent=72 // loop_header
                %s274 = sphi 0, %s278
                %p275 = scmp.ge.s32.totalorder %s274, 1
                %s279 = sphi %s265, %s265
                %s280 = sphi %s261, %s261
              $region76: #{encoder_pooler.12} parent=72 // loop_header_branch
                %277 = sbr.rel (%p275) target = $region80
              $region77: #{encoder_pooler.12} parent=72 // loop_body
                %v281 = vld [vmem:[%s279] sm:$0xf]
                %282 = vst [vmem:[%s280] sm:$0xf] %v281
                %v283 = vld [vmem:[%s279 + $0xc] sm:$0xf]
                %284 = vst [vmem:[%s280 + $0x4] sm:$0xf] %v283
                %v285 = vld [vmem:[%s279 + $0x18] sm:$0xf]
                %286 = vst [vmem:[%s280 + $0x8] sm:$0xf] %v285
                %v287 = vld [vmem:[%s279 + $0x24] sm:$0xf]
                %288 = vst [vmem:[%s280 + $0xc] sm:$0xf] %v287
                %v289 = vld [vmem:[%s279 + $0x30] sm:$0xf]
                %290 = vst [vmem:[%s280 + $0x10] sm:$0xf] %v289
                %v291 = vld [vmem:[%s279 + $0x3c] sm:$0xf]
                %292 = vst [vmem:[%s280 + $0x14] sm:$0xf] %v291
                %v293 = vld [vmem:[%s279 + $0x48] sm:$0xf]
                %294 = vst [vmem:[%s280 + $0x18] sm:$0xf] %v293
                %v295 = vld [vmem:[%s279 + $0x54] sm:$0xf]
                %296 = vst [vmem:[%s280 + $0x1c] sm:$0xf] %v295
              $region78: #{encoder_pooler.12} parent=72 // loop_footer
                %s278 = sadd.s32 1, %s274
              $region79: #{encoder_pooler.12} parent=72 // loop_footer_branch
                %273 = sbr.rel target = $region75
              $region80: #{encoder_pooler.12} parent=72 // loop_exit
                _
            $region73: #{encoder_pooler.12} parent=64 // pred_fallthru
              _
          $region65: #{encoder_pooler.12} parent=60 // pred_fallthru
            _
          %332 = vnop
        $region61: #{encoder_pooler.12} parent=15 // pred_fallthru
          _
        // Predicated region
        $region99: #{encoder_pooler.12} parent=15 // pred_check
          %p333 = pneg %p96
        $region100: #{encoder_pooler.12} parent=15 // pred_check_branch
          %335 = sbr.rel (%p333) target = $region102
        $region101: #{encoder_pooler.12} parent=15 // pred_region
          %s336 = sand.u32 %s86, 1
          %s337 = sand.u32 %s86, 1
          %s338 = smul.addr %s337, 32
          %s339 = scalar_lea.vmem [#allocation4], %s338
          %s340 = smul.addr %s17, 24
          %s341 = sadd.s32 2, %s340
          %s342 = smul.addr %s341, 4
          %s343 = scalar_lea.vmem %s2, %s342
          // Predicated region
          $region103: #{encoder_pooler.12} parent=101 // pred_check
            _
          $region104: #{encoder_pooler.12} parent=101 // pred_check_branch
            %345 = sbr.rel (0) target = $region106
          $region105: #{encoder_pooler.12} parent=101 // pred_region
            // Predicated region
            $region107: #{encoder_pooler.12} parent=105 // pred_check
              _
            $region108: #{encoder_pooler.12} parent=105 // pred_check_branch
              %347 = sbr.rel target = $region110
            $region109: #{encoder_pooler.12} parent=105 // pred_region
              // Predicated region
              $region122: #{encoder_pooler.12} parent=109 // pred_check
                _
              $region123: #{encoder_pooler.12} parent=109 // pred_check_branch
                %376 = sbr.rel (0) target = $region125
              $region124: #{encoder_pooler.12} parent=109 // pred_region
                loop: start=0, step=1, limit=1
                $region126: #{encoder_pooler.12} parent=124 // loop_pre_header
                  _
                $region127: #{encoder_pooler.12} parent=124 // loop_header
                  %s378 = sphi 0, %s382
                  %p379 = scmp.ge.s32.totalorder %s378, 1
                  %s383 = sphi %s343, %s343
                  %s384 = sphi %s339, %s339
                $region128: #{encoder_pooler.12} parent=124 // loop_header_branch
                  %381 = sbr.rel (%p379) target = $region132
                $region129: #{encoder_pooler.12} parent=124 // loop_body
                  _
                $region130: #{encoder_pooler.12} parent=124 // loop_footer
                  %s382 = sadd.s32 1, %s378
                $region131: #{encoder_pooler.12} parent=124 // loop_footer_branch
                  %377 = sbr.rel target = $region127
                $region132: #{encoder_pooler.12} parent=124 // loop_exit
                  _
                loop: start=0, step=1, limit=1
                $region133: #{encoder_pooler.12} parent=124 // loop_pre_header
                  _
                $region134: #{encoder_pooler.12} parent=124 // loop_header
                  %s387 = sphi 0, %s391
                  %p388 = scmp.ge.s32.totalorder %s387, 1
                  %s392 = sphi %s343, %s343
                  %s393 = sphi %s339, %s339
                $region135: #{encoder_pooler.12} parent=124 // loop_header_branch
                  %390 = sbr.rel (%p388) target = $region139
                $region136: #{encoder_pooler.12} parent=124 // loop_body
                  %v394 = vld [vmem:[%s392] sm:$0xf]
                  %395 = vst [vmem:[%s393] sm:$0xf] %v394
                  %v396 = vld [vmem:[%s392 + $0xc] sm:$0xf]
                  %397 = vst [vmem:[%s393 + $0x4] sm:$0xf] %v396
                  %v398 = vld [vmem:[%s392 + $0x18] sm:$0xf]
                  %399 = vst [vmem:[%s393 + $0x8] sm:$0xf] %v398
                  %v400 = vld [vmem:[%s392 + $0x24] sm:$0xf]
                  %401 = vst [vmem:[%s393 + $0xc] sm:$0xf] %v400
                  %v402 = vld [vmem:[%s392 + $0x30] sm:$0xf]
                  %403 = vst [vmem:[%s393 + $0x10] sm:$0xf] %v402
                  %v404 = vld [vmem:[%s392 + $0x3c] sm:$0xf]
                  %405 = vst [vmem:[%s393 + $0x14] sm:$0xf] %v404
                  %v406 = vld [vmem:[%s392 + $0x48] sm:$0xf]
                  %407 = vst [vmem:[%s393 + $0x18] sm:$0xf] %v406
                  %v408 = vld [vmem:[%s392 + $0x54] sm:$0xf]
                  %409 = vst [vmem:[%s393 + $0x1c] sm:$0xf] %v408
                $region137: #{encoder_pooler.12} parent=124 // loop_footer
                  %s391 = sadd.s32 1, %s387
                $region138: #{encoder_pooler.12} parent=124 // loop_footer_branch
                  %386 = sbr.rel target = $region134
                $region139: #{encoder_pooler.12} parent=124 // loop_exit
                  _
              $region125: #{encoder_pooler.12} parent=109 // pred_fallthru
                _
            $region110: #{encoder_pooler.12} parent=105 // pred_fallthru
              _
            // Predicated region
            $region111: #{encoder_pooler.12} parent=105 // pred_check
              _
            $region112: #{encoder_pooler.12} parent=105 // pred_check_branch
              %349 = sbr.rel (0) target = $region114
            $region113: #{encoder_pooler.12} parent=105 // pred_region
              loop: start=0, step=1, limit=1
              $region115: #{encoder_pooler.12} parent=113 // loop_pre_header
                _
              $region116: #{encoder_pooler.12} parent=113 // loop_header
                %s352 = sphi 0, %s356
                %p353 = scmp.ge.s32.totalorder %s352, 1
                %s357 = sphi %s343, %s343
                %s358 = sphi %s339, %s339
              $region117: #{encoder_pooler.12} parent=113 // loop_header_branch
                %355 = sbr.rel (%p353) target = $region121
              $region118: #{encoder_pooler.12} parent=113 // loop_body
                %v359 = vld [vmem:[%s357] sm:$0xf]
                %360 = vst [vmem:[%s358] sm:$0xf] %v359
                %v361 = vld [vmem:[%s357 + $0xc] sm:$0xf]
                %362 = vst [vmem:[%s358 + $0x4] sm:$0xf] %v361
                %v363 = vld [vmem:[%s357 + $0x18] sm:$0xf]
                %364 = vst [vmem:[%s358 + $0x8] sm:$0xf] %v363
                %v365 = vld [vmem:[%s357 + $0x24] sm:$0xf]
                %366 = vst [vmem:[%s358 + $0xc] sm:$0xf] %v365
                %v367 = vld [vmem:[%s357 + $0x30] sm:$0xf]
                %368 = vst [vmem:[%s358 + $0x10] sm:$0xf] %v367
                %v369 = vld [vmem:[%s357 + $0x3c] sm:$0xf]
                %370 = vst [vmem:[%s358 + $0x14] sm:$0xf] %v369
                %v371 = vld [vmem:[%s357 + $0x48] sm:$0xf]
                %372 = vst [vmem:[%s358 + $0x18] sm:$0xf] %v371
                %v373 = vld [vmem:[%s357 + $0x54] sm:$0xf]
                %374 = vst [vmem:[%s358 + $0x1c] sm:$0xf] %v373
              $region119: #{encoder_pooler.12} parent=113 // loop_footer
                %s356 = sadd.s32 1, %s352
              $region120: #{encoder_pooler.12} parent=113 // loop_footer_branch
                %351 = sbr.rel target = $region116
              $region121: #{encoder_pooler.12} parent=113 // loop_exit
                _
            $region114: #{encoder_pooler.12} parent=105 // pred_fallthru
              _
          $region106: #{encoder_pooler.12} parent=101 // pred_fallthru
            _
          %410 = vnop
        $region102: #{encoder_pooler.12} parent=15 // pred_fallthru
          _
        // Predicated region
        $region140: #{encoder_pooler.12} parent=15 // pred_check
          %p411 = pneg %p122
        $region141: #{encoder_pooler.12} parent=15 // pred_check_branch
          %413 = sbr.rel (%p411) target = $region143
        $region142: #{encoder_pooler.12} parent=15 // pred_region
          %p414 = scmp.lt.s32.totalorder %s17, 1
          %s415 = scalar_select %p414, %s17, 1
          %s416 = scalar_lea.vmem %s3, %s415
        $region143: #{encoder_pooler.12} parent=15 // pred_fallthru
          _
      $region16: #{encoder_pooler.12} parent=5 // pred_fallthru
        _
      %p417 = scmp.le.s32.totalorder 1, %s10
      %p418 = scmp.lt.s32.totalorder %s10, 3
      %p419 = pnand %p417, %p418
      %p420 = pneg %p419
      // Predicated region
      $region144: #{encoder_pooler.12} parent=5 // pred_check
        _
      $region145: #{encoder_pooler.12} parent=5 // pred_check_branch
        %422 = sbr.rel (%p419) target = $region147
      $region146: #{encoder_pooler.12} parent=5 // pred_region
        %s423 = ssub.s32 %s10, 1
        %s424 = sand.u32 %s37, 1
        %s425 = sand.u32 %s37, 1
        %s426 = smul.addr %s425, 32
        %s427 = scalar_lea.vmem [#allocation2], %s426
        // Predicated region
        $region148: #{encoder_pooler.12} parent=146 // pred_check
          %p428 = pneg %p50
        $region149: #{encoder_pooler.12} parent=146 // pred_check_branch
          %430 = sbr.rel (%p428) target = $region151
        $region150: #{encoder_pooler.12} parent=146 // pred_region
          _
        $region151: #{encoder_pooler.12} parent=146 // pred_fallthru
          _
        %s431 = sand.u32 %s63, 1
        %s432 = sand.u32 %s63, 1
        %s433 = smul.addr %s432, 32
        %s434 = scalar_lea.vmem [#allocation3], %s433
        // Predicated region
        $region152: #{encoder_pooler.12} parent=146 // pred_check
          %p435 = pneg %p76
        $region153: #{encoder_pooler.12} parent=146 // pred_check_branch
          %437 = sbr.rel (%p435) target = $region155
        $region154: #{encoder_pooler.12} parent=146 // pred_region
          _
        $region155: #{encoder_pooler.12} parent=146 // pred_fallthru
          _
        %s438 = sand.u32 %s89, 1
        %s439 = sand.u32 %s89, 1
        %s440 = smul.addr %s439, 32
        %s441 = scalar_lea.vmem [#allocation4], %s440
        // Predicated region
        $region156: #{encoder_pooler.12} parent=146 // pred_check
          %p442 = pneg %p102
        $region157: #{encoder_pooler.12} parent=146 // pred_check_branch
          %444 = sbr.rel (%p442) target = $region159
        $region158: #{encoder_pooler.12} parent=146 // pred_region
          _
        $region159: #{encoder_pooler.12} parent=146 // pred_fallthru
          _
        %s445 = sand.u32 %s37, 1
        %s446 = sand.u32 %s37, 1
        %s447 = smul.addr %s446, 32
        %s448 = scalar_lea.vmem [#allocation2], %s447
        %p449 = pneg %p50
        %p450 = pneg %p47
        %s451 = sand.u32 %s63, 1
        %s452 = sand.u32 %s63, 1
        %s453 = smul.addr %s452, 32
        %s454 = scalar_lea.vmem [#allocation3], %s453
        %p455 = pneg %p76
        %p456 = pneg %p73
        %s457 = sand.u32 %s89, 1
        %s458 = sand.u32 %s89, 1
        %s459 = smul.addr %s458, 32
        %s460 = scalar_lea.vmem [#allocation4], %s459
        %p461 = pneg %p102
        %p462 = pneg %p99
        %p463 = scmp.lt.s32.totalorder %s19, 1
        %s464 = scalar_select %p463, %s19, 1
        %s465 = scalar_lea.vmem %s3, %s464
        %p466 = pneg %p128
        %p467 = pneg %p125
        %p468 = pneg %p156
        %p469 = pneg %p153
        %p470 = scmp.lt.s32.totalorder %s19, 1
        %s471 = scalar_select %p470, %s19, 1
        %p472 = scmp.lt.s32.totalorder %s20, 0
        %s473 = scalar_select %p472, %s20, 0
        %s474 = sadd.s32 %s473, %s471
        %s475 = smul.addr %s474, 8
        %s476 = scalar_lea.vmem %s4, %s475
        %s477 = smul.u32 8, %s20
        %p478 = scmp.lt.s32.totalorder %s19, 1
        %s479 = scalar_select %p478, %s19, 1
        %s480 = scalar_lea.vmem %s3, %s479
        %p481 = scmp.lt.s32.totalorder %s19, 1
        %s482 = scalar_select %p481, %s19, 1
        %p483 = scmp.lt.s32.totalorder %s20, 0
        %s484 = scalar_select %p483, %s20, 0
        %s485 = sadd.s32 %s484, %s482
        %s486 = smul.addr %s485, 8
        %s487 = scalar_lea.vmem %s4, %s486
        %v488 = vld [vmem:[%s427] sm:$0xf]
        %v489 = vld [vmem:[%s427 + $0x4] sm:$0xf]
        %v490 = vld [vmem:[%s427 + $0x8] sm:$0xf]
        %v491 = vld [vmem:[%s427 + $0xc] sm:$0xf]
        %v492 = vld [vmem:[%s427 + $0x10] sm:$0xf]
        %v493 = vld [vmem:[%s427 + $0x14] sm:$0xf]
        %v494 = vld [vmem:[%s427 + $0x18] sm:$0xf]
        %v495 = vld [vmem:[%s427 + $0x1c] sm:$0xf]
        %v496 = vld [vmem:[%s434] sm:$0xf]
        %v497 = vld [vmem:[%s434 + $0x4] sm:$0xf]
        %v498 = vld [vmem:[%s434 + $0x8] sm:$0xf]
        %v499 = vld [vmem:[%s434 + $0xc] sm:$0xf]
        %v500 = vld [vmem:[%s434 + $0x10] sm:$0xf]
        %v501 = vld [vmem:[%s434 + $0x14] sm:$0xf]
        %v502 = vld [vmem:[%s434 + $0x18] sm:$0xf]
        %v503 = vld [vmem:[%s434 + $0x1c] sm:$0xf]
        %v504 = vld [vmem:[%s441] sm:$0xf]
        %v505 = vld [vmem:[%s441 + $0x4] sm:$0xf]
        %v506 = vld [vmem:[%s441 + $0x8] sm:$0xf]
        %v507 = vld [vmem:[%s441 + $0xc] sm:$0xf]
        %v508 = vld [vmem:[%s441 + $0x10] sm:$0xf]
        %v509 = vld [vmem:[%s441 + $0x14] sm:$0xf]
        %v510 = vld [vmem:[%s441 + $0x18] sm:$0xf]
        %v511 = vld [vmem:[%s441 + $0x1c] sm:$0xf]
        %v512 = vld [vmem:[%s480] sm:$0x1]
        %v513 = vcombine.low %v488, %v490
        %v515 = vunpack.c.l.s4 1983009808
        %v516 = vunpack.c.0.s8 %v515
        %v517 = vlaneseq
        %v518 = vshrl.u32 %v517, 7
        %v519 = vsub.s32 %v516, %v518
        %v520 = vrot.slane %v513, %v519
        %v521 = vcombine.low %v489, %v491
        %v523 = vunpack.c.l.s4 1983009808
        %v524 = vunpack.c.0.s8 %v523
        %v525 = vlaneseq
        %v526 = vshrl.u32 %v525, 7
        %v527 = vsub.s32 %v524, %v526
        %v528 = vrot.slane %v521, %v527
        %v529 = vcombine.low %v492, %v494
        %v531 = vunpack.c.l.s4 1983009808
        %v532 = vunpack.c.0.s8 %v531
        %v533 = vlaneseq
        %v534 = vshrl.u32 %v533, 7
        %v535 = vsub.s32 %v532, %v534
        %v536 = vrot.slane %v529, %v535
        %v537 = vcombine.low %v493, %v495
        %v539 = vunpack.c.l.s4 1983009808
        %v540 = vunpack.c.0.s8 %v539
        %v541 = vlaneseq
        %v542 = vshrl.u32 %v541, 7
        %v543 = vsub.s32 %v540, %v542
        %v544 = vrot.slane %v537, %v543
        %v545 = vcombine.low %v520, %v528
        %v546 = vcombine.high %v520, %v528
        %v548 = vunpack.c.l.s4 1934713408
        %v549 = vunpack.c.0.s8 %v548
        %v550 = vlaneseq
        %v551 = vshrl.u32 %v550, 7
        %v552 = vsub.s32 %v549, %v551
        %v553 = vrot.slane %v545, %v552
        %v555 = vunpack.c.l.s4 1934713408
        %v556 = vunpack.c.0.s8 %v555
        %v557 = vlaneseq
        %v558 = vshrl.u32 %v557, 7
        %v559 = vsub.s32 %v556, %v558
        %v560 = vrot.slane %v546, %v559
        %v561 = vcombine.low %v536, %v544
        %v562 = vcombine.high %v536, %v544
        %v564 = vunpack.c.l.s4 1934713408
        %v565 = vunpack.c.0.s8 %v564
        %v566 = vlaneseq
        %v567 = vshrl.u32 %v566, 7
        %v568 = vsub.s32 %v565, %v567
        %v569 = vrot.slane %v561, %v568
        %v571 = vunpack.c.l.s4 1934713408
        %v572 = vunpack.c.0.s8 %v571
        %v573 = vlaneseq
        %v574 = vshrl.u32 %v573, 7
        %v575 = vsub.s32 %v572, %v574
        %v576 = vrot.slane %v562, %v575
        %v577 = vcombine.low %v553, %v569
        %v578 = vcombine.high %v553, %v569
        %v579 = vcombine.low %v560, %v576
        %v580 = vcombine.high %v560, %v576
        %v581 = vcombine.low %v496, %v498
        %v583 = vunpack.c.l.s4 1983009808
        %v584 = vunpack.c.0.s8 %v583
        %v585 = vlaneseq
        %v586 = vshrl.u32 %v585, 7
        %v587 = vsub.s32 %v584, %v586
        %v588 = vrot.slane %v581, %v587
        %v589 = vcombine.low %v497, %v499
        %v591 = vunpack.c.l.s4 1983009808
        %v592 = vunpack.c.0.s8 %v591
        %v593 = vlaneseq
        %v594 = vshrl.u32 %v593, 7
        %v595 = vsub.s32 %v592, %v594
        %v596 = vrot.slane %v589, %v595
        %v597 = vcombine.low %v500, %v502
        %v599 = vunpack.c.l.s4 1983009808
        %v600 = vunpack.c.0.s8 %v599
        %v601 = vlaneseq
        %v602 = vshrl.u32 %v601, 7
        %v603 = vsub.s32 %v600, %v602
        %v604 = vrot.slane %v597, %v603
        %v605 = vcombine.low %v501, %v503
        %v607 = vunpack.c.l.s4 1983009808
        %v608 = vunpack.c.0.s8 %v607
        %v609 = vlaneseq
        %v610 = vshrl.u32 %v609, 7
        %v611 = vsub.s32 %v608, %v610
        %v612 = vrot.slane %v605, %v611
        %v613 = vcombine.low %v588, %v596
        %v614 = vcombine.high %v588, %v596
        %v616 = vunpack.c.l.s4 1934713408
        %v617 = vunpack.c.0.s8 %v616
        %v618 = vlaneseq
        %v619 = vshrl.u32 %v618, 7
        %v620 = vsub.s32 %v617, %v619
        %v621 = vrot.slane %v613, %v620
        %v623 = vunpack.c.l.s4 1934713408
        %v624 = vunpack.c.0.s8 %v623
        %v625 = vlaneseq
        %v626 = vshrl.u32 %v625, 7
        %v627 = vsub.s32 %v624, %v626
        %v628 = vrot.slane %v614, %v627
        %v629 = vcombine.low %v604, %v612
        %v630 = vcombine.high %v604, %v612
        %v632 = vunpack.c.l.s4 1934713408
        %v633 = vunpack.c.0.s8 %v632
        %v634 = vlaneseq
        %v635 = vshrl.u32 %v634, 7
        %v636 = vsub.s32 %v633, %v635
        %v637 = vrot.slane %v629, %v636
        %v639 = vunpack.c.l.s4 1934713408
        %v640 = vunpack.c.0.s8 %v639
        %v641 = vlaneseq
        %v642 = vshrl.u32 %v641, 7
        %v643 = vsub.s32 %v640, %v642
        %v644 = vrot.slane %v630, %v643
        %v645 = vcombine.low %v621, %v637
        %v646 = vcombine.high %v621, %v637
        %v647 = vcombine.low %v628, %v644
        %v648 = vcombine.high %v628, %v644
        %v649 = vcombine.low %v504, %v506
        %v651 = vunpack.c.l.s4 1983009808
        %v652 = vunpack.c.0.s8 %v651
        %v653 = vlaneseq
        %v654 = vshrl.u32 %v653, 7
        %v655 = vsub.s32 %v652, %v654
        %v656 = vrot.slane %v649, %v655
        %v657 = vcombine.low %v505, %v507
        %v659 = vunpack.c.l.s4 1983009808
        %v660 = vunpack.c.0.s8 %v659
        %v661 = vlaneseq
        %v662 = vshrl.u32 %v661, 7
        %v663 = vsub.s32 %v660, %v662
        %v664 = vrot.slane %v657, %v663
        %v665 = vcombine.low %v508, %v510
        %v667 = vunpack.c.l.s4 1983009808
        %v668 = vunpack.c.0.s8 %v667
        %v669 = vlaneseq
        %v670 = vshrl.u32 %v669, 7
        %v671 = vsub.s32 %v668, %v670
        %v672 = vrot.slane %v665, %v671
        %v673 = vcombine.low %v509, %v511
        %v675 = vunpack.c.l.s4 1983009808
        %v676 = vunpack.c.0.s8 %v675
        %v677 = vlaneseq
        %v678 = vshrl.u32 %v677, 7
        %v679 = vsub.s32 %v676, %v678
        %v680 = vrot.slane %v673, %v679
        %v681 = vcombine.low %v656, %v664
        %v682 = vcombine.high %v656, %v664
        %v684 = vunpack.c.l.s4 1934713408
        %v685 = vunpack.c.0.s8 %v684
        %v686 = vlaneseq
        %v687 = vshrl.u32 %v686, 7
        %v688 = vsub.s32 %v685, %v687
        %v689 = vrot.slane %v681, %v688
        %v691 = vunpack.c.l.s4 1934713408
        %v692 = vunpack.c.0.s8 %v691
        %v693 = vlaneseq
        %v694 = vshrl.u32 %v693, 7
        %v695 = vsub.s32 %v692, %v694
        %v696 = vrot.slane %v682, %v695
        %v697 = vcombine.low %v672, %v680
        %v698 = vcombine.high %v672, %v680
        %v700 = vunpack.c.l.s4 1934713408
        %v701 = vunpack.c.0.s8 %v700
        %v702 = vlaneseq
        %v703 = vshrl.u32 %v702, 7
        %v704 = vsub.s32 %v701, %v703
        %v705 = vrot.slane %v697, %v704
        %v707 = vunpack.c.l.s4 1934713408
        %v708 = vunpack.c.0.s8 %v707
        %v709 = vlaneseq
        %v710 = vshrl.u32 %v709, 7
        %v711 = vsub.s32 %v708, %v710
        %v712 = vrot.slane %v698, %v711
        %v713 = vcombine.low %v689, %v705
        %v714 = vcombine.high %v689, %v705
        %v715 = vcombine.low %v696, %v712
        %v716 = vcombine.high %v696, %v712
        %vm717 = vcmask 64512
        %v719 = vsel %vm717, %v577, 0
        %v722 = vsel %vm717, %v645, 0
        %724 = vmatprep.subr.mxu0 0.0
        %725 = vmatpush1.xpose.msra.mxu0 %v722
        %726 = vmatprep.subr.mxu0 0.0
        %727 = vmatpush1.xpose.msra.mxu0 0.0
        %728 = vmatprep.subr.mxu0 0.0
        %729 = vmatpush1.xpose.msra.mxu0 0.0
        %730 = vmatprep.subr.mxu0 0.0
        %731 = vmatpush1.xpose.msra.mxu0 0.0
        %732 = vmatprep.subr.mxu0 0.0
        %733 = vmatpush1.xpose.msra.mxu0 0.0
        %734 = vmatprep.subr.mxu0 0.0
        %735 = vmatpush1.xpose.msra.mxu0 0.0
        %736 = vmatprep.subr.mxu0 0.0
        %737 = vmatpush1.xpose.msra.mxu0 0.0
        %738 = vmatprep.subr.mxu0 0.0
        %739 = vmatpush1.xpose.msra.mxu0 0.0
        %740 = vmatprep.subr.mxu0 0.0
        %741 = vmatpush1.xpose.msra.mxu0 0.0
        %742 = vmatprep.subr.mxu0 0.0
        %743 = vmatpush1.xpose.msra.mxu0 0.0
        %744 = vmatprep.subr.mxu0 0.0
        %745 = vmatpush1.xpose.msra.mxu0 0.0
        %746 = vmatprep.subr.mxu0 0.0
        %747 = vmatpush1.xpose.msra.mxu0 0.0
        %748 = vmatprep.subr.mxu0 0.0
        %749 = vmatpush1.xpose.msra.mxu0 0.0
        %750 = vmatprep.subr.mxu0 0.0
        %751 = vmatpush1.xpose.msra.mxu0 0.0
        %752 = vmatprep.subr.mxu0 0.0
        %753 = vmatpush1.xpose.msra.mxu0 0.0
        %754 = vmatprep.subr.mxu0 0.0
        %755 = vmatpush1.xpose.msra.mxu0 0.0
        %756 = vmatprep.subr.mxu0 0.0
        %757 = vmatpush1.xpose.msra.mxu0 0.0
        %758 = vmatprep.subr.mxu0 0.0
        %759 = vmatpush1.xpose.msra.mxu0 0.0
        %760 = vmatprep.subr.mxu0 0.0
        %761 = vmatpush1.xpose.msra.mxu0 0.0
        %762 = vmatprep.subr.mxu0 0.0
        %763 = vmatpush1.xpose.msra.mxu0 0.0
        %764 = vmatprep.subr.mxu0 0.0
        %765 = vmatpush1.xpose.msra.mxu0 0.0
        %766 = vmatprep.subr.mxu0 0.0
        %767 = vmatpush1.xpose.msra.mxu0 0.0
        %768 = vmatprep.subr.mxu0 0.0
        %769 = vmatpush1.xpose.msra.mxu0 0.0
        %770 = vmatprep.subr.mxu0 0.0
        %771 = vmatpush1.xpose.msra.mxu0 0.0
        %772 = vmatprep.subr.mxu0 0.0
        %773 = vmatpush1.xpose.msra.mxu0 0.0
        %774 = vmatprep.subr.mxu0 0.0
        %775 = vmatpush1.xpose.msra.mxu0 0.0
        %776 = vmatprep.subr.mxu0 0.0
        %777 = vmatpush1.xpose.msra.mxu0 0.0
        %778 = vmatprep.subr.mxu0 0.0
        %779 = vmatpush1.xpose.msra.mxu0 0.0
        %780 = vmatprep.subr.mxu0 0.0
        %781 = vmatpush1.xpose.msra.mxu0 0.0
        %782 = vmatprep.subr.mxu0 0.0
        %783 = vmatpush1.xpose.msra.mxu0 0.0
        %784 = vmatprep.subr.mxu0 0.0
        %785 = vmatpush1.xpose.msra.mxu0 0.0
        %786 = vmatprep.subr.mxu0 0.0
        %787 = vmatpush1.xpose.msra.mxu0 0.0
        %788 = vmatprep.mubr.f32.mxu0 0.0
        %789 = vmatmul.mubr.f32.gmra.mrb[0].mxu0 %v719
        %v790 = vpop.f32.mrb[0].mxu0
        %v791 = vadd.f32 0.0, %v790
        %v792 = vpop.f32.mrb[0].mxu0
        %793 = vdwg.mxu0
        %v795 = vsel %vm717, %v578, 0
        %v798 = vsel %vm717, %v646, 0
        %800 = vmatprep.subr.mxu0 0.0
        %801 = vmatpush1.xpose.msra.mxu0 %v798
        %802 = vmatprep.subr.mxu0 0.0
        %803 = vmatpush1.xpose.msra.mxu0 0.0
        %804 = vmatprep.subr.mxu0 0.0
        %805 = vmatpush1.xpose.msra.mxu0 0.0
        %806 = vmatprep.subr.mxu0 0.0
        %807 = vmatpush1.xpose.msra.mxu0 0.0
        %808 = vmatprep.subr.mxu0 0.0
        %809 = vmatpush1.xpose.msra.mxu0 0.0
        %810 = vmatprep.subr.mxu0 0.0
        %811 = vmatpush1.xpose.msra.mxu0 0.0
        %812 = vmatprep.subr.mxu0 0.0
        %813 = vmatpush1.xpose.msra.mxu0 0.0
        %814 = vmatprep.subr.mxu0 0.0
        %815 = vmatpush1.xpose.msra.mxu0 0.0
        %816 = vmatprep.subr.mxu0 0.0
        %817 = vmatpush1.xpose.msra.mxu0 0.0
        %818 = vmatprep.subr.mxu0 0.0
        %819 = vmatpush1.xpose.msra.mxu0 0.0
        %820 = vmatprep.subr.mxu0 0.0
        %821 = vmatpush1.xpose.msra.mxu0 0.0
        %822 = vmatprep.subr.mxu0 0.0
        %823 = vmatpush1.xpose.msra.mxu0 0.0
        %824 = vmatprep.subr.mxu0 0.0
        %825 = vmatpush1.xpose.msra.mxu0 0.0
        %826 = vmatprep.subr.mxu0 0.0
        %827 = vmatpush1.xpose.msra.mxu0 0.0
        %828 = vmatprep.subr.mxu0 0.0
        %829 = vmatpush1.xpose.msra.mxu0 0.0
        %830 = vmatprep.subr.mxu0 0.0
        %831 = vmatpush1.xpose.msra.mxu0 0.0
        %832 = vmatprep.subr.mxu0 0.0
        %833 = vmatpush1.xpose.msra.mxu0 0.0
        %834 = vmatprep.subr.mxu0 0.0
        %835 = vmatpush1.xpose.msra.mxu0 0.0
        %836 = vmatprep.subr.mxu0 0.0
        %837 = vmatpush1.xpose.msra.mxu0 0.0
        %838 = vmatprep.subr.mxu0 0.0
        %839 = vmatpush1.xpose.msra.mxu0 0.0
        %840 = vmatprep.subr.mxu0 0.0
        %841 = vmatpush1.xpose.msra.mxu0 0.0
        %842 = vmatprep.subr.mxu0 0.0
        %843 = vmatpush1.xpose.msra.mxu0 0.0
        %844 = vmatprep.subr.mxu0 0.0
        %845 = vmatpush1.xpose.msra.mxu0 0.0
        %846 = vmatprep.subr.mxu0 0.0
        %847 = vmatpush1.xpose.msra.mxu0 0.0
        %848 = vmatprep.subr.mxu0 0.0
        %849 = vmatpush1.xpose.msra.mxu0 0.0
        %850 = vmatprep.subr.mxu0 0.0
        %851 = vmatpush1.xpose.msra.mxu0 0.0
        %852 = vmatprep.subr.mxu0 0.0
        %853 = vmatpush1.xpose.msra.mxu0 0.0
        %854 = vmatprep.subr.mxu0 0.0
        %855 = vmatpush1.xpose.msra.mxu0 0.0
        %856 = vmatprep.subr.mxu0 0.0
        %857 = vmatpush1.xpose.msra.mxu0 0.0
        %858 = vmatprep.subr.mxu0 0.0
        %859 = vmatpush1.xpose.msra.mxu0 0.0
        %860 = vmatprep.subr.mxu0 0.0
        %861 = vmatpush1.xpose.msra.mxu0 0.0
        %862 = vmatprep.subr.mxu0 0.0
        %863 = vmatpush1.xpose.msra.mxu0 0.0
        %864 = vmatprep.mubr.f32.mxu0 0.0
        %865 = vmatmul.mubr.f32.gmra.mrb[0].mxu0 %v795
        %v866 = vpop.f32.mrb[0].mxu0
        %v867 = vadd.f32 0.0, %v866
        %v868 = vpop.f32.mrb[0].mxu0
        %869 = vdwg.mxu0
        %v871 = vsel %vm717, %v579, 0
        %v874 = vsel %vm717, %v647, 0
        %876 = vmatprep.subr.mxu0 0.0
        %877 = vmatpush1.xpose.msra.mxu0 %v874
        %878 = vmatprep.subr.mxu0 0.0
        %879 = vmatpush1.xpose.msra.mxu0 0.0
        %880 = vmatprep.subr.mxu0 0.0
        %881 = vmatpush1.xpose.msra.mxu0 0.0
        %882 = vmatprep.subr.mxu0 0.0
        %883 = vmatpush1.xpose.msra.mxu0 0.0
        %884 = vmatprep.subr.mxu0 0.0
        %885 = vmatpush1.xpose.msra.mxu0 0.0
        %886 = vmatprep.subr.mxu0 0.0
        %887 = vmatpush1.xpose.msra.mxu0 0.0
        %888 = vmatprep.subr.mxu0 0.0
        %889 = vmatpush1.xpose.msra.mxu0 0.0
        %890 = vmatprep.subr.mxu0 0.0
        %891 = vmatpush1.xpose.msra.mxu0 0.0
        %892 = vmatprep.subr.mxu0 0.0
        %893 = vmatpush1.xpose.msra.mxu0 0.0
        %894 = vmatprep.subr.mxu0 0.0
        %895 = vmatpush1.xpose.msra.mxu0 0.0
        %896 = vmatprep.subr.mxu0 0.0
        %897 = vmatpush1.xpose.msra.mxu0 0.0
        %898 = vmatprep.subr.mxu0 0.0
        %899 = vmatpush1.xpose.msra.mxu0 0.0
        %900 = vmatprep.subr.mxu0 0.0
        %901 = vmatpush1.xpose.msra.mxu0 0.0
        %902 = vmatprep.subr.mxu0 0.0
        %903 = vmatpush1.xpose.msra.mxu0 0.0
        %904 = vmatprep.subr.mxu0 0.0
        %905 = vmatpush1.xpose.msra.mxu0 0.0
        %906 = vmatprep.subr.mxu0 0.0
        %907 = vmatpush1.xpose.msra.mxu0 0.0
        %908 = vmatprep.subr.mxu0 0.0
        %909 = vmatpush1.xpose.msra.mxu0 0.0
        %910 = vmatprep.subr.mxu0 0.0
        %911 = vmatpush1.xpose.msra.mxu0 0.0
        %912 = vmatprep.subr.mxu0 0.0
        %913 = vmatpush1.xpose.msra.mxu0 0.0
        %914 = vmatprep.subr.mxu0 0.0
        %915 = vmatpush1.xpose.msra.mxu0 0.0
        %916 = vmatprep.subr.mxu0 0.0
        %917 = vmatpush1.xpose.msra.mxu0 0.0
        %918 = vmatprep.subr.mxu0 0.0
        %919 = vmatpush1.xpose.msra.mxu0 0.0
        %920 = vmatprep.subr.mxu0 0.0
        %921 = vmatpush1.xpose.msra.mxu0 0.0
        %922 = vmatprep.subr.mxu0 0.0
        %923 = vmatpush1.xpose.msra.mxu0 0.0
        %924 = vmatprep.subr.mxu0 0.0
        %925 = vmatpush1.xpose.msra.mxu0 0.0
        %926 = vmatprep.subr.mxu0 0.0
        %927 = vmatpush1.xpose.msra.mxu0 0.0
        %928 = vmatprep.subr.mxu0 0.0
        %929 = vmatpush1.xpose.msra.mxu0 0.0
        %930 = vmatprep.subr.mxu0 0.0
        %931 = vmatpush1.xpose.msra.mxu0 0.0
        %932 = vmatprep.subr.mxu0 0.0
        %933 = vmatpush1.xpose.msra.mxu0 0.0
        %934 = vmatprep.subr.mxu0 0.0
        %935 = vmatpush1.xpose.msra.mxu0 0.0
        %936 = vmatprep.subr.mxu0 0.0
        %937 = vmatpush1.xpose.msra.mxu0 0.0
        %938 = vmatprep.subr.mxu0 0.0
        %939 = vmatpush1.xpose.msra.mxu0 0.0
        %940 = vmatprep.mubr.f32.mxu0 0.0
        %941 = vmatmul.mubr.f32.gmra.mrb[0].mxu0 %v871
        %v942 = vpop.f32.mrb[0].mxu0
        %v943 = vadd.f32 0.0, %v942
        %v944 = vpop.f32.mrb[0].mxu0
        %945 = vdwg.mxu0
        %v947 = vsel %vm717, %v580, 0
        %v950 = vsel %vm717, %v648, 0
        %952 = vmatprep.subr.mxu0 0.0
        %953 = vmatpush1.xpose.msra.mxu0 %v950
        %954 = vmatprep.subr.mxu0 0.0
        %955 = vmatpush1.xpose.msra.mxu0 0.0
        %956 = vmatprep.subr.mxu0 0.0
        %957 = vmatpush1.xpose.msra.mxu0 0.0
        %958 = vmatprep.subr.mxu0 0.0
        %959 = vmatpush1.xpose.msra.mxu0 0.0
        %960 = vmatprep.subr.mxu0 0.0
        %961 = vmatpush1.xpose.msra.mxu0 0.0
        %962 = vmatprep.subr.mxu0 0.0
        %963 = vmatpush1.xpose.msra.mxu0 0.0
        %964 = vmatprep.subr.mxu0 0.0
        %965 = vmatpush1.xpose.msra.mxu0 0.0
        %966 = vmatprep.subr.mxu0 0.0
        %967 = vmatpush1.xpose.msra.mxu0 0.0
        %968 = vmatprep.subr.mxu0 0.0
        %969 = vmatpush1.xpose.msra.mxu0 0.0
        %970 = vmatprep.subr.mxu0 0.0
        %971 = vmatpush1.xpose.msra.mxu0 0.0
        %972 = vmatprep.subr.mxu0 0.0
        %973 = vmatpush1.xpose.msra.mxu0 0.0
        %974 = vmatprep.subr.mxu0 0.0
        %975 = vmatpush1.xpose.msra.mxu0 0.0
        %976 = vmatprep.subr.mxu0 0.0
        %977 = vmatpush1.xpose.msra.mxu0 0.0
        %978 = vmatprep.subr.mxu0 0.0
        %979 = vmatpush1.xpose.msra.mxu0 0.0
        %980 = vmatprep.subr.mxu0 0.0
        %981 = vmatpush1.xpose.msra.mxu0 0.0
        %982 = vmatprep.subr.mxu0 0.0
        %983 = vmatpush1.xpose.msra.mxu0 0.0
        %984 = vmatprep.subr.mxu0 0.0
        %985 = vmatpush1.xpose.msra.mxu0 0.0
        %986 = vmatprep.subr.mxu0 0.0
        %987 = vmatpush1.xpose.msra.mxu0 0.0
        %988 = vmatprep.subr.mxu0 0.0
        %989 = vmatpush1.xpose.msra.mxu0 0.0
        %990 = vmatprep.subr.mxu0 0.0
        %991 = vmatpush1.xpose.msra.mxu0 0.0
        %992 = vmatprep.subr.mxu0 0.0
        %993 = vmatpush1.xpose.msra.mxu0 0.0
        %994 = vmatprep.subr.mxu0 0.0
        %995 = vmatpush1.xpose.msra.mxu0 0.0
        %996 = vmatprep.subr.mxu0 0.0
        %997 = vmatpush1.xpose.msra.mxu0 0.0
        %998 = vmatprep.subr.mxu0 0.0
        %999 = vmatpush1.xpose.msra.mxu0 0.0
        %1000 = vmatprep.subr.mxu0 0.0
        %1001 = vmatpush1.xpose.msra.mxu0 0.0
        %1002 = vmatprep.subr.mxu0 0.0
        %1003 = vmatpush1.xpose.msra.mxu0 0.0
        %1004 = vmatprep.subr.mxu0 0.0
        %1005 = vmatpush1.xpose.msra.mxu0 0.0
        %1006 = vmatprep.subr.mxu0 0.0
        %1007 = vmatpush1.xpose.msra.mxu0 0.0
        %1008 = vmatprep.subr.mxu0 0.0
        %1009 = vmatpush1.xpose.msra.mxu0 0.0
        %1010 = vmatprep.subr.mxu0 0.0
        %1011 = vmatpush1.xpose.msra.mxu0 0.0
        %1012 = vmatprep.subr.mxu0 0.0
        %1013 = vmatpush1.xpose.msra.mxu0 0.0
        %1014 = vmatprep.subr.mxu0 0.0
        %1015 = vmatpush1.xpose.msra.mxu0 0.0
        %1016 = vmatprep.mubr.f32.mxu0 0.0
        %1017 = vmatmul.mubr.f32.gmra.mrb[0].mxu0 %v947
        %v1018 = vpop.f32.mrb[0].mxu0
        %v1019 = vadd.f32 0.0, %v1018
        %v1020 = vpop.f32.mrb[0].mxu0
        %1021 = vdwg.mxu0
        %v1022 = vmul.f32 %v791, 0.35355338
        %v1023 = vmul.f32 %v867, 0.35355338
        %v1024 = vmul.f32 %v943, 0.35355338
        %v1025 = vmul.f32 %v1019, 0.35355338
        %v1027 = vlaneseq
        %v1028 = vshrl.u32 %v1027, 7
        %v1029 = vsub.s32 0, %v1028
        %v1030 = vrot.slane %v512, %v1029
        %v1032 = vadd.f32 %v1022, %v1030
        %v1033 = vadd.f32 %v1023, %v1030
        %v1034 = vadd.f32 %v1024, %v1030
        %v1035 = vadd.f32 %v1025, %v1030
        %v1036 = vsel %vm717, %v1032, -inf
        %1037 = vmax.xlane.f32.xlu0 %v1036
        %v1038 = vpop.xlane.xlu0 %1037
        %v1039 = vsel %vm717, %v1033, -inf
        %1040 = vmax.xlane.f32.xlu0 %v1039
        %v1041 = vpop.xlane.xlu0 %1040
        %v1042 = vsel %vm717, %v1034, -inf
        %1043 = vmax.xlane.f32.xlu0 %v1042
        %v1044 = vpop.xlane.xlu0 %1043
        %v1045 = vsel %vm717, %v1035, -inf
        %1046 = vmax.xlane.f32.xlu0 %v1045
        %v1047 = vpop.xlane.xlu0 %1046
        %v1048 = vsub.f32 %v1032, %v1038
        %v1049 = vsub.f32 %v1033, %v1041
        %v1050 = vsub.f32 %v1034, %v1044
        %v1051 = vsub.f32 %v1035, %v1047
        %v1052 = vmul.f32 %v1048, 1.442695
        %v1053 = vpow.pop %v1052
        %v1054 = vmul.f32 %v1049, 1.442695
        %v1055 = vpow.pop %v1054
        %v1056 = vmul.f32 %v1050, 1.442695
        %v1057 = vpow.pop %v1056
        %v1058 = vmul.f32 %v1051, 1.442695
        %v1059 = vpow.pop %v1058
        %v1060 = vsel %vm717, %v1053, 0.0
        %1061 = vadd.xlane.f32.xlu0 %v1060
        %v1062 = vpop.xlane.xlu0 %1061
        %v1063 = vsel %vm717, %v1055, 0.0
        %1064 = vadd.xlane.f32.xlu0 %v1063
        %v1065 = vpop.xlane.xlu0 %1064
        %v1066 = vsel %vm717, %v1057, 0.0
        %1067 = vadd.xlane.f32.xlu0 %v1066
        %v1068 = vpop.xlane.xlu0 %1067
        %v1069 = vsel %vm717, %v1059, 0.0
        %1070 = vadd.xlane.f32.xlu0 %v1069
        %v1071 = vpop.xlane.xlu0 %1070
        %v1072 = vrcp.pop %v1062
        %v1073 = vrcp.pop %v1065
        %v1074 = vrcp.pop %v1068
        %v1075 = vrcp.pop %v1071
        %v1076 = vmul.f32 %v1053, %v1072
        %v1077 = vmul.f32 %v1055, %v1073
        %v1078 = vmul.f32 %v1057, %v1074
        %v1079 = vmul.f32 %v1059, %v1075
        %v1081 = vsel %vm717, %v1076, 0
        %1083 = vmatprep.subr.mxu0 0.0
        %1084 = vmatpush1.msra.mxu0 %v713
        %1085 = vmatprep.subr.mxu0 0.0
        %1086 = vmatpush1.msra.mxu0 0.0
        %1087 = vmatprep.subr.mxu0 0.0
        %1088 = vmatpush1.msra.mxu0 0.0
        %1089 = vmatprep.subr.mxu0 0.0
        %1090 = vmatpush1.msra.mxu0 0.0
        %1091 = vmatprep.subr.mxu0 0.0
        %1092 = vmatpush1.msra.mxu0 0.0
        %1093 = vmatprep.subr.mxu0 0.0
        %1094 = vmatpush1.msra.mxu0 0.0
        %1095 = vmatprep.subr.mxu0 0.0
        %1096 = vmatpush1.msra.mxu0 0.0
        %1097 = vmatprep.subr.mxu0 0.0
        %1098 = vmatpush1.msra.mxu0 0.0
        %1099 = vmatprep.subr.mxu0 0.0
        %1100 = vmatpush1.msra.mxu0 0.0
        %1101 = vmatprep.subr.mxu0 0.0
        %1102 = vmatpush1.msra.mxu0 0.0
        %1103 = vmatprep.subr.mxu0 0.0
        %1104 = vmatpush1.msra.mxu0 0.0
        %1105 = vmatprep.subr.mxu0 0.0
        %1106 = vmatpush1.msra.mxu0 0.0
        %1107 = vmatprep.subr.mxu0 0.0
        %1108 = vmatpush1.msra.mxu0 0.0
        %1109 = vmatprep.subr.mxu0 0.0
        %1110 = vmatpush1.msra.mxu0 0.0
        %1111 = vmatprep.subr.mxu0 0.0
        %1112 = vmatpush1.msra.mxu0 0.0
        %1113 = vmatprep.subr.mxu0 0.0
        %1114 = vmatpush1.msra.mxu0 0.0
        %1115 = vmatprep.subr.mxu0 0.0
        %1116 = vmatpush1.msra.mxu0 0.0
        %1117 = vmatprep.subr.mxu0 0.0
        %1118 = vmatpush1.msra.mxu0 0.0
        %1119 = vmatprep.subr.mxu0 0.0
        %1120 = vmatpush1.msra.mxu0 0.0
        %1121 = vmatprep.subr.mxu0 0.0
        %1122 = vmatpush1.msra.mxu0 0.0
        %1123 = vmatprep.subr.mxu0 0.0
        %1124 = vmatpush1.msra.mxu0 0.0
        %1125 = vmatprep.subr.mxu0 0.0
        %1126 = vmatpush1.msra.mxu0 0.0
        %1127 = vmatprep.subr.mxu0 0.0
        %1128 = vmatpush1.msra.mxu0 0.0
        %1129 = vmatprep.subr.mxu0 0.0
        %1130 = vmatpush1.msra.mxu0 0.0
        %1131 = vmatprep.subr.mxu0 0.0
        %1132 = vmatpush1.msra.mxu0 0.0
        %1133 = vmatprep.subr.mxu0 0.0
        %1134 = vmatpush1.msra.mxu0 0.0
        %1135 = vmatprep.subr.mxu0 0.0
        %1136 = vmatpush1.msra.mxu0 0.0
        %1137 = vmatprep.subr.mxu0 0.0
        %1138 = vmatpush1.msra.mxu0 0.0
        %1139 = vmatprep.subr.mxu0 0.0
        %1140 = vmatpush1.msra.mxu0 0.0
        %1141 = vmatprep.subr.mxu0 0.0
        %1142 = vmatpush1.msra.mxu0 0.0
        %1143 = vmatprep.subr.mxu0 0.0
        %1144 = vmatpush1.msra.mxu0 0.0
        %1145 = vmatprep.subr.mxu0 0.0
        %1146 = vmatpush1.msra.mxu0 0.0
        %1147 = vmatprep.mubr.f32.mxu0 0.0
        %1148 = vmatmul.mubr.f32.gmra.mrb[0].mxu0 %v1081
        %v1149 = vpop.f32.mrb[0].mxu0
        %v1150 = vadd.f32 0.0, %v1149
        %v1151 = vpop.f32.mrb[0].mxu0
        %1152 = vdwg.mxu0
        %v1154 = vsel %vm717, %v1077, 0
        %1156 = vmatprep.subr.mxu0 0.0
        %1157 = vmatpush1.msra.mxu0 %v714
        %1158 = vmatprep.subr.mxu0 0.0
        %1159 = vmatpush1.msra.mxu0 0.0
        %1160 = vmatprep.subr.mxu0 0.0
        %1161 = vmatpush1.msra.mxu0 0.0
        %1162 = vmatprep.subr.mxu0 0.0
        %1163 = vmatpush1.msra.mxu0 0.0
        %1164 = vmatprep.subr.mxu0 0.0
        %1165 = vmatpush1.msra.mxu0 0.0
        %1166 = vmatprep.subr.mxu0 0.0
        %1167 = vmatpush1.msra.mxu0 0.0
        %1168 = vmatprep.subr.mxu0 0.0
        %1169 = vmatpush1.msra.mxu0 0.0
        %1170 = vmatprep.subr.mxu0 0.0
        %1171 = vmatpush1.msra.mxu0 0.0
        %1172 = vmatprep.subr.mxu0 0.0
        %1173 = vmatpush1.msra.mxu0 0.0
        %1174 = vmatprep.subr.mxu0 0.0
        %1175 = vmatpush1.msra.mxu0 0.0
        %1176 = vmatprep.subr.mxu0 0.0
        %1177 = vmatpush1.msra.mxu0 0.0
        %1178 = vmatprep.subr.mxu0 0.0
        %1179 = vmatpush1.msra.mxu0 0.0
        %1180 = vmatprep.subr.mxu0 0.0
        %1181 = vmatpush1.msra.mxu0 0.0
        %1182 = vmatprep.subr.mxu0 0.0
        %1183 = vmatpush1.msra.mxu0 0.0
        %1184 = vmatprep.subr.mxu0 0.0
        %1185 = vmatpush1.msra.mxu0 0.0
        %1186 = vmatprep.subr.mxu0 0.0
        %1187 = vmatpush1.msra.mxu0 0.0
        %1188 = vmatprep.subr.mxu0 0.0
        %1189 = vmatpush1.msra.mxu0 0.0
        %1190 = vmatprep.subr.mxu0 0.0
        %1191 = vmatpush1.msra.mxu0 0.0
        %1192 = vmatprep.subr.mxu0 0.0
        %1193 = vmatpush1.msra.mxu0 0.0
        %1194 = vmatprep.subr.mxu0 0.0
        %1195 = vmatpush1.msra.mxu0 0.0
        %1196 = vmatprep.subr.mxu0 0.0
        %1197 = vmatpush1.msra.mxu0 0.0
        %1198 = vmatprep.subr.mxu0 0.0
        %1199 = vmatpush1.msra.mxu0 0.0
        %1200 = vmatprep.subr.mxu0 0.0
        %1201 = vmatpush1.msra.mxu0 0.0
        %1202 = vmatprep.subr.mxu0 0.0
        %1203 = vmatpush1.msra.mxu0 0.0
        %1204 = vmatprep.subr.mxu0 0.0
        %1205 = vmatpush1.msra.mxu0 0.0
        %1206 = vmatprep.subr.mxu0 0.0
        %1207 = vmatpush1.msra.mxu0 0.0
        %1208 = vmatprep.subr.mxu0 0.0
        %1209 = vmatpush1.msra.mxu0 0.0
        %1210 = vmatprep.subr.mxu0 0.0
        %1211 = vmatpush1.msra.mxu0 0.0
        %1212 = vmatprep.subr.mxu0 0.0
        %1213 = vmatpush1.msra.mxu0 0.0
        %1214 = vmatprep.subr.mxu0 0.0
        %1215 = vmatpush1.msra.mxu0 0.0
        %1216 = vmatprep.subr.mxu0 0.0
        %1217 = vmatpush1.msra.mxu0 0.0
        %1218 = vmatprep.subr.mxu0 0.0
        %1219 = vmatpush1.msra.mxu0 0.0
        %1220 = vmatprep.mubr.f32.mxu0 0.0
        %1221 = vmatmul.mubr.f32.gmra.mrb[0].mxu0 %v1154
        %v1222 = vpop.f32.mrb[0].mxu0
        %v1223 = vadd.f32 0.0, %v1222
        %v1224 = vpop.f32.mrb[0].mxu0
        %1225 = vdwg.mxu0
        %v1227 = vsel %vm717, %v1078, 0
        %1229 = vmatprep.subr.mxu0 0.0
        %1230 = vmatpush1.msra.mxu0 %v715
        %1231 = vmatprep.subr.mxu0 0.0
        %1232 = vmatpush1.msra.mxu0 0.0
        %1233 = vmatprep.subr.mxu0 0.0
        %1234 = vmatpush1.msra.mxu0 0.0
        %1235 = vmatprep.subr.mxu0 0.0
        %1236 = vmatpush1.msra.mxu0 0.0
        %1237 = vmatprep.subr.mxu0 0.0
        %1238 = vmatpush1.msra.mxu0 0.0
        %1239 = vmatprep.subr.mxu0 0.0
        %1240 = vmatpush1.msra.mxu0 0.0
        %1241 = vmatprep.subr.mxu0 0.0
        %1242 = vmatpush1.msra.mxu0 0.0
        %1243 = vmatprep.subr.mxu0 0.0
        %1244 = vmatpush1.msra.mxu0 0.0
        %1245 = vmatprep.subr.mxu0 0.0
        %1246 = vmatpush1.msra.mxu0 0.0
        %1247 = vmatprep.subr.mxu0 0.0
        %1248 = vmatpush1.msra.mxu0 0.0
        %1249 = vmatprep.subr.mxu0 0.0
        %1250 = vmatpush1.msra.mxu0 0.0
        %1251 = vmatprep.subr.mxu0 0.0
        %1252 = vmatpush1.msra.mxu0 0.0
        %1253 = vmatprep.subr.mxu0 0.0
        %1254 = vmatpush1.msra.mxu0 0.0
        %1255 = vmatprep.subr.mxu0 0.0
        %1256 = vmatpush1.msra.mxu0 0.0
        %1257 = vmatprep.subr.mxu0 0.0
        %1258 = vmatpush1.msra.mxu0 0.0
        %1259 = vmatprep.subr.mxu0 0.0
        %1260 = vmatpush1.msra.mxu0 0.0
        %1261 = vmatprep.subr.mxu0 0.0
        %1262 = vmatpush1.msra.mxu0 0.0
        %1263 = vmatprep.subr.mxu0 0.0
        %1264 = vmatpush1.msra.mxu0 0.0
        %1265 = vmatprep.subr.mxu0 0.0
        %1266 = vmatpush1.msra.mxu0 0.0
        %1267 = vmatprep.subr.mxu0 0.0
        %1268 = vmatpush1.msra.mxu0 0.0
        %1269 = vmatprep.subr.mxu0 0.0
        %1270 = vmatpush1.msra.mxu0 0.0
        %1271 = vmatprep.subr.mxu0 0.0
        %1272 = vmatpush1.msra.mxu0 0.0
        %1273 = vmatprep.subr.mxu0 0.0
        %1274 = vmatpush1.msra.mxu0 0.0
        %1275 = vmatprep.subr.mxu0 0.0
        %1276 = vmatpush1.msra.mxu0 0.0
        %1277 = vmatprep.subr.mxu0 0.0
        %1278 = vmatpush1.msra.mxu0 0.0
        %1279 = vmatprep.subr.mxu0 0.0
        %1280 = vmatpush1.msra.mxu0 0.0
        %1281 = vmatprep.subr.mxu0 0.0
        %1282 = vmatpush1.msra.mxu0 0.0
        %1283 = vmatprep.subr.mxu0 0.0
        %1284 = vmatpush1.msra.mxu0 0.0
        %1285 = vmatprep.subr.mxu0 0.0
        %1286 = vmatpush1.msra.mxu0 0.0
        %1287 = vmatprep.subr.mxu0 0.0
        %1288 = vmatpush1.msra.mxu0 0.0
        %1289 = vmatprep.subr.mxu0 0.0
        %1290 = vmatpush1.msra.mxu0 0.0
        %1291 = vmatprep.subr.mxu0 0.0
        %1292 = vmatpush1.msra.mxu0 0.0
        %1293 = vmatprep.mubr.f32.mxu0 0.0
        %1294 = vmatmul.mubr.f32.gmra.mrb[0].mxu0 %v1227
        %v1295 = vpop.f32.mrb[0].mxu0
        %v1296 = vadd.f32 0.0, %v1295
        %v1297 = vpop.f32.mrb[0].mxu0
        %1298 = vdwg.mxu0
        %v1300 = vsel %vm717, %v1079, 0
        %1302 = vmatprep.subr.mxu0 0.0
        %1303 = vmatpush1.msra.mxu0 %v716
        %1304 = vmatprep.subr.mxu0 0.0
        %1305 = vmatpush1.msra.mxu0 0.0
        %1306 = vmatprep.subr.mxu0 0.0
        %1307 = vmatpush1.msra.mxu0 0.0
        %1308 = vmatprep.subr.mxu0 0.0
        %1309 = vmatpush1.msra.mxu0 0.0
        %1310 = vmatprep.subr.mxu0 0.0
        %1311 = vmatpush1.msra.mxu0 0.0
        %1312 = vmatprep.subr.mxu0 0.0
        %1313 = vmatpush1.msra.mxu0 0.0
        %1314 = vmatprep.subr.mxu0 0.0
        %1315 = vmatpush1.msra.mxu0 0.0
        %1316 = vmatprep.subr.mxu0 0.0
        %1317 = vmatpush1.msra.mxu0 0.0
        %1318 = vmatprep.subr.mxu0 0.0
        %1319 = vmatpush1.msra.mxu0 0.0
        %1320 = vmatprep.subr.mxu0 0.0
        %1321 = vmatpush1.msra.mxu0 0.0
        %1322 = vmatprep.subr.mxu0 0.0
        %1323 = vmatpush1.msra.mxu0 0.0
        %1324 = vmatprep.subr.mxu0 0.0
        %1325 = vmatpush1.msra.mxu0 0.0
        %1326 = vmatprep.subr.mxu0 0.0
        %1327 = vmatpush1.msra.mxu0 0.0
        %1328 = vmatprep.subr.mxu0 0.0
        %1329 = vmatpush1.msra.mxu0 0.0
        %1330 = vmatprep.subr.mxu0 0.0
        %1331 = vmatpush1.msra.mxu0 0.0
        %1332 = vmatprep.subr.mxu0 0.0
        %1333 = vmatpush1.msra.mxu0 0.0
        %1334 = vmatprep.subr.mxu0 0.0
        %1335 = vmatpush1.msra.mxu0 0.0
        %1336 = vmatprep.subr.mxu0 0.0
        %1337 = vmatpush1.msra.mxu0 0.0
        %1338 = vmatprep.subr.mxu0 0.0
        %1339 = vmatpush1.msra.mxu0 0.0
        %1340 = vmatprep.subr.mxu0 0.0
        %1341 = vmatpush1.msra.mxu0 0.0
        %1342 = vmatprep.subr.mxu0 0.0
        %1343 = vmatpush1.msra.mxu0 0.0
        %1344 = vmatprep.subr.mxu0 0.0
        %1345 = vmatpush1.msra.mxu0 0.0
        %1346 = vmatprep.subr.mxu0 0.0
        %1347 = vmatpush1.msra.mxu0 0.0
        %1348 = vmatprep.subr.mxu0 0.0
        %1349 = vmatpush1.msra.mxu0 0.0
        %1350 = vmatprep.subr.mxu0 0.0
        %1351 = vmatpush1.msra.mxu0 0.0
        %1352 = vmatprep.subr.mxu0 0.0
        %1353 = vmatpush1.msra.mxu0 0.0
        %1354 = vmatprep.subr.mxu0 0.0
        %1355 = vmatpush1.msra.mxu0 0.0
        %1356 = vmatprep.subr.mxu0 0.0
        %1357 = vmatpush1.msra.mxu0 0.0
        %1358 = vmatprep.subr.mxu0 0.0
        %1359 = vmatpush1.msra.mxu0 0.0
        %1360 = vmatprep.subr.mxu0 0.0
        %1361 = vmatpush1.msra.mxu0 0.0
        %1362 = vmatprep.subr.mxu0 0.0
        %1363 = vmatpush1.msra.mxu0 0.0
        %1364 = vmatprep.subr.mxu0 0.0
        %1365 = vmatpush1.msra.mxu0 0.0
        %1366 = vmatprep.mubr.f32.mxu0 0.0
        %1367 = vmatmul.mubr.f32.gmra.mrb[0].mxu0 %v1300
        %v1368 = vpop.f32.mrb[0].mxu0
        %v1369 = vadd.f32 0.0, %v1368
        %v1370 = vpop.f32.mrb[0].mxu0
        %1371 = vdwg.mxu0
        %v1372 = vcombine.low %v1150, %v1296
        %v1373 = vcombine.high %v1150, %v1296
        %v1375 = vunpack.c.l.s4 1983009808
        %v1376 = vunpack.c.0.s8 %v1375
        %v1377 = vlaneseq
        %v1378 = vshrl.u32 %v1377, 7
        %v1379 = vsub.s32 %v1376, %v1378
        %v1380 = vrot.slane %v1372, %v1379
        %v1382 = vunpack.c.l.s4 1983009808
        %v1383 = vunpack.c.0.s8 %v1382
        %v1384 = vlaneseq
        %v1385 = vshrl.u32 %v1384, 7
        %v1386 = vsub.s32 %v1383, %v1385
        %v1387 = vrot.slane %v1373, %v1386
        %v1388 = vcombine.low %v1223, %v1369
        %v1389 = vcombine.high %v1223, %v1369
        %v1391 = vunpack.c.l.s4 1983009808
        %v1392 = vunpack.c.0.s8 %v1391
        %v1393 = vlaneseq
        %v1394 = vshrl.u32 %v1393, 7
        %v1395 = vsub.s32 %v1392, %v1394
        %v1396 = vrot.slane %v1388, %v1395
        %v1398 = vunpack.c.l.s4 1983009808
        %v1399 = vunpack.c.0.s8 %v1398
        %v1400 = vlaneseq
        %v1401 = vshrl.u32 %v1400, 7
        %v1402 = vsub.s32 %v1399, %v1401
        %v1403 = vrot.slane %v1389, %v1402
        %v1404 = vcombine.low %v1380, %v1396
        %v1405 = vcombine.high %v1380, %v1396
        %v1407 = vunpack.c.l.s4 1934713408
        %v1408 = vunpack.c.0.s8 %v1407
        %v1409 = vlaneseq
        %v1410 = vshrl.u32 %v1409, 7
        %v1411 = vsub.s32 %v1408, %v1410
        %v1412 = vrot.slane %v1404, %v1411
        %v1414 = vunpack.c.l.s4 1934713408
        %v1415 = vunpack.c.0.s8 %v1414
        %v1416 = vlaneseq
        %v1417 = vshrl.u32 %v1416, 7
        %v1418 = vsub.s32 %v1415, %v1417
        %v1419 = vrot.slane %v1405, %v1418
        %v1420 = vcombine.low %v1387, %v1403
        %v1421 = vcombine.high %v1387, %v1403
        %v1423 = vunpack.c.l.s4 1934713408
        %v1424 = vunpack.c.0.s8 %v1423
        %v1425 = vlaneseq
        %v1426 = vshrl.u32 %v1425, 7
        %v1427 = vsub.s32 %v1424, %v1426
        %v1428 = vrot.slane %v1420, %v1427
        %v1430 = vunpack.c.l.s4 1934713408
        %v1431 = vunpack.c.0.s8 %v1430
        %v1432 = vlaneseq
        %v1433 = vshrl.u32 %v1432, 7
        %v1434 = vsub.s32 %v1431, %v1433
        %v1435 = vrot.slane %v1421, %v1434
        %v1436 = vcombine.high %v1412, 0.0
        %v1437 = vcombine.high %v1419, 0.0
        %v1438 = vcombine.high %v1428, 0.0
        %v1439 = vcombine.high %v1435, 0.0
        %v1440 = vcombine.low %v1412, %v1419
        %v1442 = vunpack.c.l.s4 1983009808
        %v1443 = vunpack.c.0.s8 %v1442
        %v1444 = vlaneseq
        %v1445 = vshrl.u32 %v1444, 7
        %v1446 = vsub.s32 %v1443, %v1445
        %v1447 = vrot.slane %v1440, %v1446
        %v1448 = vcombine.low %v1436, %v1437
        %v1450 = vunpack.c.l.s4 1983009808
        %v1451 = vunpack.c.0.s8 %v1450
        %v1452 = vlaneseq
        %v1453 = vshrl.u32 %v1452, 7
        %v1454 = vsub.s32 %v1451, %v1453
        %v1455 = vrot.slane %v1448, %v1454
        %v1456 = vcombine.low %v1428, %v1435
        %v1458 = vunpack.c.l.s4 1983009808
        %v1459 = vunpack.c.0.s8 %v1458
        %v1460 = vlaneseq
        %v1461 = vshrl.u32 %v1460, 7
        %v1462 = vsub.s32 %v1459, %v1461
        %v1463 = vrot.slane %v1456, %v1462
        %v1464 = vcombine.low %v1438, %v1439
        %v1466 = vunpack.c.l.s4 1983009808
        %v1467 = vunpack.c.0.s8 %v1466
        %v1468 = vlaneseq
        %v1469 = vshrl.u32 %v1468, 7
        %v1470 = vsub.s32 %v1467, %v1469
        %v1471 = vrot.slane %v1464, %v1470
        %v1472 = vcombine.low %v1447, %v1455
        %v1473 = vcombine.high %v1447, %v1455
        %v1475 = vunpack.c.l.s4 1934713408
        %v1476 = vunpack.c.0.s8 %v1475
        %v1477 = vlaneseq
        %v1478 = vshrl.u32 %v1477, 7
        %v1479 = vsub.s32 %v1476, %v1478
        %v1480 = vrot.slane %v1472, %v1479
        %v1482 = vunpack.c.l.s4 1934713408
        %v1483 = vunpack.c.0.s8 %v1482
        %v1484 = vlaneseq
        %v1485 = vshrl.u32 %v1484, 7
        %v1486 = vsub.s32 %v1483, %v1485
        %v1487 = vrot.slane %v1473, %v1486
        %v1488 = vcombine.low %v1463, %v1471
        %v1489 = vcombine.high %v1463, %v1471
        %v1491 = vunpack.c.l.s4 1934713408
        %v1492 = vunpack.c.0.s8 %v1491
        %v1493 = vlaneseq
        %v1494 = vshrl.u32 %v1493, 7
        %v1495 = vsub.s32 %v1492, %v1494
        %v1496 = vrot.slane %v1488, %v1495
        %v1498 = vunpack.c.l.s4 1934713408
        %v1499 = vunpack.c.0.s8 %v1498
        %v1500 = vlaneseq
        %v1501 = vshrl.u32 %v1500, 7
        %v1502 = vsub.s32 %v1499, %v1501
        %v1503 = vrot.slane %v1489, %v1502
        %v1504 = vcombine.low %v1480, %v1496
        %v1505 = vcombine.high %v1480, %v1496
        %v1506 = vcombine.low %v1487, %v1503
        %v1507 = vcombine.high %v1487, %v1503
        %1509 = vrot.lane.b32.xlu0 %v1505, 8
        %v1510 = vpop.permute.xlu0 %1509
        %1513 = vrot.lane.b32.xlu0 %v1506, 16
        %v1514 = vpop.permute.xlu0 %1513
        %1517 = vrot.lane.b32.xlu0 %v1507, 24
        %v1518 = vpop.permute.xlu0 %1517
        %v1520 = vsel %vm717, %v1504, %v1510
        %vm1521 = vcmask 130048
        %v1522 = vsel %vm1521, %v1520, %v1514
        %vm1523 = vcmask 195584
        %v1524 = vsel %vm1523, %v1522, %v1518
        %vm1525 = vcmask 261120
        %1526 = vst.msk [vmem:[%s487] sm:$0xff] %vm1525, %v1524
        %p1527 = scmp.lt.s32.totalorder %s19, 1
        %s1528 = scalar_select %p1527, %s19, 1
        %p1529 = scmp.lt.s32.totalorder %s20, 0
        %s1530 = scalar_select %p1529, %s20, 0
        %s1531 = sadd.s32 %s1530, %s1528
        %s1532 = smul.addr %s1531, 8
        %s1533 = scalar_lea.vmem %s4, %s1532
        // Predicated region
        $region160: #{encoder_pooler.12} parent=146 // pred_check
          %p1534 = pneg %p153
        $region161: #{encoder_pooler.12} parent=146 // pred_check_branch
          %1536 = sbr.rel (%p1534) target = $region163
        $region162: #{encoder_pooler.12} parent=146 // pred_region
          _
        $region163: #{encoder_pooler.12} parent=146 // pred_fallthru
          _
      $region147: #{encoder_pooler.12} parent=5 // pred_fallthru
        _
      %p1537 = scmp.le.s32.totalorder 2, %s10
      // Predicated region
      $region164: #{encoder_pooler.12} parent=5 // pred_check
        %p1538 = pneg %p1537
      $region165: #{encoder_pooler.12} parent=5 // pred_check_branch
        %1540 = sbr.rel (%p1538) target = $region167
      $region166: #{encoder_pooler.12} parent=5 // pred_region
        %s1541 = ssub.s32 %s10, 2
        // Predicated region
        $region168: #{encoder_pooler.12} parent=166 // pred_check
          %p1542 = pneg %p159
        $region169: #{encoder_pooler.12} parent=166 // pred_check_branch
          %1544 = sbr.rel (%p1542) target = $region171
        $region170: #{encoder_pooler.12} parent=166 // pred_region
          %p1545 = scmp.lt.s32.totalorder %s21, 1
          %s1546 = scalar_select %p1545, %s21, 1
          %p1547 = scmp.lt.s32.totalorder %s22, 0
          %s1548 = scalar_select %p1547, %s22, 0
          %s1549 = sadd.s32 %s1548, %s1546
          %s1550 = smul.addr %s1549, 8
          %s1551 = scalar_lea.vmem %s4, %s1550
        $region171: #{encoder_pooler.12} parent=166 // pred_fallthru
          _
      $region167: #{encoder_pooler.12} parent=5 // pred_fallthru
        _
    $region6: #{encoder_pooler.12} parent=1 // loop_footer
      %s14 = sadd.s32 1, %s10
    $region7: #{encoder_pooler.12} parent=1 // loop_footer_branch
      %9 = sbr.rel target = $region3
    $region8: #{encoder_pooler.12} parent=1 // loop_exit
      _

// kernel: encoder_pooler.14
$region0: #{encoder_pooler.14}
  #allocation0 [shape = 'u32[]', space=smem, size = 0x4, offset = 0x4, fixed_abs, tag = 'smem constant byte address 0x4 - core index']
  #allocation1 [shape = 'u32[144,128]{1,0:T(1,128)}', space=vmem, size = 0x12000, scoped, tag = 'internal scratch']
  %s0 = inlined_call_operand.vmem [shape: f32[16,32], index: 0, kind: input, shape index: {}]
  %s1 = inlined_call_operand.vmem [shape: f32[32,64], index: 1, kind: input, shape index: {}]
  %s2 = inlined_call_operand.vmem [shape: f32[1,64], index: 2, kind: input, shape index: {}]
  %s3 = inlined_call_operand.vmem [shape: f32[16,64], index: 3, kind: output, shape index: {}]
  %s4 = sld [smem:[#allocation0]]
  $region22: #{encoder_pooler.14} parent=0
    _
  %s6 = ssub.s32 1, %s4
  %s7 = scalar_select 0, %s6, %s4
  // Predicated region
  $region2: #{encoder_pooler.14} parent=0 // pred_check
    _
  $region3: #{encoder_pooler.14} parent=0 // pred_check_branch
    %9 = sbr.rel (0) target = $region5
  $region4: #{encoder_pooler.14} parent=0 // pred_region
    _
  $region5: #{encoder_pooler.14} parent=0 // pred_fallthru
    _
  // Predicated region
  $region6: #{encoder_pooler.14} parent=0 // pred_check
    _
  $region7: #{encoder_pooler.14} parent=0 // pred_check_branch
    %11 = sbr.rel (0) target = $region9
  $region8: #{encoder_pooler.14} parent=0 // pred_region
    _
  $region9: #{encoder_pooler.14} parent=0 // pred_fallthru
    _
  // Predicated region
  $region10: #{encoder_pooler.14} parent=0 // pred_check
    _
  $region11: #{encoder_pooler.14} parent=0 // pred_check_branch
    %13 = sbr.rel (0) target = $region13
  $region12: #{encoder_pooler.14} parent=0 // pred_region
    _
  $region13: #{encoder_pooler.14} parent=0 // pred_fallthru
    _
  %v14 = vld [vmem:[%s0] sm:$0xff]
  %v15 = vld [vmem:[%s0 + $0x8] sm:$0xff]
  %v16 = vld [vmem:[%s1] sm:$0xff]
  %v17 = vld [vmem:[%s1 + $0x8] sm:$0xff]
  %v18 = vld [vmem:[%s1 + $0x10] sm:$0xff]
  %v19 = vld [vmem:[%s1 + $0x18] sm:$0xff]
  %v20 = vld [vmem:[%s2] sm:$0x1]
  %v22 = vlaneseq
  %v23 = vshrl.u32 %v22, 7
  %v24 = vsub.s32 0, %v23
  %v25 = vrot.slane %v20, %v24
  %vm27 = vcmask 261120
  %v29 = vsel %vm27, %v14, 0
  %v32 = vsel %vm27, %v15, 0
  %34 = vmatprep.subr.mxu0 0.0
  %35 = vmatpush1.msra.mxu0 %v16
  %36 = vmatprep.subr.mxu0 0.0
  %37 = vmatpush1.msra.mxu0 %v17
  %38 = vmatprep.subr.mxu0 0.0
  %39 = vmatpush1.msra.mxu0 %v18
  %40 = vmatprep.subr.mxu0 0.0
  %41 = vmatpush1.msra.mxu0 %v19
  %42 = vmatprep.subr.mxu0 0.0
  %43 = vmatpush1.msra.mxu0 0.0
  %44 = vmatprep.subr.mxu0 0.0
  %45 = vmatpush1.msra.mxu0 0.0
  %46 = vmatprep.subr.mxu0 0.0
  %47 = vmatpush1.msra.mxu0 0.0
  %48 = vmatprep.subr.mxu0 0.0
  %49 = vmatpush1.msra.mxu0 0.0
  %50 = vmatprep.subr.mxu0 0.0
  %51 = vmatpush1.msra.mxu0 0.0
  %52 = vmatprep.subr.mxu0 0.0
  %53 = vmatpush1.msra.mxu0 0.0
  %54 = vmatprep.subr.mxu0 0.0
  %55 = vmatpush1.msra.mxu0 0.0
  %56 = vmatprep.subr.mxu0 0.0
  %57 = vmatpush1.msra.mxu0 0.0
  %58 = vmatprep.subr.mxu0 0.0
  %59 = vmatpush1.msra.mxu0 0.0
  %60 = vmatprep.subr.mxu0 0.0
  %61 = vmatpush1.msra.mxu0 0.0
  %62 = vmatprep.subr.mxu0 0.0
  %63 = vmatpush1.msra.mxu0 0.0
  %64 = vmatprep.subr.mxu0 0.0
  %65 = vmatpush1.msra.mxu0 0.0
  %66 = vmatprep.subr.mxu0 0.0
  %67 = vmatpush1.msra.mxu0 0.0
  %68 = vmatprep.subr.mxu0 0.0
  %69 = vmatpush1.msra.mxu0 0.0
  %70 = vmatprep.subr.mxu0 0.0
  %71 = vmatpush1.msra.mxu0 0.0
  %72 = vmatprep.subr.mxu0 0.0
  %73 = vmatpush1.msra.mxu0 0.0
  %74 = vmatprep.subr.mxu0 0.0
  %75 = vmatpush1.msra.mxu0 0.0
  %76 = vmatprep.subr.mxu0 0.0
  %77 = vmatpush1.msra.mxu0 0.0
  %78 = vmatprep.subr.mxu0 0.0
  %79 = vmatpush1.msra.mxu0 0.0
  %80 = vmatprep.subr.mxu0 0.0
  %81 = vmatpush1.msra.mxu0 0.0
  %82 = vmatprep.subr.mxu0 0.0
  %83 = vmatpush1.msra.mxu0 0.0
  %84 = vmatprep.subr.mxu0 0.0
  %85 = vmatpush1.msra.mxu0 0.0
  %86 = vmatprep.subr.mxu0 0.0
  %87 = vmatpush1.msra.mxu0 0.0
  %88 = vmatprep.subr.mxu0 0.0
  %89 = vmatpush1.msra.mxu0 0.0
  %90 = vmatprep.subr.mxu0 0.0
  %91 = vmatpush1.msra.mxu0 0.0
  %92 = vmatprep.subr.mxu0 0.0
  %93 = vmatpush1.msra.mxu0 0.0
  %94 = vmatprep.subr.mxu0 0.0
  %95 = vmatpush1.msra.mxu0 0.0
  %96 = vmatprep.subr.mxu0 0.0
  %97 = vmatpush1.msra.mxu0 0.0
  %98 = vmatprep.mubr.f32.mxu0 0.0
  %99 = vmatmul.mubr.f32.gmra.mrb[0].mxu0 %v29
  %v100 = vpop.f32.mrb[0].mxu0
  %v101 = vadd.f32 %v25, %v100
  %v102 = vpop.f32.mrb[0].mxu0
  %103 = vmatprep.mubr.f32.mxu0 0.0
  %104 = vmatmul.mubr.f32.gmra.mrb[0].mxu0 %v32
  %v105 = vpop.f32.mrb[0].mxu0
  %v106 = vadd.f32 %v25, %v105
  %v107 = vpop.f32.mrb[0].mxu0
  %108 = vdwg.mxu0
  %v109 = vmul.f32 %v101, 0.5
  %v110 = vmul.f32 %v106, 0.5
  %v111 = vmul.f32 %v101, 0.044715
  %v112 = vmul.f32 %v106, 0.044715
  %v113 = vmul.f32 %v111, %v101
  %v114 = vmul.f32 %v112, %v106
  %v115 = vmul.f32 %v113, %v101
  %v116 = vmul.f32 %v114, %v106
  %v117 = vadd.f32 %v101, %v115
  %v118 = vadd.f32 %v106, %v116
  %v119 = vmul.f32 %v117, 0.7978846
  %v120 = vmul.f32 %v118, 0.7978846
  %v121 = vtanh.pop %v119
  %v122 = vtanh.pop %v120
  %v123 = vadd.f32 %v121, 1.0
  %v124 = vadd.f32 %v122, 1.0
  %v125 = vmul.f32 %v109, %v123
  %v126 = vmul.f32 %v110, %v124
  %vm127 = vcmask 523264
  %128 = vst.msk [vmem:[%s3] sm:$0xff] %vm127, %v125
  %129 = vst.msk [vmem:[%s3 + $0x8] sm:$0xff] %vm127, %v126
  // Predicated region
  $region14: #{encoder_pooler.14} parent=0 // pred_check
    _
  $region15: #{encoder_pooler.14} parent=0 // pred_check_branch
    %131 = sbr.rel (0) target = $region17
  $region16: #{encoder_pooler.14} parent=0 // pred_region
    _
  $region17: #{encoder_pooler.14} parent=0 // pred_fallthru
    _
  // Predicated region
  $region18: #{encoder_pooler.14} parent=0 // pred_check
    _
  $region19: #{encoder_pooler.14} parent=0 // pred_check_branch
    %133 = sbr.rel (0) target = $region21
  $region20: #{encoder_pooler.14} parent=0 // pred_region
    _
  $region21: #{encoder_pooler.14} parent=0 // pred_fallthru
    _

// kernel: encoder_pooler.15
$region0: #{encoder_pooler.15}
  #allocation0 [shape = 'u32[]', space=smem, size = 0x4, offset = 0x4, fixed_abs, tag = 'smem constant byte address 0x4 - core index']
  #allocation1 [shape = 'u32[144,128]{1,0:T(1,128)}', space=vmem, size = 0x12000, scoped, tag = 'internal scratch']
  %s0 = inlined_call_operand.vmem [shape: f32[16,64], index: 0, kind: input, shape index: {}]
  %s1 = inlined_call_operand.vmem [shape: f32[64,32], index: 1, kind: input, shape index: {}]
  %s2 = inlined_call_operand.vmem [shape: f32[1,32], index: 2, kind: input, shape index: {}]
  %s3 = inlined_call_operand.vmem [shape: f32[16,32], index: 3, kind: input, shape index: {}]
  %s4 = inlined_call_operand.vmem [shape: f32[1,32], index: 4, kind: input, shape index: {}]
  %s5 = inlined_call_operand.vmem [shape: f32[1,32], index: 5, kind: input, shape index: {}]
  %s6 = inlined_call_operand.vmem [shape: f32[16,32], index: 6, kind: output, shape index: {}]
  %s7 = sld [smem:[#allocation0]]
  $region34: #{encoder_pooler.15} parent=0
    _
  %s9 = ssub.s32 1, %s7
  %s10 = scalar_select 0, %s9, %s7
  // Predicated region
  $region2: #{encoder_pooler.15} parent=0 // pred_check
    _
  $region3: #{encoder_pooler.15} parent=0 // pred_check_branch
    %12 = sbr.rel (0) target = $region5
  $region4: #{encoder_pooler.15} parent=0 // pred_region
    _
  $region5: #{encoder_pooler.15} parent=0 // pred_fallthru
    _
  // Predicated region
  $region6: #{encoder_pooler.15} parent=0 // pred_check
    _
  $region7: #{encoder_pooler.15} parent=0 // pred_check_branch
    %14 = sbr.rel (0) target = $region9
  $region8: #{encoder_pooler.15} parent=0 // pred_region
    _
  $region9: #{encoder_pooler.15} parent=0 // pred_fallthru
    _
  // Predicated region
  $region10: #{encoder_pooler.15} parent=0 // pred_check
    _
  $region11: #{encoder_pooler.15} parent=0 // pred_check_branch
    %16 = sbr.rel (0) target = $region13
  $region12: #{encoder_pooler.15} parent=0 // pred_region
    _
  $region13: #{encoder_pooler.15} parent=0 // pred_fallthru
    _
  // Predicated region
  $region14: #{encoder_pooler.15} parent=0 // pred_check
    _
  $region15: #{encoder_pooler.15} parent=0 // pred_check_branch
    %18 = sbr.rel (0) target = $region17
  $region16: #{encoder_pooler.15} parent=0 // pred_region
    _
  $region17: #{encoder_pooler.15} parent=0 // pred_fallthru
    _
  // Predicated region
  $region18: #{encoder_pooler.15} parent=0 // pred_check
    _
  $region19: #{encoder_pooler.15} parent=0 // pred_check_branch
    %20 = sbr.rel (0) target = $region21
  $region20: #{encoder_pooler.15} parent=0 // pred_region
    _
  $region21: #{encoder_pooler.15} parent=0 // pred_fallthru
    _
  // Predicated region
  $region22: #{encoder_pooler.15} parent=0 // pred_check
    _
  $region23: #{encoder_pooler.15} parent=0 // pred_check_branch
    %22 = sbr.rel (0) target = $region25
  $region24: #{encoder_pooler.15} parent=0 // pred_region
    _
  $region25: #{encoder_pooler.15} parent=0 // pred_fallthru
    _
  %v23 = vld [vmem:[%s0] sm:$0xff]
  %v24 = vld [vmem:[%s0 + $0x8] sm:$0xff]
  %v25 = vld [vmem:[%s1] sm:$0xff]
  %v26 = vld [vmem:[%s1 + $0x8] sm:$0xff]
  %v27 = vld [vmem:[%s1 + $0x10] sm:$0xff]
  %v28 = vld [vmem:[%s1 + $0x18] sm:$0xff]
  %v29 = vld [vmem:[%s1 + $0x20] sm:$0xff]
  %v30 = vld [vmem:[%s1 + $0x28] sm:$0xff]
  %v31 = vld [vmem:[%s1 + $0x30] sm:$0xff]
  %v32 = vld [vmem:[%s1 + $0x38] sm:$0xff]
  %v33 = vld [vmem:[%s2] sm:$0x1]
  %v35 = vlaneseq
  %v36 = vshrl.u32 %v35, 7
  %v37 = vsub.s32 0, %v36
  %v38 = vrot.slane %v33, %v37
  %vm40 = vcmask 523264
  %v42 = vsel %vm40, %v23, 0
  %v45 = vsel %vm40, %v24, 0
  %47 = vmatprep.subr.mxu0 0.0
  %48 = vmatpush1.msra.mxu0 %v25
  %49 = vmatprep.subr.mxu0 0.0
  %50 = vmatpush1.msra.mxu0 %v26
  %51 = vmatprep.subr.mxu0 0.0
  %52 = vmatpush1.msra.mxu0 %v27
  %53 = vmatprep.subr.mxu0 0.0
  %54 = vmatpush1.msra.mxu0 %v28
  %55 = vmatprep.subr.mxu0 0.0
  %56 = vmatpush1.msra.mxu0 %v29
  %57 = vmatprep.subr.mxu0 0.0
  %58 = vmatpush1.msra.mxu0 %v30
  %59 = vmatprep.subr.mxu0 0.0
  %60 = vmatpush1.msra.mxu0 %v31
  %61 = vmatprep.subr.mxu0 0.0
  %62 = vmatpush1.msra.mxu0 %v32
  %63 = vmatprep.subr.mxu0 0.0
  %64 = vmatpush1.msra.mxu0 0.0
  %65 = vmatprep.subr.mxu0 0.0
  %66 = vmatpush1.msra.mxu0 0.0
  %67 = vmatprep.subr.mxu0 0.0
  %68 = vmatpush1.msra.mxu0 0.0
  %69 = vmatprep.subr.mxu0 0.0
  %70 = vmatpush1.msra.mxu0 0.0
  %71 = vmatprep.subr.mxu0 0.0
  %72 = vmatpush1.msra.mxu0 0.0
  %73 = vmatprep.subr.mxu0 0.0
  %74 = vmatpush1.msra.mxu0 0.0
  %75 = vmatprep.subr.mxu0 0.0
  %76 = vmatpush1.msra.mxu0 0.0
  %77 = vmatprep.subr.mxu0 0.0
  %78 = vmatpush1.msra.mxu0 0.0
  %79 = vmatprep.subr.mxu0 0.0
  %80 = vmatpush1.msra.mxu0 0.0
  %81 = vmatprep.subr.mxu0 0.0
  %82 = vmatpush1.msra.mxu0 0.0
  %83 = vmatprep.subr.mxu0 0.0
  %84 = vmatpush1.msra.mxu0 0.0
  %85 = vmatprep.subr.mxu0 0.0
  %86 = vmatpush1.msra.mxu0 0.0
  %87 = vmatprep.subr.mxu0 0.0
  %88 = vmatpush1.msra.mxu0 0.0
  %89 = vmatprep.subr.mxu0 0.0
  %90 = vmatpush1.msra.mxu0 0.0
  %91 = vmatprep.subr.mxu0 0.0
  %92 = vmatpush1.msra.mxu0 0.0
  %93 = vmatprep.subr.mxu0 0.0
  %94 = vmatpush1.msra.mxu0 0.0
  %95 = vmatprep.subr.mxu0 0.0
  %96 = vmatpush1.msra.mxu0 0.0
  %97 = vmatprep.subr.mxu0 0.0
  %98 = vmatpush1.msra.mxu0 0.0
  %99 = vmatprep.subr.mxu0 0.0
  %100 = vmatpush1.msra.mxu0 0.0
  %101 = vmatprep.subr.mxu0 0.0
  %102 = vmatpush1.msra.mxu0 0.0
  %103 = vmatprep.subr.mxu0 0.0
  %104 = vmatpush1.msra.mxu0 0.0
  %105 = vmatprep.subr.mxu0 0.0
  %106 = vmatpush1.msra.mxu0 0.0
  %107 = vmatprep.subr.mxu0 0.0
  %108 = vmatpush1.msra.mxu0 0.0
  %109 = vmatprep.subr.mxu0 0.0
  %110 = vmatpush1.msra.mxu0 0.0
  %111 = vmatprep.mubr.f32.mxu0 0.0
  %112 = vmatmul.mubr.f32.gmra.mrb[0].mxu0 %v42
  %v113 = vpop.f32.mrb[0].mxu0
  %v114 = vadd.f32 %v38, %v113
  %v115 = vpop.f32.mrb[0].mxu0
  %116 = vmatprep.mubr.f32.mxu0 0.0
  %117 = vmatmul.mubr.f32.gmra.mrb[0].mxu0 %v45
  %v118 = vpop.f32.mrb[0].mxu0
  %v119 = vadd.f32 %v38, %v118
  %v120 = vpop.f32.mrb[0].mxu0
  %121 = vdwg.mxu0
  %v122 = vld [vmem:[%s3] sm:$0xff]
  %v123 = vld [vmem:[%s3 + $0x8] sm:$0xff]
  %v124 = vadd.f32 %v114, %v122
  %v125 = vadd.f32 %v119, %v123
  %vm126 = vcmask 261120
  %v127 = vsel %vm126, %v124, 0.0
  %128 = vadd.xlane.f32.xlu0 %v127
  %v129 = vpop.xlane.xlu0 %128
  %v130 = vsel %vm126, %v125, 0.0
  %131 = vadd.xlane.f32.xlu0 %v130
  %v132 = vpop.xlane.xlu0 %131
  %v133 = vrcp.pop 32.0
  %v134 = vmul.f32 %v129, %v133
  %v135 = vmul.f32 %v132, %v133
  %v136 = vsub.f32 %v124, %v134
  %v137 = vsub.f32 %v125, %v135
  %v138 = vmul.f32 %v136, %v136
  %v139 = vmul.f32 %v137, %v137
  %v140 = vsel %vm126, %v138, 0.0
  %141 = vadd.xlane.f32.xlu0 %v140
  %v142 = vpop.xlane.xlu0 %141
  %v143 = vsel %vm126, %v139, 0.0
  %144 = vadd.xlane.f32.xlu0 %v143
  %v145 = vpop.xlane.xlu0 %144
  %v146 = vmul.f32 %v142, %v133
  %v147 = vmul.f32 %v145, %v133
  %v148 = vadd.f32 %v146, 1e-12
  %v149 = vadd.f32 %v147, 1e-12
  %v150 = vrsqrt.pop %v148
  %v151 = vrsqrt.pop %v149
  %v152 = vmul.f32 %v136, %v150
  %v153 = vmul.f32 %v137, %v151
  %v154 = vld [vmem:[%s4] sm:$0x1]
  %v156 = vlaneseq
  %v157 = vshrl.u32 %v156, 7
  %v158 = vsub.s32 0, %v157
  %v159 = vrot.slane %v154, %v158
  %v161 = vmul.f32 %v152, %v159
  %v162 = vmul.f32 %v153, %v159
  %v163 = vld [vmem:[%s5] sm:$0x1]
  %v165 = vlaneseq
  %v166 = vshrl.u32 %v165, 7
  %v167 = vsub.s32 0, %v166
  %v168 = vrot.slane %v163, %v167
  %v170 = vadd.f32 %v161, %v168
  %v171 = vadd.f32 %v162, %v168
  %172 = vst.msk [vmem:[%s6] sm:$0xff] %vm126, %v170
  %173 = vst.msk [vmem:[%s6 + $0x8] sm:$0xff] %vm126, %v171
  // Predicated region
  $region26: #{encoder_pooler.15} parent=0 // pred_check
    _
  $region27: #{encoder_pooler.15} parent=0 // pred_check_branch
    %175 = sbr.rel (0) target = $region29
  $region28: #{encoder_pooler.15} parent=0 // pred_region
    _
  $region29: #{encoder_pooler.15} parent=0 // pred_fallthru
    _
  // Predicated region
  $region30: #{encoder_pooler.15} parent=0 // pred_check
    _
  $region31: #{encoder_pooler.15} parent=0 // pred_check_branch
    %177 = sbr.rel (0) target = $region33
  $region32: #{encoder_pooler.15} parent=0 // pred_region
    _
  $region33: #{encoder_pooler.15} parent=0 // pred_fallthru
    _

// kernel: encoder_pooler.21
$region0: #{encoder_pooler.21}
  #allocation0 [shape = 'u32[]', space=smem, size = 0x4, offset = 0x4, fixed_abs, tag = 'smem constant byte address 0x4 - core index']
  #allocation1 [shape = 'u32[144,128]{1,0:T(1,128)}', space=vmem, size = 0x12000, scoped, tag = 'internal scratch']
  %s0 = inlined_call_operand.vmem [shape: f32[2,32], index: 0, kind: input, shape index: {}]
  %s1 = inlined_call_operand.vmem [shape: f32[32,32], index: 1, kind: input, shape index: {}]
  %s2 = inlined_call_operand.vmem [shape: f32[1,32], index: 2, kind: input, shape index: {}]
  %s3 = inlined_call_operand.hbm [shape: f32[2,32], index: 3, kind: output, shape index: {}]
  %s4 = sld [smem:[#allocation0]]
  $region22: #{encoder_pooler.21} parent=0
    _
  %s6 = ssub.s32 1, %s4
  %s7 = scalar_select 0, %s6, %s4
  $region1: #{encoder_pooler.21} parent=0
    #allocation2 [shape = 'u8[1024]{0}', space=vmem, size = 0x400, scoped, tag = 'output window, operand 0, single buffered']
    #allocation3 [shape = 's32[1]{0}', space=sflag, size = 0x4, scoped, tag = 'scoped memory for encoder_pooler.21']
    %8 = vsyncpa [#allocation3], 0
    // Predicated region
    $region2: #{encoder_pooler.21} parent=1 // pred_check
      _
    $region3: #{encoder_pooler.21} parent=1 // pred_check_branch
      %10 = sbr.rel (0) target = $region5
    $region4: #{encoder_pooler.21} parent=1 // pred_region
      _
    $region5: #{encoder_pooler.21} parent=1 // pred_fallthru
      _
    // Predicated region
    $region6: #{encoder_pooler.21} parent=1 // pred_check
      _
    $region7: #{encoder_pooler.21} parent=1 // pred_check_branch
      %12 = sbr.rel (0) target = $region9
    $region8: #{encoder_pooler.21} parent=1 // pred_region
      _
    $region9: #{encoder_pooler.21} parent=1 // pred_fallthru
      _
    // Predicated region
    $region10: #{encoder_pooler.21} parent=1 // pred_check
      _
    $region11: #{encoder_pooler.21} parent=1 // pred_check_branch
      %14 = sbr.rel (0) target = $region13
    $region12: #{encoder_pooler.21} parent=1 // pred_region
      _
    $region13: #{encoder_pooler.21} parent=1 // pred_fallthru
      _
    %v15 = vld [vmem:[%s0] sm:$0x3]
    %v16 = vld [vmem:[%s1] sm:$0xff]
    %v17 = vld [vmem:[%s1 + $0x8] sm:$0xff]
    %v18 = vld [vmem:[%s1 + $0x10] sm:$0xff]
    %v19 = vld [vmem:[%s1 + $0x18] sm:$0xff]
    %v20 = vld [vmem:[%s2] sm:$0x1]
    %v22 = vlaneseq
    %v23 = vshrl.u32 %v22, 7
    %v24 = vsub.s32 0, %v23
    %v25 = vrot.slane %v20, %v24
    %vm27 = vcmask 261120
    %v29 = vsel %vm27, %v15, 0
    %31 = vmatprep.subr.mxu0 0.0
    %32 = vmatpush1.msra.mxu0 %v16
    %33 = vmatprep.subr.mxu0 0.0
    %34 = vmatpush1.msra.mxu0 %v17
    %35 = vmatprep.subr.mxu0 0.0
    %36 = vmatpush1.msra.mxu0 %v18
    %37 = vmatprep.subr.mxu0 0.0
    %38 = vmatpush1.msra.mxu0 %v19
    %39 = vmatprep.subr.mxu0 0.0
    %40 = vmatpush1.msra.mxu0 0.0
    %41 = vmatprep.subr.mxu0 0.0
    %42 = vmatpush1.msra.mxu0 0.0
    %43 = vmatprep.subr.mxu0 0.0
    %44 = vmatpush1.msra.mxu0 0.0
    %45 = vmatprep.subr.mxu0 0.0
    %46 = vmatpush1.msra.mxu0 0.0
    %47 = vmatprep.subr.mxu0 0.0
    %48 = vmatpush1.msra.mxu0 0.0
    %49 = vmatprep.subr.mxu0 0.0
    %50 = vmatpush1.msra.mxu0 0.0
    %51 = vmatprep.subr.mxu0 0.0
    %52 = vmatpush1.msra.mxu0 0.0
    %53 = vmatprep.subr.mxu0 0.0
    %54 = vmatpush1.msra.mxu0 0.0
    %55 = vmatprep.subr.mxu0 0.0
    %56 = vmatpush1.msra.mxu0 0.0
    %57 = vmatprep.subr.mxu0 0.0
    %58 = vmatpush1.msra.mxu0 0.0
    %59 = vmatprep.subr.mxu0 0.0
    %60 = vmatpush1.msra.mxu0 0.0
    %61 = vmatprep.subr.mxu0 0.0
    %62 = vmatpush1.msra.mxu0 0.0
    %63 = vmatprep.subr.mxu0 0.0
    %64 = vmatpush1.msra.mxu0 0.0
    %65 = vmatprep.subr.mxu0 0.0
    %66 = vmatpush1.msra.mxu0 0.0
    %67 = vmatprep.subr.mxu0 0.0
    %68 = vmatpush1.msra.mxu0 0.0
    %69 = vmatprep.subr.mxu0 0.0
    %70 = vmatpush1.msra.mxu0 0.0
    %71 = vmatprep.subr.mxu0 0.0
    %72 = vmatpush1.msra.mxu0 0.0
    %73 = vmatprep.subr.mxu0 0.0
    %74 = vmatpush1.msra.mxu0 0.0
    %75 = vmatprep.subr.mxu0 0.0
    %76 = vmatpush1.msra.mxu0 0.0
    %77 = vmatprep.subr.mxu0 0.0
    %78 = vmatpush1.msra.mxu0 0.0
    %79 = vmatprep.subr.mxu0 0.0
    %80 = vmatpush1.msra.mxu0 0.0
    %81 = vmatprep.subr.mxu0 0.0
    %82 = vmatpush1.msra.mxu0 0.0
    %83 = vmatprep.subr.mxu0 0.0
    %84 = vmatpush1.msra.mxu0 0.0
    %85 = vmatprep.subr.mxu0 0.0
    %86 = vmatpush1.msra.mxu0 0.0
    %87 = vmatprep.subr.mxu0 0.0
    %88 = vmatpush1.msra.mxu0 0.0
    %89 = vmatprep.subr.mxu0 0.0
    %90 = vmatpush1.msra.mxu0 0.0
    %91 = vmatprep.subr.mxu0 0.0
    %92 = vmatpush1.msra.mxu0 0.0
    %93 = vmatprep.subr.mxu0 0.0
    %94 = vmatpush1.msra.mxu0 0.0
    %95 = vmatprep.mubr.f32.mxu0 0.0
    %96 = vmatmul.mubr.f32.gmra.mrb[0].mxu0 %v29
    %v97 = vpop.f32.mrb[0].mxu0
    %v98 = vadd.f32 %v25, %v97
    %v99 = vpop.f32.mrb[0].mxu0
    %100 = vdwg.mxu0
    %v101 = vtanh.pop %v98
    %vm102 = vcmask 254976
    %103 = vst.msk [vmem:[#allocation2] sm:$0x3] %vm102, %v101
    // Predicated region
    $region14: #{encoder_pooler.21} parent=1 // pred_check
      _
    $region15: #{encoder_pooler.21} parent=1 // pred_check_branch
      %105 = sbr.rel (0) target = $region17
    $region16: #{encoder_pooler.21} parent=1 // pred_region
      %s107 = ssub.s32 32, 32
      %108 = vsyncadd [#allocation3], %s107
      %s110 = sshll.u32 [#allocation2], 4
      %s111 = int_to_ptr.vmem [resolvable:$true] %s110
      %113 = dma.vmem_to_hbm [thread:$0]  %s111, 32, %s3, [#allocation3]
    $region17: #{encoder_pooler.21} parent=1 // pred_fallthru
      _
    // Predicated region
    $region18: #{encoder_pooler.21} parent=1 // pred_check
      _
    $region19: #{encoder_pooler.21} parent=1 // pred_check_branch
      %115 = sbr.rel (0) target = $region21
    $region20: #{encoder_pooler.21} parent=1 // pred_region
      %116 = dma.done [#allocation3], 32
    $region21: #{encoder_pooler.21} parent=1 // pred_fallthru
      _
    %117 = vsyncpa [#allocation3], 1

</llo_original>
